<compile_context>
chip_gen: v7x
topology: tpu7x:2x2x1
jax: 0.10.0
libtpu: 0.0.40
codegen_flags: <defaults>
</compile_context>

<pallas_src>
import functools

import jax
import jax.numpy as jnp
from jax import lax
from jax.experimental import pallas as pl
from jax.experimental.pallas import tpu as pltpu

EPS = 1e-5                 # constant.eps
NEG_SLOPE = 0.2            # constant.LReLu_negative_slope


# ----------------------------------------------------------------------------
# Fused kernel. Layout inside: (N*C, H*W) f32 — row r = (n, c), lanes = h*W+w.
# ----------------------------------------------------------------------------
def _make_fused_kernel(N, C, H, W, K, dil0, dil1, neg_slope, eps):
    HW = H * W
    NC = N * C
    KK = K * K
    c0 = (K - 1) // 2

    def kernel(x_ref, w1_ref, w2_ref, cols_ref, mask_ref, stat_ref, o_ref):
        x = x_ref[...]                                         # (NC, HW) f32

        def dconv(blk, w_ref, bcol, dil, d_idx):
            """Dilated KxK conv: 9 rolled+masked taps -> one MXU matmul."""
            taps = []
            for ky in range(K):
                for kx in range(K):
                    dy = (ky - c0) * dil
                    dx = (kx - c0) * dil
                    if dy == 0 and dx == 0:
                        taps.append(blk)                        # center tap
                    else:
                        off = dy * W + dx                       # s[i] = blk[i+off]
                        rolled = pltpu.roll(blk, (-off) % HW, axis=1)
                        t = ky * K + kx
                        m = mask_ref[d_idx * KK + t:d_idx * KK + t + 1, :]
                        taps.append(jnp.where(m > 0.5, rolled, 0.0))
            stacked = jnp.concatenate(taps, axis=0)             # (KK*NC, HW)
            y = jnp.dot(w_ref[...], stacked,
                        preferred_element_type=jnp.float32)     # (NC, HW) on MXU
            return y + bcol                                     # per-row bias

        b1_col = cols_ref[:, 0:1]                               # (NC, 1)
        gamma_col = cols_ref[:, 1:2]
        beta_col = cols_ref[:, 2:3]
        b2_col = cols_ref[:, 3:4]

        # ---- conv1 (dilation dil0) -------------------------------------
        y1 = dconv(x, w1_ref, b1_col, dil0, 0)

        # ---- BatchNorm2d (training-mode batch stats) + LeakyReLU --------
        rs = jnp.sum(y1, axis=1, keepdims=True)                 # (NC, 1)
        rsq = jnp.sum(y1 * y1, axis=1, keepdims=True)           # (NC, 1)
        mom = jnp.dot(stat_ref[...],
                      jnp.concatenate([rs, rsq], axis=1),
                      preferred_element_type=jnp.float32)       # (NC,2): mean, E[x^2]
        mean = mom[:, 0:1]
        var = mom[:, 1:2] - mean * mean                         # biased variance
        scale = gamma_col * lax.rsqrt(var + eps)                # EUP
        shift = beta_col - mean * scale
        z = y1 * scale + shift
        z = jnp.where(z >= 0.0, z, neg_slope * z)               # LeakyReLU

        # ---- conv2 (dilation dil1) + residual ---------------------------
        y2 = dconv(z, w2_ref, b2_col, dil1, 1)
        o_ref[...] = (x + y2).astype(o_ref.dtype)

    return kernel


# ----------------------------------------------------------------------------
# Parameter preprocessing (plain JAX glue).
# ----------------------------------------------------------------------------
def spectral_normalize(w_oihw):
    # TODO(synk): PyTorch spectral_norm's persistent power-iteration `u` buffer
    # and BN running_mean/var updates are stateful; exact sigma_max is used here
    # and running stats are not updated (matches the JAX reference below).
    o = w_oihw.shape[0]
    return w_oihw / jnp.linalg.norm(w_oihw.reshape(o, -1), ord=2)


def _block_diag_weight(w_oihw, N):
    """(C,C,K,K) OIHW -> (N*C, K*K*N*C) block-diag matrix for the tap matmul."""
    C = w_oihw.shape[0]
    K = w_oihw.shape[2]
    w_flat = w_oihw.reshape(C, C, K * K)                        # (co, ci, t)
    eye_n = jnp.eye(N, dtype=w_oihw.dtype)
    big = jnp.einsum('oit,nm->notmi', w_flat, eye_n)            # (N,C,KK,N,C)
    return big.reshape(N * C, K * K * N * C)


def _tap_masks(H, W, K, dilations):
    """Zero-padding validity masks, one (H*W,) row per (dilation, tap)."""
    c0 = (K - 1) // 2
    idx = jnp.arange(H * W)
    hh, ww = idx // W, idx % W
    rows = []
    for d in dilations:
        for ky in range(K):
            for kx in range(K):
                dy, dx = (ky - c0) * d, (kx - c0) * d
                valid = ((hh + dy >= 0) & (hh + dy < H) &
                         (ww + dx >= 0) & (ww + dx < W))
                rows.append(valid.astype(jnp.float32))
    return jnp.stack(rows, axis=0)                              # (len(dil)*K*K, HW)


def dilate_res_block(x_nchw, params, K, dilation):
    N, C, H, W = x_nchw.shape
    HW = H * W

    w1 = spectral_normalize(params["w1"].astype(jnp.float32))
    w2 = spectral_normalize(params["w2"].astype(jnp.float32))
    w1_big = _block_diag_weight(w1, N)                          # (NC, KK*NC)
    w2_big = _block_diag_weight(w2, N)

    cols = jnp.stack(
        [jnp.tile(params["b1"].astype(jnp.float32), N),
         jnp.tile(params["gamma"].astype(jnp.float32), N),
         jnp.tile(params["beta"].astype(jnp.float32), N),
         jnp.tile(params["b2"].astype(jnp.float32), N)], axis=1)  # (NC, 4)

    masks = _tap_masks(H, W, K, dilation)                       # (2*KK, HW)

    # channel-sharing matrix scaled so matmul returns mean / E[x^2] directly
    stat_mat = (jnp.kron(jnp.ones((N, N), jnp.float32),
                         jnp.eye(C, dtype=jnp.float32)) / float(N * HW))  # (NC,NC)

    # NCHW -> (N*C, H*W): free row-major reshape; spatial on the lane axis.
    x2d = x_nchw.reshape(N * C, HW).astype(jnp.float32)

    vmem = functools.partial(pl.BlockSpec, memory_space=pltpu.MemorySpace.VMEM)

    out2d = pl.pallas_call(
        _make_fused_kernel(N, C, H, W, K, dilation[0], dilation[1],
                           NEG_SLOPE, EPS),
        out_shape=jax.ShapeDtypeStruct((N * C, HW), jnp.float32),
        in_specs=[vmem()] * 6,
        out_specs=vmem(),
    )(x2d, w1_big, w2_big, cols, masks, stat_mat)

    return out2d.reshape(N, C, H, W)


# ----------------------------------------------------------------------------
# Pure-JAX reference for verification.
# ----------------------------------------------------------------------------
def _oihw_to_hwio(w_oihw):
    return jnp.transpose(w_oihw, (2, 3, 1, 0))


def reference(x_nchw, params, K, dilation):
    x = jnp.transpose(x_nchw, (0, 2, 3, 1)).astype(jnp.float32)
    dn = ("NHWC", "HWIO", "NHWC")
    w1 = _oihw_to_hwio(spectral_normalize(params["w1"]))
    w2 = _oihw_to_hwio(spectral_normalize(params["w2"]))
    p1 = (K - 1) // 2 * dilation[0]
    p2 = (K - 1) // 2 * dilation[1]
    y1 = lax.conv_general_dilated(
        x, w1, (1, 1), [(p1, p1), (p1, p1)],
        rhs_dilation=(dilation[0], dilation[0]),
        dimension_numbers=dn) + params["b1"]
    mean = jnp.mean(y1, axis=(0, 1, 2))
    var = jnp.mean((y1 - mean) ** 2, axis=(0, 1, 2))
    z = (y1 - mean) / jnp.sqrt(var + EPS) * params["gamma"] + params["beta"]
    z = jnp.where(z >= 0.0, z, NEG_SLOPE * z)
    y2 = lax.conv_general_dilated(
        z, w2, (1, 1), [(p2, p2), (p2, p2)],
        rhs_dilation=(dilation[1], dilation[1]),
        dimension_numbers=dn) + params["b2"]
    return jnp.transpose(x + y2, (0, 3, 1, 2))


if __name__ == "__main__":
    # DilateResBlock(input_ch=4, kernel=3, stride=1, dilation=[3, 1])
    N, C, H, W = 2, 4, 16, 16
    K = 3
    DILATION = (3, 1)

    key = jax.random.PRNGKey(0)
    kx, k1, k2, kb1, kb2 = jax.random.split(key, 5)

    x = jax.random.normal(kx, (N, C, H, W), dtype=jnp.float32)        # NCHW
    params = {
        "w1": 0.1 * jax.random.normal(k1, (C, C, K, K), jnp.float32),  # OIHW
        "b1": 0.05 * jax.random.normal(kb1, (C,), jnp.float32),
        "w2": 0.1 * jax.random.normal(k2, (C, C, K, K), jnp.float32),
        "b2": 0.05 * jax.random.normal(kb2, (C,), jnp.float32),
        "gamma": jnp.ones((C,), jnp.float32),    # BatchNorm2d default init
        "beta": jnp.zeros((C,), jnp.float32),
    }

    fwd = jax.jit(functools.partial(dilate_res_block, K=K, dilation=DILATION))
    out = jax.block_until_ready(fwd(x, params))

    ref = jax.block_until_ready(reference(x, params, K, DILATION))
    assert out.shape == (N, C, H, W)
    assert jnp.allclose(out, ref, atol=2e-4, rtol=2e-4), float(
        jnp.max(jnp.abs(out - ref)))

    print("KERNEL_OK")
</pallas_src>

<mosaic_0001>
module attributes {stable_mosaic.version = 11 : i64} {
  func.func @kernel(%arg0: memref<8x256xf32, #tpu.memory_space<vmem>>, %arg1: memref<8x72xf32, #tpu.memory_space<vmem>>, %arg2: memref<8x72xf32, #tpu.memory_space<vmem>>, %arg3: memref<8x4xf32, #tpu.memory_space<vmem>>, %arg4: memref<18x256xf32, #tpu.memory_space<vmem>>, %arg5: memref<8x8xf32, #tpu.memory_space<vmem>>, %arg6: memref<8x256xf32, #tpu.memory_space<vmem>>) attributes {dimension_semantics = [], scalar_prefetch = 0 : i64, scratch_operands = 0 : i64, tpu.core_type = #tpu.core_type<tc>} {
    %c0 = arith.constant 0 : index
    %c0_0 = arith.constant 0 : index
    %0 = vector.load %arg0[%c0, %c0_0] : memref<8x256xf32, #tpu.memory_space<vmem>>, vector<8x256xf32>
    %c0_1 = arith.constant 0 : index
    %c0_2 = arith.constant 0 : index
    %1 = vector.load %arg3[%c0_1, %c0_2] : memref<8x4xf32, #tpu.memory_space<vmem>>, vector<8x1xf32>
    %c0_3 = arith.constant 0 : index
    %c1 = arith.constant 1 : index
    %2 = vector.load %arg3[%c0_3, %c1] : memref<8x4xf32, #tpu.memory_space<vmem>>, vector<8x1xf32>
    %c0_4 = arith.constant 0 : index
    %c2 = arith.constant 2 : index
    %3 = vector.load %arg3[%c0_4, %c2] : memref<8x4xf32, #tpu.memory_space<vmem>>, vector<8x1xf32>
    %c0_5 = arith.constant 0 : index
    %c3 = arith.constant 3 : index
    %4 = vector.load %arg3[%c0_5, %c3] : memref<8x4xf32, #tpu.memory_space<vmem>>, vector<8x1xf32>
    %c51_i32 = arith.constant 51 : i32
    %5 = tpu.dynamic_rotate %0 by %c51_i32 dim 1 : vector<8x256xf32>, i32 -> vector<8x256xf32>
    %c0_6 = arith.constant 0 : index
    %c0_7 = arith.constant 0 : index
    %6 = vector.load %arg4[%c0_6, %c0_7] : memref<18x256xf32, #tpu.memory_space<vmem>>, vector<1x256xf32>
    %cst = arith.constant 5.000000e-01 : f32
    %7 = vector.broadcast %cst : f32 to vector<1x256xf32>
    %8 = arith.cmpf ogt, %6, %7 : vector<1x256xf32>
    %cst_8 = arith.constant 0.000000e+00 : f32
    %9 = vector.shape_cast %8 : vector<1x256xi1> to vector<1x256xi1>
    %10 = vector.broadcast %9 : vector<1x256xi1> to vector<8x256xi1>
    %11 = vector.broadcast %cst_8 : f32 to vector<8x256xf32>
    %12 = arith.select %10, %5, %11 : vector<8x256xi1>, vector<8x256xf32>
    %c48_i32 = arith.constant 48 : i32
    %13 = tpu.dynamic_rotate %0 by %c48_i32 dim 1 : vector<8x256xf32>, i32 -> vector<8x256xf32>
    %c1_9 = arith.constant 1 : index
    %c0_10 = arith.constant 0 : index
    %14 = vector.load %arg4[%c1_9, %c0_10] : memref<18x256xf32, #tpu.memory_space<vmem>>, vector<1x256xf32>
    %cst_11 = arith.constant 5.000000e-01 : f32
    %15 = vector.broadcast %cst_11 : f32 to vector<1x256xf32>
    %16 = arith.cmpf ogt, %14, %15 : vector<1x256xf32>
    %cst_12 = arith.constant 0.000000e+00 : f32
    %17 = vector.shape_cast %16 : vector<1x256xi1> to vector<1x256xi1>
    %18 = vector.broadcast %17 : vector<1x256xi1> to vector<8x256xi1>
    %19 = vector.broadcast %cst_12 : f32 to vector<8x256xf32>
    %20 = arith.select %18, %13, %19 : vector<8x256xi1>, vector<8x256xf32>
    %c45_i32 = arith.constant 45 : i32
    %21 = tpu.dynamic_rotate %0 by %c45_i32 dim 1 : vector<8x256xf32>, i32 -> vector<8x256xf32>
    %c2_13 = arith.constant 2 : index
    %c0_14 = arith.constant 0 : index
    %22 = vector.load %arg4[%c2_13, %c0_14] : memref<18x256xf32, #tpu.memory_space<vmem>>, vector<1x256xf32>
    %cst_15 = arith.constant 5.000000e-01 : f32
    %23 = vector.broadcast %cst_15 : f32 to vector<1x256xf32>
    %24 = arith.cmpf ogt, %22, %23 : vector<1x256xf32>
    %cst_16 = arith.constant 0.000000e+00 : f32
    %25 = vector.shape_cast %24 : vector<1x256xi1> to vector<1x256xi1>
    %26 = vector.broadcast %25 : vector<1x256xi1> to vector<8x256xi1>
    %27 = vector.broadcast %cst_16 : f32 to vector<8x256xf32>
    %28 = arith.select %26, %21, %27 : vector<8x256xi1>, vector<8x256xf32>
    %c3_i32 = arith.constant 3 : i32
    %29 = tpu.dynamic_rotate %0 by %c3_i32 dim 1 : vector<8x256xf32>, i32 -> vector<8x256xf32>
    %c3_17 = arith.constant 3 : index
    %c0_18 = arith.constant 0 : index
    %30 = vector.load %arg4[%c3_17, %c0_18] : memref<18x256xf32, #tpu.memory_space<vmem>>, vector<1x256xf32>
    %cst_19 = arith.constant 5.000000e-01 : f32
    %31 = vector.broadcast %cst_19 : f32 to vector<1x256xf32>
    %32 = arith.cmpf ogt, %30, %31 : vector<1x256xf32>
    %cst_20 = arith.constant 0.000000e+00 : f32
    %33 = vector.shape_cast %32 : vector<1x256xi1> to vector<1x256xi1>
    %34 = vector.broadcast %33 : vector<1x256xi1> to vector<8x256xi1>
    %35 = vector.broadcast %cst_20 : f32 to vector<8x256xf32>
    %36 = arith.select %34, %29, %35 : vector<8x256xi1>, vector<8x256xf32>
    %c253_i32 = arith.constant 253 : i32
    %37 = tpu.dynamic_rotate %0 by %c253_i32 dim 1 : vector<8x256xf32>, i32 -> vector<8x256xf32>
    %c5 = arith.constant 5 : index
    %c0_21 = arith.constant 0 : index
    %38 = vector.load %arg4[%c5, %c0_21] : memref<18x256xf32, #tpu.memory_space<vmem>>, vector<1x256xf32>
    %cst_22 = arith.constant 5.000000e-01 : f32
    %39 = vector.broadcast %cst_22 : f32 to vector<1x256xf32>
    %40 = arith.cmpf ogt, %38, %39 : vector<1x256xf32>
    %cst_23 = arith.constant 0.000000e+00 : f32
    %41 = vector.shape_cast %40 : vector<1x256xi1> to vector<1x256xi1>
    %42 = vector.broadcast %41 : vector<1x256xi1> to vector<8x256xi1>
    %43 = vector.broadcast %cst_23 : f32 to vector<8x256xf32>
    %44 = arith.select %42, %37, %43 : vector<8x256xi1>, vector<8x256xf32>
    %c211_i32 = arith.constant 211 : i32
    %45 = tpu.dynamic_rotate %0 by %c211_i32 dim 1 : vector<8x256xf32>, i32 -> vector<8x256xf32>
    %c6 = arith.constant 6 : index
    %c0_24 = arith.constant 0 : index
    %46 = vector.load %arg4[%c6, %c0_24] : memref<18x256xf32, #tpu.memory_space<vmem>>, vector<1x256xf32>
    %cst_25 = arith.constant 5.000000e-01 : f32
    %47 = vector.broadcast %cst_25 : f32 to vector<1x256xf32>
    %48 = arith.cmpf ogt, %46, %47 : vector<1x256xf32>
    %cst_26 = arith.constant 0.000000e+00 : f32
    %49 = vector.shape_cast %48 : vector<1x256xi1> to vector<1x256xi1>
    %50 = vector.broadcast %49 : vector<1x256xi1> to vector<8x256xi1>
    %51 = vector.broadcast %cst_26 : f32 to vector<8x256xf32>
    %52 = arith.select %50, %45, %51 : vector<8x256xi1>, vector<8x256xf32>
    %c208_i32 = arith.constant 208 : i32
    %53 = tpu.dynamic_rotate %0 by %c208_i32 dim 1 : vector<8x256xf32>, i32 -> vector<8x256xf32>
    %c7 = arith.constant 7 : index
    %c0_27 = arith.constant 0 : index
    %54 = vector.load %arg4[%c7, %c0_27] : memref<18x256xf32, #tpu.memory_space<vmem>>, vector<1x256xf32>
    %cst_28 = arith.constant 5.000000e-01 : f32
    %55 = vector.broadcast %cst_28 : f32 to vector<1x256xf32>
    %56 = arith.cmpf ogt, %54, %55 : vector<1x256xf32>
    %cst_29 = arith.constant 0.000000e+00 : f32
    %57 = vector.shape_cast %56 : vector<1x256xi1> to vector<1x256xi1>
    %58 = vector.broadcast %57 : vector<1x256xi1> to vector<8x256xi1>
    %59 = vector.broadcast %cst_29 : f32 to vector<8x256xf32>
    %60 = arith.select %58, %53, %59 : vector<8x256xi1>, vector<8x256xf32>
    %c205_i32 = arith.constant 205 : i32
    %61 = tpu.dynamic_rotate %0 by %c205_i32 dim 1 : vector<8x256xf32>, i32 -> vector<8x256xf32>
    %c8 = arith.constant 8 : index
    %c0_30 = arith.constant 0 : index
    %62 = vector.load %arg4[%c8, %c0_30] : memref<18x256xf32, #tpu.memory_space<vmem>>, vector<1x256xf32>
    %cst_31 = arith.constant 5.000000e-01 : f32
    %63 = vector.broadcast %cst_31 : f32 to vector<1x256xf32>
    %64 = arith.cmpf ogt, %62, %63 : vector<1x256xf32>
    %cst_32 = arith.constant 0.000000e+00 : f32
    %65 = vector.shape_cast %64 : vector<1x256xi1> to vector<1x256xi1>
    %66 = vector.broadcast %65 : vector<1x256xi1> to vector<8x256xi1>
    %67 = vector.broadcast %cst_32 : f32 to vector<8x256xf32>
    %68 = arith.select %66, %61, %67 : vector<8x256xi1>, vector<8x256xf32>
    %69 = tpu.concatenate %12, %20, %28, %36, %0, %44, %52, %60, %68 in 0 : vector<8x256xf32>, vector<8x256xf32>, vector<8x256xf32>, vector<8x256xf32>, vector<8x256xf32>, vector<8x256xf32>, vector<8x256xf32>, vector<8x256xf32>, vector<8x256xf32> -> vector<72x256xf32>
    %c0_33 = arith.constant 0 : index
    %c0_34 = arith.constant 0 : index
    %70 = vector.load %arg1[%c0_33, %c0_34] : memref<8x72xf32, #tpu.memory_space<vmem>>, vector<8x72xf32>
    %cst_35 = arith.constant dense<0.000000e+00> : vector<8x256xf32>
    %71 = tpu.matmul %70, %69, %cst_35 {dimension_numbers = #tpu.dot_dimension_numbers<[1], [0], [0], [1], [0, 0, 1, 1], [], []>} : vector<8x72xf32>, vector<72x256xf32>, vector<8x256xf32> -> vector<8x256xf32>
    %72 = vector.broadcast %1 : vector<8x1xf32> to vector<8x256xf32>
    %73 = arith.addf %71, %72 : vector<8x256xf32>
    %cst_36 = arith.constant dense<0.000000e+00> : vector<8xf32>
    %74 = vector.multi_reduction <add>, %73, %cst_36 [1] : vector<8x256xf32> to vector<8xf32>
    %75 = vector.shape_cast %74 : vector<8xf32> to vector<8x1xf32>
    %76 = arith.mulf %73, %73 : vector<8x256xf32>
    %cst_37 = arith.constant dense<0.000000e+00> : vector<8xf32>
    %77 = vector.multi_reduction <add>, %76, %cst_37 [1] : vector<8x256xf32> to vector<8xf32>
    %78 = vector.shape_cast %77 : vector<8xf32> to vector<8x1xf32>
    %c0_38 = arith.constant 0 : index
    %c0_39 = arith.constant 0 : index
    %79 = vector.load %arg5[%c0_38, %c0_39] : memref<8x8xf32, #tpu.memory_space<vmem>>, vector<8x8xf32>
    %80 = tpu.concatenate %75, %78 in 1 : vector<8x1xf32>, vector<8x1xf32> -> vector<8x2xf32>
    %cst_40 = arith.constant dense<0.000000e+00> : vector<8x2xf32>
    %81 = tpu.matmul %79, %80, %cst_40 {dimension_numbers = #tpu.dot_dimension_numbers<[1], [0], [0], [1], [0, 0, 1, 1], [], []>} : vector<8x8xf32>, vector<8x2xf32>, vector<8x2xf32> -> vector<8x2xf32>
    %82 = vector.extract_strided_slice %81 {offsets = [0, 0], sizes = [8, 1], strides = [1, 1]} : vector<8x2xf32> to vector<8x1xf32>
    %83 = vector.extract_strided_slice %81 {offsets = [0, 1], sizes = [8, 1], strides = [1, 1]} : vector<8x2xf32> to vector<8x1xf32>
    %84 = arith.mulf %82, %82 : vector<8x1xf32>
    %85 = arith.subf %83, %84 : vector<8x1xf32>
    %cst_41 = arith.constant 9.99999974E-6 : f32
    %86 = vector.broadcast %cst_41 : f32 to vector<8x1xf32>
    %87 = arith.addf %85, %86 : vector<8x1xf32>
    %88 = math.rsqrt %87 : vector<8x1xf32>
    %89 = arith.mulf %2, %88 : vector<8x1xf32>
    %90 = arith.mulf %82, %89 : vector<8x1xf32>
    %91 = arith.subf %3, %90 : vector<8x1xf32>
    %92 = vector.broadcast %89 : vector<8x1xf32> to vector<8x256xf32>
    %93 = arith.mulf %73, %92 : vector<8x256xf32>
    %94 = vector.broadcast %91 : vector<8x1xf32> to vector<8x256xf32>
    %95 = arith.addf %93, %94 : vector<8x256xf32>
    %cst_42 = arith.constant 0.000000e+00 : f32
    %96 = vector.broadcast %cst_42 : f32 to vector<8x256xf32>
    %97 = arith.cmpf oge, %95, %96 : vector<8x256xf32>
    %cst_43 = arith.constant 2.000000e-01 : f32
    %98 = vector.broadcast %cst_43 : f32 to vector<8x256xf32>
    %99 = arith.mulf %98, %95 : vector<8x256xf32>
    %100 = arith.select %97, %95, %99 : vector<8x256xi1>, vector<8x256xf32>
    %c17_i32 = arith.constant 17 : i32
    %101 = tpu.dynamic_rotate %100 by %c17_i32 dim 1 : vector<8x256xf32>, i32 -> vector<8x256xf32>
    %c9 = arith.constant 9 : index
    %c0_44 = arith.constant 0 : index
    %102 = vector.load %arg4[%c9, %c0_44] : memref<18x256xf32, #tpu.memory_space<vmem>>, vector<1x256xf32>
    %cst_45 = arith.constant 5.000000e-01 : f32
    %103 = vector.broadcast %cst_45 : f32 to vector<1x256xf32>
    %104 = arith.cmpf ogt, %102, %103 : vector<1x256xf32>
    %cst_46 = arith.constant 0.000000e+00 : f32
    %105 = vector.shape_cast %104 : vector<1x256xi1> to vector<1x256xi1>
    %106 = vector.broadcast %105 : vector<1x256xi1> to vector<8x256xi1>
    %107 = vector.broadcast %cst_46 : f32 to vector<8x256xf32>
    %108 = arith.select %106, %101, %107 : vector<8x256xi1>, vector<8x256xf32>
    %c16_i32 = arith.constant 16 : i32
    %109 = tpu.dynamic_rotate %100 by %c16_i32 dim 1 : vector<8x256xf32>, i32 -> vector<8x256xf32>
    %c10 = arith.constant 10 : index
    %c0_47 = arith.constant 0 : index
    %110 = vector.load %arg4[%c10, %c0_47] : memref<18x256xf32, #tpu.memory_space<vmem>>, vector<1x256xf32>
    %cst_48 = arith.constant 5.000000e-01 : f32
    %111 = vector.broadcast %cst_48 : f32 to vector<1x256xf32>
    %112 = arith.cmpf ogt, %110, %111 : vector<1x256xf32>
    %cst_49 = arith.constant 0.000000e+00 : f32
    %113 = vector.shape_cast %112 : vector<1x256xi1> to vector<1x256xi1>
    %114 = vector.broadcast %113 : vector<1x256xi1> to vector<8x256xi1>
    %115 = vector.broadcast %cst_49 : f32 to vector<8x256xf32>
    %116 = arith.select %114, %109, %115 : vector<8x256xi1>, vector<8x256xf32>
    %c15_i32 = arith.constant 15 : i32
    %117 = tpu.dynamic_rotate %100 by %c15_i32 dim 1 : vector<8x256xf32>, i32 -> vector<8x256xf32>
    %c11 = arith.constant 11 : index
    %c0_50 = arith.constant 0 : index
    %118 = vector.load %arg4[%c11, %c0_50] : memref<18x256xf32, #tpu.memory_space<vmem>>, vector<1x256xf32>
    %cst_51 = arith.constant 5.000000e-01 : f32
    %119 = vector.broadcast %cst_51 : f32 to vector<1x256xf32>
    %120 = arith.cmpf ogt, %118, %119 : vector<1x256xf32>
    %cst_52 = arith.constant 0.000000e+00 : f32
    %121 = vector.shape_cast %120 : vector<1x256xi1> to vector<1x256xi1>
    %122 = vector.broadcast %121 : vector<1x256xi1> to vector<8x256xi1>
    %123 = vector.broadcast %cst_52 : f32 to vector<8x256xf32>
    %124 = arith.select %122, %117, %123 : vector<8x256xi1>, vector<8x256xf32>
    %c1_i32 = arith.constant 1 : i32
    %125 = tpu.dynamic_rotate %100 by %c1_i32 dim 1 : vector<8x256xf32>, i32 -> vector<8x256xf32>
    %c12 = arith.constant 12 : index
    %c0_53 = arith.constant 0 : index
    %126 = vector.load %arg4[%c12, %c0_53] : memref<18x256xf32, #tpu.memory_space<vmem>>, vector<1x256xf32>
    %cst_54 = arith.constant 5.000000e-01 : f32
    %127 = vector.broadcast %cst_54 : f32 to vector<1x256xf32>
    %128 = arith.cmpf ogt, %126, %127 : vector<1x256xf32>
    %cst_55 = arith.constant 0.000000e+00 : f32
    %129 = vector.shape_cast %128 : vector<1x256xi1> to vector<1x256xi1>
    %130 = vector.broadcast %129 : vector<1x256xi1> to vector<8x256xi1>
    %131 = vector.broadcast %cst_55 : f32 to vector<8x256xf32>
    %132 = arith.select %130, %125, %131 : vector<8x256xi1>, vector<8x256xf32>
    %c255_i32 = arith.constant 255 : i32
    %133 = tpu.dynamic_rotate %100 by %c255_i32 dim 1 : vector<8x256xf32>, i32 -> vector<8x256xf32>
    %c14 = arith.constant 14 : index
    %c0_56 = arith.constant 0 : index
    %134 = vector.load %arg4[%c14, %c0_56] : memref<18x256xf32, #tpu.memory_space<vmem>>, vector<1x256xf32>
    %cst_57 = arith.constant 5.000000e-01 : f32
    %135 = vector.broadcast %cst_57 : f32 to vector<1x256xf32>
    %136 = arith.cmpf ogt, %134, %135 : vector<1x256xf32>
    %cst_58 = arith.constant 0.000000e+00 : f32
    %137 = vector.shape_cast %136 : vector<1x256xi1> to vector<1x256xi1>
    %138 = vector.broadcast %137 : vector<1x256xi1> to vector<8x256xi1>
    %139 = vector.broadcast %cst_58 : f32 to vector<8x256xf32>
    %140 = arith.select %138, %133, %139 : vector<8x256xi1>, vector<8x256xf32>
    %c241_i32 = arith.constant 241 : i32
    %141 = tpu.dynamic_rotate %100 by %c241_i32 dim 1 : vector<8x256xf32>, i32 -> vector<8x256xf32>
    %c15 = arith.constant 15 : index
    %c0_59 = arith.constant 0 : index
    %142 = vector.load %arg4[%c15, %c0_59] : memref<18x256xf32, #tpu.memory_space<vmem>>, vector<1x256xf32>
    %cst_60 = arith.constant 5.000000e-01 : f32
    %143 = vector.broadcast %cst_60 : f32 to vector<1x256xf32>
    %144 = arith.cmpf ogt, %142, %143 : vector<1x256xf32>
    %cst_61 = arith.constant 0.000000e+00 : f32
    %145 = vector.shape_cast %144 : vector<1x256xi1> to vector<1x256xi1>
    %146 = vector.broadcast %145 : vector<1x256xi1> to vector<8x256xi1>
    %147 = vector.broadcast %cst_61 : f32 to vector<8x256xf32>
    %148 = arith.select %146, %141, %147 : vector<8x256xi1>, vector<8x256xf32>
    %c240_i32 = arith.constant 240 : i32
    %149 = tpu.dynamic_rotate %100 by %c240_i32 dim 1 : vector<8x256xf32>, i32 -> vector<8x256xf32>
    %c16 = arith.constant 16 : index
    %c0_62 = arith.constant 0 : index
    %150 = vector.load %arg4[%c16, %c0_62] : memref<18x256xf32, #tpu.memory_space<vmem>>, vector<1x256xf32>
    %cst_63 = arith.constant 5.000000e-01 : f32
    %151 = vector.broadcast %cst_63 : f32 to vector<1x256xf32>
    %152 = arith.cmpf ogt, %150, %151 : vector<1x256xf32>
    %cst_64 = arith.constant 0.000000e+00 : f32
    %153 = vector.shape_cast %152 : vector<1x256xi1> to vector<1x256xi1>
    %154 = vector.broadcast %153 : vector<1x256xi1> to vector<8x256xi1>
    %155 = vector.broadcast %cst_64 : f32 to vector<8x256xf32>
    %156 = arith.select %154, %149, %155 : vector<8x256xi1>, vector<8x256xf32>
    %c239_i32 = arith.constant 239 : i32
    %157 = tpu.dynamic_rotate %100 by %c239_i32 dim 1 : vector<8x256xf32>, i32 -> vector<8x256xf32>
    %c17 = arith.constant 17 : index
    %c0_65 = arith.constant 0 : index
    %158 = vector.load %arg4[%c17, %c0_65] : memref<18x256xf32, #tpu.memory_space<vmem>>, vector<1x256xf32>
    %cst_66 = arith.constant 5.000000e-01 : f32
    %159 = vector.broadcast %cst_66 : f32 to vector<1x256xf32>
    %160 = arith.cmpf ogt, %158, %159 : vector<1x256xf32>
    %cst_67 = arith.constant 0.000000e+00 : f32
    %161 = vector.shape_cast %160 : vector<1x256xi1> to vector<1x256xi1>
    %162 = vector.broadcast %161 : vector<1x256xi1> to vector<8x256xi1>
    %163 = vector.broadcast %cst_67 : f32 to vector<8x256xf32>
    %164 = arith.select %162, %157, %163 : vector<8x256xi1>, vector<8x256xf32>
    %165 = tpu.concatenate %108, %116, %124, %132, %100, %140, %148, %156, %164 in 0 : vector<8x256xf32>, vector<8x256xf32>, vector<8x256xf32>, vector<8x256xf32>, vector<8x256xf32>, vector<8x256xf32>, vector<8x256xf32>, vector<8x256xf32>, vector<8x256xf32> -> vector<72x256xf32>
    %c0_68 = arith.constant 0 : index
    %c0_69 = arith.constant 0 : index
    %166 = vector.load %arg2[%c0_68, %c0_69] : memref<8x72xf32, #tpu.memory_space<vmem>>, vector<8x72xf32>
    %cst_70 = arith.constant dense<0.000000e+00> : vector<8x256xf32>
    %167 = tpu.matmul %166, %165, %cst_70 {dimension_numbers = #tpu.dot_dimension_numbers<[1], [0], [0], [1], [0, 0, 1, 1], [], []>} : vector<8x72xf32>, vector<72x256xf32>, vector<8x256xf32> -> vector<8x256xf32>
    %168 = vector.broadcast %4 : vector<8x1xf32> to vector<8x256xf32>
    %169 = arith.addf %167, %168 : vector<8x256xf32>
    %170 = arith.addf %0, %169 : vector<8x256xf32>
    %c0_71 = arith.constant 0 : index
    %c0_72 = arith.constant 0 : index
    %171 = vector.load %arg6[%c0_71, %c0_72] : memref<8x256xf32, #tpu.memory_space<vmem>>, vector<8x256xf32>
    tpu.vector_store %arg6[%c0_71, %c0_72], %170 {strides = array<i32>} : memref<8x256xf32, #tpu.memory_space<vmem>>, vector<8x256xf32>,
    return
  }
}

</mosaic_0001>

<llo_original>
// kernel: custom-call.62
$region0: #{custom-call.62}
  %s0 = inlined_call_operand.vmem [shape: f32[36,4], index: 0, kind: input, shape index: {}]
  %s1 = inlined_call_operand.vmem [shape: f32[36,4], index: 1, kind: output, shape index: {0}]
  %s2 = inlined_call_operand.hbm [shape: f32[4], index: 2, kind: output, shape index: {1}]
  %3 = xla_tuple %s1, %s2
  $region1: #{custom-call.62} parent=0
    #allocation0 [shape = 'u8[20480]{0}', space=vmem, size = 0x5000, scoped, tag = 'operand span for operand 0']
    #allocation1 [shape = 'u8[20480]{0}', space=vmem, size = 0x5000, scoped, tag = 'operand span for operand 1']
    #allocation2 [shape = 'u8[4096]{0}', space=vmem, size = 0x1000, scoped, tag = 'operand span for operand 2']
    #allocation3 [shape = 'u8[512]{0}', space=vmem, size = 0x400, scoped, tag = 'packed  for operand 2']
    #allocation4 [shape = 's32[1]{0}', space=sflag, size = 0x4, scoped, tag = 'scoped memory for custom-call.62']
    #allocation5 [shape = 'f32[36,128]{1,0}', space=vmem, size = 0x5000, scoped, tag = 'scratch for Householder reflectors']
    %4 = vsyncpa [#allocation4], 0
    // Predicated region
    $region2: #{custom-call.62} parent=1 // pred_check
      _
    $region3: #{custom-call.62} parent=1 // pred_check_branch
      %6 = sbr.rel (0) target = $region5
    $region4: #{custom-call.62} parent=1 // pred_region
      // Predicated region
      $region6: #{custom-call.62} parent=4 // pred_check
        _
      $region7: #{custom-call.62} parent=4 // pred_check_branch
        %8 = sbr.rel (0) target = $region9
      $region8: #{custom-call.62} parent=4 // pred_region
        // Predicated region
        $region21: #{custom-call.62} parent=8 // pred_check
          _
        $region22: #{custom-call.62} parent=8 // pred_check_branch
          %31 = sbr.rel (0) target = $region24
        $region23: #{custom-call.62} parent=8 // pred_region
          loop: start=0, step=1, limit=1
          $region25: #{custom-call.62} parent=23 // loop_pre_header
            _
          $region26: #{custom-call.62} parent=23 // loop_header
            %s33 = sphi 0, %s37
            %p34 = scmp.ge.s32.totalorder %s33, 1
            %s38 = sphi %s0, %s0
            %s39 = sphi [#allocation0], [#allocation0]
          $region27: #{custom-call.62} parent=23 // loop_header_branch
            %36 = sbr.rel (%p34) target = $region31
          $region28: #{custom-call.62} parent=23 // loop_body
            %v40 = vld [vmem:[%s38] sm:$0xff]
            %41 = vst [vmem:[%s39] sm:$0xff] %v40
            %v42 = vld [vmem:[%s38 + $0x8] sm:$0xff]
            %43 = vst [vmem:[%s39 + $0x8] sm:$0xff] %v42
            %v44 = vld [vmem:[%s38 + $0x10] sm:$0xff]
            %45 = vst [vmem:[%s39 + $0x10] sm:$0xff] %v44
            %v46 = vld [vmem:[%s38 + $0x18] sm:$0xff]
            %47 = vst [vmem:[%s39 + $0x18] sm:$0xff] %v46
            %v48 = vld [vmem:[%s38 + $0x20] sm:$0xff]
            %49 = vst [vmem:[%s39 + $0x20] sm:$0xff] %v48
          $region29: #{custom-call.62} parent=23 // loop_footer
            %s37 = sadd.s32 1, %s33
          $region30: #{custom-call.62} parent=23 // loop_footer_branch
            %32 = sbr.rel target = $region26
          $region31: #{custom-call.62} parent=23 // loop_exit
            _
        $region24: #{custom-call.62} parent=8 // pred_fallthru
          _
        // Predicated region
        $region32: #{custom-call.62} parent=8 // pred_check
          _
        $region33: #{custom-call.62} parent=8 // pred_check_branch
          %51 = sbr.rel target = $region35
        $region34: #{custom-call.62} parent=8 // pred_region
          _
        $region35: #{custom-call.62} parent=8 // pred_fallthru
          _
      $region9: #{custom-call.62} parent=4 // pred_fallthru
        _
      // Predicated region
      $region10: #{custom-call.62} parent=4 // pred_check
        _
      $region11: #{custom-call.62} parent=4 // pred_check_branch
        %10 = sbr.rel target = $region13
      $region12: #{custom-call.62} parent=4 // pred_region
        loop: start=0, step=1, limit=1
        $region14: #{custom-call.62} parent=12 // loop_pre_header
          _
        $region15: #{custom-call.62} parent=12 // loop_header
          %s13 = sphi 0, %s17
          %p14 = scmp.ge.s32.totalorder %s13, 1
          %s18 = sphi %s0, %s0
          %s19 = sphi [#allocation0], [#allocation0]
        $region16: #{custom-call.62} parent=12 // loop_header_branch
          %16 = sbr.rel (%p14) target = $region20
        $region17: #{custom-call.62} parent=12 // loop_body
          %v20 = vld [vmem:[%s18] sm:$0xff]
          %21 = vst [vmem:[%s19] sm:$0xff] %v20
          %v22 = vld [vmem:[%s18 + $0x8] sm:$0xff]
          %23 = vst [vmem:[%s19 + $0x8] sm:$0xff] %v22
          %v24 = vld [vmem:[%s18 + $0x10] sm:$0xff]
          %25 = vst [vmem:[%s19 + $0x10] sm:$0xff] %v24
          %v26 = vld [vmem:[%s18 + $0x18] sm:$0xff]
          %27 = vst [vmem:[%s19 + $0x18] sm:$0xff] %v26
          %v28 = vld [vmem:[%s18 + $0x20] sm:$0xff]
          %29 = vst [vmem:[%s19 + $0x20] sm:$0xff] %v28
        $region18: #{custom-call.62} parent=12 // loop_footer
          %s17 = sadd.s32 1, %s13
        $region19: #{custom-call.62} parent=12 // loop_footer_branch
          %12 = sbr.rel target = $region15
        $region20: #{custom-call.62} parent=12 // loop_exit
          _
      $region13: #{custom-call.62} parent=4 // pred_fallthru
        _
    $region5: #{custom-call.62} parent=1 // pred_fallthru
      _
    %52 = vnop
    %v53 = vld [vmem:[#allocation0] sm:$0xff]
    %54 = vst [vmem:[#allocation1] sm:$0xff] %v53
    %s55 = scalar_lea.vmem [#allocation1], 8
    %s56 = scalar_lea.vmem [#allocation0], 8
    %v57 = vld [vmem:[%s56] sm:$0xff]
    %58 = vst [vmem:[%s55] sm:$0xff] %v57
    %s59 = scalar_lea.vmem [#allocation1], 16
    %s60 = scalar_lea.vmem [#allocation0], 16
    %v61 = vld [vmem:[%s60] sm:$0xff]
    %62 = vst [vmem:[%s59] sm:$0xff] %v61
    %s63 = scalar_lea.vmem [#allocation1], 24
    %s64 = scalar_lea.vmem [#allocation0], 24
    %v65 = vld [vmem:[%s64] sm:$0xff]
    %66 = vst [vmem:[%s63] sm:$0xff] %v65
    %s67 = scalar_lea.vmem [#allocation1], 32
    %s68 = scalar_lea.vmem [#allocation0], 32
    %v69 = vld [vmem:[%s68] sm:$0xff]
    %70 = vst [vmem:[%s67] sm:$0xff] %v69
    %71 = vst [vmem:[#allocation2] sm:$0x1] 0.0
    loop: start=0, step=1, limit=4
    $region36: #{custom-call.62} parent=1 // loop_pre_header
      _
    $region37: #{custom-call.62} parent=1 // loop_header
      %s73 = sphi 0, %s77
      %p74 = scmp.ge.s32.totalorder %s73, 4
    $region38: #{custom-call.62} parent=1 // loop_header_branch
      %76 = sbr.rel (%p74) target = $region42
    $region39: #{custom-call.62} parent=1 // loop_body
      %v78 = vld [vmem:[#allocation1] sm:$0xff]
      %v79 = vlaneseq
      %v80 = vshrl.u32 %v79, 7
      %v82 = vstv %s73
      %vm83 = vcmp.gt.s32.totalorder %v80, %v82
      %v84 = vsel %vm83, %v78, 0.0
      %v85 = vmul.f32 %v84, %v84
      %s86 = scalar_lea.vmem [#allocation1], 8
      %v87 = vld [vmem:[%s86] sm:$0xff]
      %v88 = vlaneseq
      %v89 = vshrl.u32 %v88, 7
      %v90 = vadd.s32 %v89, 8
      %v91 = vstv %s73
      %vm92 = vcmp.gt.s32.totalorder %v90, %v91
      %v93 = vsel %vm92, %v87, 0.0
      %v94 = vmul.f32 %v93, %v93
      %v95 = vadd.f32 %v85, %v94
      %s96 = scalar_lea.vmem [#allocation1], 16
      %v97 = vld [vmem:[%s96] sm:$0xff]
      %v98 = vlaneseq
      %v99 = vshrl.u32 %v98, 7
      %v100 = vadd.s32 %v99, 16
      %v101 = vstv %s73
      %vm102 = vcmp.gt.s32.totalorder %v100, %v101
      %v103 = vsel %vm102, %v97, 0.0
      %v104 = vmul.f32 %v103, %v103
      %v105 = vadd.f32 %v95, %v104
      %s106 = scalar_lea.vmem [#allocation1], 24
      %v107 = vld [vmem:[%s106] sm:$0xff]
      %v108 = vlaneseq
      %v109 = vshrl.u32 %v108, 7
      %v110 = vadd.s32 %v109, 24
      %v111 = vstv %s73
      %vm112 = vcmp.gt.s32.totalorder %v110, %v111
      %v113 = vsel %vm112, %v107, 0.0
      %v114 = vmul.f32 %v113, %v113
      %v115 = vadd.f32 %v105, %v114
      %s116 = scalar_lea.vmem [#allocation1], 32
      %v117 = vld [vmem:[%s116] sm:$0xff]
      %v118 = vlaneseq
      %v119 = vshrl.u32 %v118, 7
      %v120 = vadd.s32 %v119, 32
      %v121 = vstv %s73
      %vm122 = vcmp.gt.s32.totalorder %v120, %v121
      %vm123 = vcmp.lt.s32.totalorder %v120, 36
      %vm124 = vmand %vm122, %vm123
      %v125 = vsel %vm124, %v117, 0.0
      %v126 = vmul.f32 %v125, %v125
      %v127 = vadd.f32 %v115, %v126
      %v128 = vrot.slane %v127, 4
      %v129 = vadd.f32 %v127, %v128
      %v130 = vrot.slane %v129, 2
      %v131 = vadd.f32 %v129, %v130
      %v132 = vrot.slane %v131, 1
      %v133 = vadd.f32 %v131, %v132
      %v134 = vrsqrt.pop %v133
      %v135 = vmul.f32 %v133, %v134
      %vm136 = vcmp.eq.f32.partialorder %v133, inf
      %v137 = vsel %vm136, %v133, %v135
      %vm138 = vcmp.eq.f32.partialorder %v133, 0.0
      %v139 = vand.u32 %v133, 2147483648
      %v140 = vsel %vm138, %v139, %v137
      %vm141 = vcmp.eq.f32.partialorder %v133, 0.0
      %s142 = sshrl.u32 %s73, 3
      %s143 = sand.u32 %s73, 7
      %s144 = smul.addr %s142, 8
      %s145 = sadd.s32 %s143, %s144
      %s146 = scalar_lea.vmem [#allocation1], %s145
      %v147 = vld [vmem:[%s146] ss:$0 sm:$0xff]
      %v148 = vand.u32 2147483647, %v147
      %v149 = vmax.f32 %v148, 0.0
      %v150 = vand.u32 2147483647, %v140
      %v151 = vmax.f32 %v149, %v150
      %v152 = vrcp.pop %v151
      %v153 = vmul.f32 %v148, %v152
      %v154 = vmul.f32 %v153, %v153
      %v155 = vrcp.pop %v151
      %v156 = vmul.f32 0.0, %v155
      %v157 = vmul.f32 %v156, %v156
      %v158 = vadd.f32 %v154, %v157
      %v159 = vrcp.pop %v151
      %v160 = vmul.f32 %v150, %v159
      %v161 = vmul.f32 %v160, %v160
      %v162 = vadd.f32 %v158, %v161
      %vm163 = vcmp.eq.f32.partialorder %v151, 0.0
      %v164 = vrsqrt.pop %v162
      %v165 = vmul.f32 %v162, %v164
      %vm166 = vcmp.eq.f32.partialorder %v162, inf
      %v167 = vsel %vm166, %v162, %v165
      %vm168 = vcmp.eq.f32.partialorder %v162, 0.0
      %v169 = vand.u32 %v162, 2147483648
      %v170 = vsel %vm168, %v169, %v167
      %v171 = vmul.f32 %v151, %v170
      %v172 = vsel %vm163, 0.0, %v171
      %vm173 = vcmp.lt.f32.partialorder %v147, 0.0
      %v174 = vxor.u32 %v172, 2147483648
      %v175 = vsel %vm173, %v172, %v174
      %v176 = vsub.f32 %v175, %v147
      %v177 = vrcp.pop %v175
      %v178 = vmul.f32 %v176, %v177
      %v179 = vsel %vm141, %v147, %v175
      %v180 = vsel %vm141, 0.0, %v178
      %v181 = vsub.f32 %v147, %v179
      %s182 = smov [#allocation1]
      %v183 = vlaneseq
      %v184 = vshrl.u32 %v183, 7
      %v185 = vmov %v184
      %v186 = vld [vmem:[%s182] sm:$0xff]
      %v188 = vstv %s73
      %vm189 = vcmp.gt.s32.totalorder %v185, %v188
      %v190 = vsel %vm189, %v186, 0.0
      %v191 = vrcp.pop %v181
      %v192 = vmul.f32 %v190, %v191
      %v193 = vsel %vm141, 0.0, %v192
      %v194 = vstv %s73
      %v195 = vlaneseq
      %v196 = vand.u32 %v195, 127
      %vm197 = vcmp.eq.s32.totalorder %v196, %v194
      %v198 = vsel %vm197, %v193, 0.0
      %199 = vadd.xlane.f32.xlu0 %v198
      %v200 = vpop.xlane.xlu0 %199
      %201 = vst [vmem:[#allocation5] sm:$0xff] %v200
      %s202 = scalar_lea.vmem %s182, 8
      %v203 = vld [vmem:[%s202] sm:$0xff]
      %v204 = vadd.s32 %v185, 8
      %v205 = vstv %s73
      %vm206 = vcmp.gt.s32.totalorder %v204, %v205
      %v207 = vsel %vm206, %v203, 0.0
      %v208 = vrcp.pop %v181
      %v209 = vmul.f32 %v207, %v208
      %v210 = vsel %vm141, 0.0, %v209
      %v211 = vstv %s73
      %v212 = vlaneseq
      %v213 = vand.u32 %v212, 127
      %vm214 = vcmp.eq.s32.totalorder %v213, %v211
      %v215 = vsel %vm214, %v210, 0.0
      %216 = vadd.xlane.f32.xlu0 %v215
      %v217 = vpop.xlane.xlu0 %216
      %s218 = scalar_lea.vmem [#allocation5], 8
      %219 = vst [vmem:[%s218] sm:$0xff] %v217
      %s220 = scalar_lea.vmem %s182, 16
      %v221 = vld [vmem:[%s220] sm:$0xff]
      %v222 = vadd.s32 %v185, 16
      %v223 = vstv %s73
      %vm224 = vcmp.gt.s32.totalorder %v222, %v223
      %v225 = vsel %vm224, %v221, 0.0
      %v226 = vrcp.pop %v181
      %v227 = vmul.f32 %v225, %v226
      %v228 = vsel %vm141, 0.0, %v227
      %v229 = vstv %s73
      %v230 = vlaneseq
      %v231 = vand.u32 %v230, 127
      %vm232 = vcmp.eq.s32.totalorder %v231, %v229
      %v233 = vsel %vm232, %v228, 0.0
      %234 = vadd.xlane.f32.xlu0 %v233
      %v235 = vpop.xlane.xlu0 %234
      %s236 = scalar_lea.vmem [#allocation5], 16
      %237 = vst [vmem:[%s236] sm:$0xff] %v235
      %s238 = scalar_lea.vmem %s182, 24
      %v239 = vld [vmem:[%s238] sm:$0xff]
      %v240 = vadd.s32 %v185, 24
      %v241 = vstv %s73
      %vm242 = vcmp.gt.s32.totalorder %v240, %v241
      %v243 = vsel %vm242, %v239, 0.0
      %v244 = vrcp.pop %v181
      %v245 = vmul.f32 %v243, %v244
      %v246 = vsel %vm141, 0.0, %v245
      %v247 = vstv %s73
      %v248 = vlaneseq
      %v249 = vand.u32 %v248, 127
      %vm250 = vcmp.eq.s32.totalorder %v249, %v247
      %v251 = vsel %vm250, %v246, 0.0
      %252 = vadd.xlane.f32.xlu0 %v251
      %v253 = vpop.xlane.xlu0 %252
      %s254 = scalar_lea.vmem [#allocation5], 24
      %255 = vst [vmem:[%s254] sm:$0xff] %v253
      %s256 = scalar_lea.vmem %s182, 32
      %v257 = vld [vmem:[%s256] sm:$0xff]
      %v258 = vadd.s32 %v185, 32
      %v259 = vstv %s73
      %vm260 = vcmp.gt.s32.totalorder %v258, %v259
      %vm261 = vcmp.lt.s32.totalorder %v258, 36
      %vm262 = vmand %vm260, %vm261
      %v263 = vsel %vm262, %v257, 0.0
      %v264 = vrcp.pop %v181
      %v265 = vmul.f32 %v263, %v264
      %v266 = vsel %vm141, 0.0, %v265
      %v267 = vstv %s73
      %v268 = vlaneseq
      %v269 = vand.u32 %v268, 127
      %vm270 = vcmp.eq.s32.totalorder %v269, %v267
      %v271 = vsel %vm270, %v266, 0.0
      %272 = vadd.xlane.f32.xlu0 %v271
      %v273 = vpop.xlane.xlu0 %272
      %s274 = scalar_lea.vmem [#allocation5], 32
      %275 = vst [vmem:[%s274] sm:$0xff] %v273
      %s276 = scalar_lea.vmem [#allocation5], %s73
      %277 = vst [vmem:[%s276] sm:$0x1] 1.0
      %v278 = vstv %s73
      %v279 = vlaneseq
      %v280 = vand.u32 %v279, 127
      %vm281 = vcmp.eq.s32.totalorder %v280, %v278
      %v282 = vsel %vm281, %v180, 0.0
      %283 = vadd.xlane.f32.xlu0 %v282
      %v284 = vpop.xlane.xlu0 %283
      %v285 = vstv %s73
      %v286 = vlaneseq
      %v287 = vand.u32 %v286, 127
      %vm288 = vcmp.eq.s32.totalorder %v287, %v285
      %v289 = vld [vmem:[#allocation2] ss:$0 sm:$0xff]
      %v290 = vsel %vm288, %v284, %v289
      %291 = vst [vmem:[#allocation2] sm:$0x1] %v290
      %s292 = smov [#allocation1]
      %s293 = smov [#allocation5]
      %v294 = vlaneseq
      %v295 = vshrl.u32 %v294, 7
      %v296 = vmov %v295
      %v298 = vld [vmem:[%s293] sm:$0xff]
      %v299 = vld [vmem:[%s292] sm:$0xff]
      %v300 = vmul.f32 %v298, %v299
      %v301 = vadd.s32 %v296, 8
      %s302 = scalar_lea.vmem %s293, 8
      %v303 = vld [vmem:[%s302] sm:$0xff]
      %s304 = scalar_lea.vmem %s292, 8
      %v305 = vld [vmem:[%s304] sm:$0xff]
      %v306 = vmul.f32 %v303, %v305
      %v307 = vadd.f32 %v300, %v306
      %v308 = vadd.s32 %v296, 16
      %s309 = scalar_lea.vmem %s293, 16
      %v310 = vld [vmem:[%s309] sm:$0xff]
      %s311 = scalar_lea.vmem %s292, 16
      %v312 = vld [vmem:[%s311] sm:$0xff]
      %v313 = vmul.f32 %v310, %v312
      %v314 = vadd.f32 %v307, %v313
      %v315 = vadd.s32 %v296, 24
      %s316 = scalar_lea.vmem %s293, 24
      %v317 = vld [vmem:[%s316] sm:$0xff]
      %s318 = scalar_lea.vmem %s292, 24
      %v319 = vld [vmem:[%s318] sm:$0xff]
      %v320 = vmul.f32 %v317, %v319
      %v321 = vadd.f32 %v314, %v320
      %v322 = vadd.s32 %v296, 32
      %s323 = scalar_lea.vmem %s293, 32
      %v324 = vld [vmem:[%s323] sm:$0xff]
      %s325 = scalar_lea.vmem %s292, 32
      %v326 = vld [vmem:[%s325] sm:$0xff]
      %v327 = vmul.f32 %v324, %v326
      %vm328 = vcmp.lt.s32.totalorder %v322, 36
      %v329 = vsel %vm328, %v327, 0.0
      %v330 = vadd.f32 %v321, %v329
      %v331 = vrot.slane %v330, 4
      %v332 = vadd.f32 %v330, %v331
      %v333 = vrot.slane %v332, 2
      %v334 = vadd.f32 %v332, %v333
      %v335 = vrot.slane %v334, 1
      %v336 = vadd.f32 %v334, %v335
      %s337 = smov %s292
      %s338 = smov %s293
      %v339 = vlaneseq
      %v340 = vshrl.u32 %v339, 7
      %v341 = vmov %v340
      %v342 = vmul.f32 %v336, %v284
      %v344 = vlaneseq
      %v345 = vand.u32 %v344, 127
      %v346 = vld [vmem:[%s338] sm:$0xff]
      %v347 = vmul.f32 %v346, %v342
      %v348 = vld [vmem:[%s337] sm:$0xff]
      %v349 = vstv %s73
      %vm350 = vcmp.gt.s32.totalorder %v345, %v349
      %v351 = vsub.f32 %v348, %v347
      %v352 = vsel %vm350, %v351, %v348
      %v353 = vstv %s73
      %v354 = vlaneseq
      %v355 = vand.u32 %v354, 127
      %vm356 = vcmp.eq.s32.totalorder %v355, %v353
      %v357 = vstv %s73
      %vm358 = vcmp.ge.s32.totalorder %v341, %v357
      %vm359 = vmand %vm356, %vm358
      %v360 = vsel %vm359, %v346, %v352
      %361 = vst [vmem:[%s337] sm:$0xff] %v360
      %v362 = vadd.s32 %v341, 8
      %v363 = vlaneseq
      %v364 = vand.u32 %v363, 127
      %s365 = scalar_lea.vmem %s338, 8
      %v366 = vld [vmem:[%s365] sm:$0xff]
      %v367 = vmul.f32 %v366, %v342
      %s368 = scalar_lea.vmem %s337, 8
      %v369 = vld [vmem:[%s368] sm:$0xff]
      %v370 = vstv %s73
      %vm371 = vcmp.gt.s32.totalorder %v364, %v370
      %v372 = vsub.f32 %v369, %v367
      %v373 = vsel %vm371, %v372, %v369
      %v374 = vstv %s73
      %v375 = vlaneseq
      %v376 = vand.u32 %v375, 127
      %vm377 = vcmp.eq.s32.totalorder %v376, %v374
      %v378 = vstv %s73
      %vm379 = vcmp.ge.s32.totalorder %v362, %v378
      %vm380 = vmand %vm377, %vm379
      %v381 = vsel %vm380, %v366, %v373
      %382 = vst [vmem:[%s368] sm:$0xff] %v381
      %v383 = vadd.s32 %v341, 16
      %v384 = vlaneseq
      %v385 = vand.u32 %v384, 127
      %s386 = scalar_lea.vmem %s338, 16
      %v387 = vld [vmem:[%s386] sm:$0xff]
      %v388 = vmul.f32 %v387, %v342
      %s389 = scalar_lea.vmem %s337, 16
      %v390 = vld [vmem:[%s389] sm:$0xff]
      %v391 = vstv %s73
      %vm392 = vcmp.gt.s32.totalorder %v385, %v391
      %v393 = vsub.f32 %v390, %v388
      %v394 = vsel %vm392, %v393, %v390
      %v395 = vstv %s73
      %v396 = vlaneseq
      %v397 = vand.u32 %v396, 127
      %vm398 = vcmp.eq.s32.totalorder %v397, %v395
      %v399 = vstv %s73
      %vm400 = vcmp.ge.s32.totalorder %v383, %v399
      %vm401 = vmand %vm398, %vm400
      %v402 = vsel %vm401, %v387, %v394
      %403 = vst [vmem:[%s389] sm:$0xff] %v402
      %v404 = vadd.s32 %v341, 24
      %v405 = vlaneseq
      %v406 = vand.u32 %v405, 127
      %s407 = scalar_lea.vmem %s338, 24
      %v408 = vld [vmem:[%s407] sm:$0xff]
      %v409 = vmul.f32 %v408, %v342
      %s410 = scalar_lea.vmem %s337, 24
      %v411 = vld [vmem:[%s410] sm:$0xff]
      %v412 = vstv %s73
      %vm413 = vcmp.gt.s32.totalorder %v406, %v412
      %v414 = vsub.f32 %v411, %v409
      %v415 = vsel %vm413, %v414, %v411
      %v416 = vstv %s73
      %v417 = vlaneseq
      %v418 = vand.u32 %v417, 127
      %vm419 = vcmp.eq.s32.totalorder %v418, %v416
      %v420 = vstv %s73
      %vm421 = vcmp.ge.s32.totalorder %v404, %v420
      %vm422 = vmand %vm419, %vm421
      %v423 = vsel %vm422, %v408, %v415
      %424 = vst [vmem:[%s410] sm:$0xff] %v423
      %v425 = vadd.s32 %v341, 32
      %v426 = vlaneseq
      %v427 = vand.u32 %v426, 127
      %s428 = scalar_lea.vmem %s338, 32
      %v429 = vld [vmem:[%s428] sm:$0xff]
      %v430 = vmul.f32 %v429, %v342
      %s431 = scalar_lea.vmem %s337, 32
      %v432 = vld [vmem:[%s431] sm:$0xff]
      %v433 = vstv %s73
      %vm434 = vcmp.gt.s32.totalorder %v427, %v433
      %v435 = vsub.f32 %v432, %v430
      %v436 = vsel %vm434, %v435, %v432
      %v437 = vstv %s73
      %v438 = vlaneseq
      %v439 = vand.u32 %v438, 127
      %vm440 = vcmp.eq.s32.totalorder %v439, %v437
      %v441 = vstv %s73
      %vm442 = vcmp.ge.s32.totalorder %v425, %v441
      %vm443 = vmand %vm440, %vm442
      %v444 = vsel %vm443, %v429, %v436
      %445 = vst [vmem:[%s431] sm:$0xff] %v444
      %s446 = scalar_lea.vmem %s337, %s73
      %v447 = vld [vmem:[%s446] ss:$0 sm:$0xff]
      %v448 = vstv %s73
      %v449 = vlaneseq
      %v450 = vand.u32 %v449, 127
      %vm451 = vcmp.eq.s32.totalorder %v450, %v448
      %v452 = vsel %vm451, %v179, %v447
      %453 = vst [vmem:[%s446] sm:$0x1] %v452
    $region40: #{custom-call.62} parent=1 // loop_footer
      %s77 = sadd.s32 1, %s73
    $region41: #{custom-call.62} parent=1 // loop_footer_branch
      %72 = sbr.rel target = $region37
    $region42: #{custom-call.62} parent=1 // loop_exit
      _
    %s455 = sshllo.u32 0, 1
    %v457 = vld [vmem:[#allocation2] sm:%s455]
    %s458 = sshllo.u32 0, 1
    %459 = vst [vmem:[#allocation3] sm:%s458] %v457
    // Predicated region
    $region43: #{custom-call.62} parent=1 // pred_check
      _
    $region44: #{custom-call.62} parent=1 // pred_check_branch
      %461 = sbr.rel (0) target = $region46
    $region45: #{custom-call.62} parent=1 // pred_region
      // Predicated region
      $region47: #{custom-call.62} parent=45 // pred_check
        _
      $region48: #{custom-call.62} parent=45 // pred_check_branch
        %463 = sbr.rel (0) target = $region50
      $region49: #{custom-call.62} parent=45 // pred_region
        // Predicated region
        $region62: #{custom-call.62} parent=49 // pred_check
          _
        $region63: #{custom-call.62} parent=49 // pred_check_branch
          %486 = sbr.rel (0) target = $region65
        $region64: #{custom-call.62} parent=49 // pred_region
          loop: start=0, step=1, limit=1
          $region66: #{custom-call.62} parent=64 // loop_pre_header
            _
          $region67: #{custom-call.62} parent=64 // loop_header
            %s488 = sphi 0, %s492
            %p489 = scmp.ge.s32.totalorder %s488, 1
            %s493 = sphi [#allocation1], [#allocation1]
            %s494 = sphi %s1, %s1
          $region68: #{custom-call.62} parent=64 // loop_header_branch
            %491 = sbr.rel (%p489) target = $region72
          $region69: #{custom-call.62} parent=64 // loop_body
            %v495 = vld [vmem:[%s493] sm:$0xff]
            %496 = vst [vmem:[%s494] sm:$0xff] %v495
            %v497 = vld [vmem:[%s493 + $0x8] sm:$0xff]
            %498 = vst [vmem:[%s494 + $0x8] sm:$0xff] %v497
            %v499 = vld [vmem:[%s493 + $0x10] sm:$0xff]
            %500 = vst [vmem:[%s494 + $0x10] sm:$0xff] %v499
            %v501 = vld [vmem:[%s493 + $0x18] sm:$0xff]
            %502 = vst [vmem:[%s494 + $0x18] sm:$0xff] %v501
            %v503 = vld [vmem:[%s493 + $0x20] sm:$0xff]
            %504 = vst [vmem:[%s494 + $0x20] sm:$0xff] %v503
          $region70: #{custom-call.62} parent=64 // loop_footer
            %s492 = sadd.s32 1, %s488
          $region71: #{custom-call.62} parent=64 // loop_footer_branch
            %487 = sbr.rel target = $region67
          $region72: #{custom-call.62} parent=64 // loop_exit
            _
        $region65: #{custom-call.62} parent=49 // pred_fallthru
          _
        // Predicated region
        $region73: #{custom-call.62} parent=49 // pred_check
          _
        $region74: #{custom-call.62} parent=49 // pred_check_branch
          %506 = sbr.rel target = $region76
        $region75: #{custom-call.62} parent=49 // pred_region
          _
        $region76: #{custom-call.62} parent=49 // pred_fallthru
          _
      $region50: #{custom-call.62} parent=45 // pred_fallthru
        _
      // Predicated region
      $region51: #{custom-call.62} parent=45 // pred_check
        _
      $region52: #{custom-call.62} parent=45 // pred_check_branch
        %465 = sbr.rel target = $region54
      $region53: #{custom-call.62} parent=45 // pred_region
        loop: start=0, step=1, limit=1
        $region55: #{custom-call.62} parent=53 // loop_pre_header
          _
        $region56: #{custom-call.62} parent=53 // loop_header
          %s468 = sphi 0, %s472
          %p469 = scmp.ge.s32.totalorder %s468, 1
          %s473 = sphi [#allocation1], [#allocation1]
          %s474 = sphi %s1, %s1
        $region57: #{custom-call.62} parent=53 // loop_header_branch
          %471 = sbr.rel (%p469) target = $region61
        $region58: #{custom-call.62} parent=53 // loop_body
          %v475 = vld [vmem:[%s473] sm:$0xff]
          %476 = vst [vmem:[%s474] sm:$0xff] %v475
          %v477 = vld [vmem:[%s473 + $0x8] sm:$0xff]
          %478 = vst [vmem:[%s474 + $0x8] sm:$0xff] %v477
          %v479 = vld [vmem:[%s473 + $0x10] sm:$0xff]
          %480 = vst [vmem:[%s474 + $0x10] sm:$0xff] %v479
          %v481 = vld [vmem:[%s473 + $0x18] sm:$0xff]
          %482 = vst [vmem:[%s474 + $0x18] sm:$0xff] %v481
          %v483 = vld [vmem:[%s473 + $0x20] sm:$0xff]
          %484 = vst [vmem:[%s474 + $0x20] sm:$0xff] %v483
        $region59: #{custom-call.62} parent=53 // loop_footer
          %s472 = sadd.s32 1, %s468
        $region60: #{custom-call.62} parent=53 // loop_footer_branch
          %467 = sbr.rel target = $region56
        $region61: #{custom-call.62} parent=53 // loop_exit
          _
      $region54: #{custom-call.62} parent=45 // pred_fallthru
        _
    $region46: #{custom-call.62} parent=1 // pred_fallthru
      _
    %507 = vnop
    // Predicated region
    $region77: #{custom-call.62} parent=1 // pred_check
      _
    $region78: #{custom-call.62} parent=1 // pred_check_branch
      %509 = sbr.rel (0) target = $region80
    $region79: #{custom-call.62} parent=1 // pred_region
      %s511 = ssub.s32 16, 16
      %512 = vsyncadd [#allocation4], %s511
      %s514 = sshll.u32 [#allocation3], 4
      %s515 = int_to_ptr.vmem [resolvable:$true] %s514
      %517 = dma.vmem_to_hbm [thread:$0]  %s515, 16, %s2, [#allocation4]
    $region80: #{custom-call.62} parent=1 // pred_fallthru
      _
    // Predicated region
    $region81: #{custom-call.62} parent=1 // pred_check
      _
    $region82: #{custom-call.62} parent=1 // pred_check_branch
      %519 = sbr.rel (0) target = $region84
    $region83: #{custom-call.62} parent=1 // pred_region
      %520 = dma.done [#allocation4], 16
    $region84: #{custom-call.62} parent=1 // pred_fallthru
      _
    %521 = vsyncpa [#allocation4], 1

// kernel: custom-call.82
$region0: #{custom-call.82}
  %s0 = inlined_call_operand.vmem [shape: f32[8,4], index: 0, kind: input, shape index: {}]
  %s1 = inlined_call_operand.vmem [shape: f32[8,4], index: 1, kind: output, shape index: {0}]
  %s2 = inlined_call_operand.vmem [shape: f32[4], index: 2, kind: output, shape index: {1}]
  %3 = xla_tuple %s1, %s2
  $region1: #{custom-call.82} parent=0
    #allocation0 [shape = 'u8[4096]{0}', space=vmem, size = 0x1000, scoped, tag = 'operand span for operand 0']
    #allocation1 [shape = 'u8[4096]{0}', space=vmem, size = 0x1000, scoped, tag = 'operand span for operand 1']
    #allocation2 [shape = 'u8[4096]{0}', space=vmem, size = 0x1000, scoped, tag = 'operand span for operand 2']
    #allocation3 [shape = 'u8[512]{0}', space=vmem, size = 0x400, scoped, tag = 'packed  for operand 2']
    #allocation4 [shape = 'f32[8,128]{1,0}', space=vmem, size = 0x1000, scoped, tag = 'scratch for Householder reflectors']
    // Predicated region
    $region2: #{custom-call.82} parent=1 // pred_check
      _
    $region3: #{custom-call.82} parent=1 // pred_check_branch
      %5 = sbr.rel (0) target = $region5
    $region4: #{custom-call.82} parent=1 // pred_region
      // Predicated region
      $region6: #{custom-call.82} parent=4 // pred_check
        _
      $region7: #{custom-call.82} parent=4 // pred_check_branch
        %7 = sbr.rel (0) target = $region9
      $region8: #{custom-call.82} parent=4 // pred_region
        // Predicated region
        $region21: #{custom-call.82} parent=8 // pred_check
          _
        $region22: #{custom-call.82} parent=8 // pred_check_branch
          %22 = sbr.rel (0) target = $region24
        $region23: #{custom-call.82} parent=8 // pred_region
          loop: start=0, step=1, limit=1
          $region25: #{custom-call.82} parent=23 // loop_pre_header
            _
          $region26: #{custom-call.82} parent=23 // loop_header
            %s24 = sphi 0, %s28
            %p25 = scmp.ge.s32.totalorder %s24, 1
            %s29 = sphi %s0, %s0
            %s30 = sphi [#allocation0], [#allocation0]
          $region27: #{custom-call.82} parent=23 // loop_header_branch
            %27 = sbr.rel (%p25) target = $region31
          $region28: #{custom-call.82} parent=23 // loop_body
            %v31 = vld [vmem:[%s29] sm:$0xff]
            %32 = vst [vmem:[%s30] sm:$0xff] %v31
          $region29: #{custom-call.82} parent=23 // loop_footer
            %s28 = sadd.s32 1, %s24
          $region30: #{custom-call.82} parent=23 // loop_footer_branch
            %23 = sbr.rel target = $region26
          $region31: #{custom-call.82} parent=23 // loop_exit
            _
        $region24: #{custom-call.82} parent=8 // pred_fallthru
          _
        // Predicated region
        $region32: #{custom-call.82} parent=8 // pred_check
          _
        $region33: #{custom-call.82} parent=8 // pred_check_branch
          %34 = sbr.rel target = $region35
        $region34: #{custom-call.82} parent=8 // pred_region
          _
        $region35: #{custom-call.82} parent=8 // pred_fallthru
          _
      $region9: #{custom-call.82} parent=4 // pred_fallthru
        _
      // Predicated region
      $region10: #{custom-call.82} parent=4 // pred_check
        _
      $region11: #{custom-call.82} parent=4 // pred_check_branch
        %9 = sbr.rel target = $region13
      $region12: #{custom-call.82} parent=4 // pred_region
        loop: start=0, step=1, limit=1
        $region14: #{custom-call.82} parent=12 // loop_pre_header
          _
        $region15: #{custom-call.82} parent=12 // loop_header
          %s12 = sphi 0, %s16
          %p13 = scmp.ge.s32.totalorder %s12, 1
          %s17 = sphi %s0, %s0
          %s18 = sphi [#allocation0], [#allocation0]
        $region16: #{custom-call.82} parent=12 // loop_header_branch
          %15 = sbr.rel (%p13) target = $region20
        $region17: #{custom-call.82} parent=12 // loop_body
          %v19 = vld [vmem:[%s17] sm:$0xff]
          %20 = vst [vmem:[%s18] sm:$0xff] %v19
        $region18: #{custom-call.82} parent=12 // loop_footer
          %s16 = sadd.s32 1, %s12
        $region19: #{custom-call.82} parent=12 // loop_footer_branch
          %11 = sbr.rel target = $region15
        $region20: #{custom-call.82} parent=12 // loop_exit
          _
      $region13: #{custom-call.82} parent=4 // pred_fallthru
        _
    $region5: #{custom-call.82} parent=1 // pred_fallthru
      _
    %35 = vnop
    %v36 = vld [vmem:[#allocation0] sm:$0xff]
    %37 = vst [vmem:[#allocation1] sm:$0xff] %v36
    %38 = vst [vmem:[#allocation2] sm:$0x1] 0.0
    loop: start=0, step=1, limit=4
    $region36: #{custom-call.82} parent=1 // loop_pre_header
      _
    $region37: #{custom-call.82} parent=1 // loop_header
      %s40 = sphi 0, %s44
      %p41 = scmp.ge.s32.totalorder %s40, 4
    $region38: #{custom-call.82} parent=1 // loop_header_branch
      %43 = sbr.rel (%p41) target = $region42
    $region39: #{custom-call.82} parent=1 // loop_body
      %v45 = vld [vmem:[#allocation1] sm:$0xff]
      %v46 = vlaneseq
      %v47 = vshrl.u32 %v46, 7
      %v49 = vstv %s40
      %vm50 = vcmp.gt.s32.totalorder %v47, %v49
      %vm51 = vcmp.lt.s32.totalorder %v47, 8
      %vm52 = vmand %vm50, %vm51
      %v53 = vsel %vm52, %v45, 0.0
      %v54 = vmul.f32 %v53, %v53
      %v55 = vrot.slane %v54, 4
      %v56 = vadd.f32 %v54, %v55
      %v57 = vrot.slane %v56, 2
      %v58 = vadd.f32 %v56, %v57
      %v59 = vrot.slane %v58, 1
      %v60 = vadd.f32 %v58, %v59
      %v61 = vrsqrt.pop %v60
      %v62 = vmul.f32 %v60, %v61
      %vm63 = vcmp.eq.f32.partialorder %v60, inf
      %v64 = vsel %vm63, %v60, %v62
      %vm65 = vcmp.eq.f32.partialorder %v60, 0.0
      %v66 = vand.u32 %v60, 2147483648
      %v67 = vsel %vm65, %v66, %v64
      %vm68 = vcmp.eq.f32.partialorder %v60, 0.0
      %s69 = sshrl.u32 %s40, 3
      %s70 = sand.u32 %s40, 7
      %s71 = smul.addr %s69, 8
      %s72 = sadd.s32 %s70, %s71
      %s73 = scalar_lea.vmem [#allocation1], %s72
      %v74 = vld [vmem:[%s73] ss:$0 sm:$0xff]
      %v75 = vand.u32 2147483647, %v74
      %v76 = vmax.f32 %v75, 0.0
      %v77 = vand.u32 2147483647, %v67
      %v78 = vmax.f32 %v76, %v77
      %v79 = vrcp.pop %v78
      %v80 = vmul.f32 %v75, %v79
      %v81 = vmul.f32 %v80, %v80
      %v82 = vrcp.pop %v78
      %v83 = vmul.f32 0.0, %v82
      %v84 = vmul.f32 %v83, %v83
      %v85 = vadd.f32 %v81, %v84
      %v86 = vrcp.pop %v78
      %v87 = vmul.f32 %v77, %v86
      %v88 = vmul.f32 %v87, %v87
      %v89 = vadd.f32 %v85, %v88
      %vm90 = vcmp.eq.f32.partialorder %v78, 0.0
      %v91 = vrsqrt.pop %v89
      %v92 = vmul.f32 %v89, %v91
      %vm93 = vcmp.eq.f32.partialorder %v89, inf
      %v94 = vsel %vm93, %v89, %v92
      %vm95 = vcmp.eq.f32.partialorder %v89, 0.0
      %v96 = vand.u32 %v89, 2147483648
      %v97 = vsel %vm95, %v96, %v94
      %v98 = vmul.f32 %v78, %v97
      %v99 = vsel %vm90, 0.0, %v98
      %vm100 = vcmp.lt.f32.partialorder %v74, 0.0
      %v101 = vxor.u32 %v99, 2147483648
      %v102 = vsel %vm100, %v99, %v101
      %v103 = vsub.f32 %v102, %v74
      %v104 = vrcp.pop %v102
      %v105 = vmul.f32 %v103, %v104
      %v106 = vsel %vm68, %v74, %v102
      %v107 = vsel %vm68, 0.0, %v105
      %v108 = vsub.f32 %v74, %v106
      %s109 = smov [#allocation1]
      %v110 = vlaneseq
      %v111 = vshrl.u32 %v110, 7
      %v112 = vmov %v111
      %v113 = vld [vmem:[%s109] sm:$0xff]
      %v115 = vstv %s40
      %vm116 = vcmp.gt.s32.totalorder %v112, %v115
      %vm117 = vcmp.lt.s32.totalorder %v112, 8
      %vm118 = vmand %vm116, %vm117
      %v119 = vsel %vm118, %v113, 0.0
      %v120 = vrcp.pop %v108
      %v121 = vmul.f32 %v119, %v120
      %v122 = vsel %vm68, 0.0, %v121
      %v123 = vstv %s40
      %v124 = vlaneseq
      %v125 = vand.u32 %v124, 127
      %vm126 = vcmp.eq.s32.totalorder %v125, %v123
      %v127 = vsel %vm126, %v122, 0.0
      %128 = vadd.xlane.f32.xlu0 %v127
      %v129 = vpop.xlane.xlu0 %128
      %130 = vst [vmem:[#allocation4] sm:$0xff] %v129
      %s131 = scalar_lea.vmem [#allocation4], %s40
      %132 = vst [vmem:[%s131] sm:$0x1] 1.0
      %v133 = vstv %s40
      %v134 = vlaneseq
      %v135 = vand.u32 %v134, 127
      %vm136 = vcmp.eq.s32.totalorder %v135, %v133
      %v137 = vsel %vm136, %v107, 0.0
      %138 = vadd.xlane.f32.xlu0 %v137
      %v139 = vpop.xlane.xlu0 %138
      %v140 = vstv %s40
      %v141 = vlaneseq
      %v142 = vand.u32 %v141, 127
      %vm143 = vcmp.eq.s32.totalorder %v142, %v140
      %v144 = vld [vmem:[#allocation2] ss:$0 sm:$0xff]
      %v145 = vsel %vm143, %v139, %v144
      %146 = vst [vmem:[#allocation2] sm:$0x1] %v145
      %s147 = smov [#allocation1]
      %s148 = smov [#allocation4]
      %v149 = vlaneseq
      %v150 = vshrl.u32 %v149, 7
      %v151 = vmov %v150
      %v153 = vld [vmem:[%s148] sm:$0xff]
      %v154 = vld [vmem:[%s147] sm:$0xff]
      %v155 = vmul.f32 %v153, %v154
      %vm156 = vcmp.lt.s32.totalorder %v151, 8
      %v157 = vsel %vm156, %v155, 0.0
      %v158 = vrot.slane %v157, 4
      %v159 = vadd.f32 %v157, %v158
      %v160 = vrot.slane %v159, 2
      %v161 = vadd.f32 %v159, %v160
      %v162 = vrot.slane %v161, 1
      %v163 = vadd.f32 %v161, %v162
      %s164 = smov %s147
      %s165 = smov %s148
      %v166 = vlaneseq
      %v167 = vshrl.u32 %v166, 7
      %v168 = vmov %v167
      %v169 = vmul.f32 %v163, %v139
      %v171 = vlaneseq
      %v172 = vand.u32 %v171, 127
      %v173 = vld [vmem:[%s165] sm:$0xff]
      %v174 = vmul.f32 %v173, %v169
      %v175 = vld [vmem:[%s164] sm:$0xff]
      %v176 = vstv %s40
      %vm177 = vcmp.gt.s32.totalorder %v172, %v176
      %v178 = vsub.f32 %v175, %v174
      %v179 = vsel %vm177, %v178, %v175
      %v180 = vstv %s40
      %v181 = vlaneseq
      %v182 = vand.u32 %v181, 127
      %vm183 = vcmp.eq.s32.totalorder %v182, %v180
      %v184 = vstv %s40
      %vm185 = vcmp.ge.s32.totalorder %v168, %v184
      %vm186 = vmand %vm183, %vm185
      %v187 = vsel %vm186, %v173, %v179
      %188 = vst [vmem:[%s164] sm:$0xff] %v187
      %s189 = scalar_lea.vmem %s164, %s40
      %v190 = vld [vmem:[%s189] ss:$0 sm:$0xff]
      %v191 = vstv %s40
      %v192 = vlaneseq
      %v193 = vand.u32 %v192, 127
      %vm194 = vcmp.eq.s32.totalorder %v193, %v191
      %v195 = vsel %vm194, %v106, %v190
      %196 = vst [vmem:[%s189] sm:$0x1] %v195
    $region40: #{custom-call.82} parent=1 // loop_footer
      %s44 = sadd.s32 1, %s40
    $region41: #{custom-call.82} parent=1 // loop_footer_branch
      %39 = sbr.rel target = $region37
    $region42: #{custom-call.82} parent=1 // loop_exit
      _
    %s198 = sshllo.u32 0, 1
    %v200 = vld [vmem:[#allocation2] sm:%s198]
    %s201 = sshllo.u32 0, 1
    %202 = vst [vmem:[#allocation3] sm:%s201] %v200
    // Predicated region
    $region43: #{custom-call.82} parent=1 // pred_check
      _
    $region44: #{custom-call.82} parent=1 // pred_check_branch
      %204 = sbr.rel (0) target = $region46
    $region45: #{custom-call.82} parent=1 // pred_region
      // Predicated region
      $region47: #{custom-call.82} parent=45 // pred_check
        _
      $region48: #{custom-call.82} parent=45 // pred_check_branch
        %206 = sbr.rel (0) target = $region50
      $region49: #{custom-call.82} parent=45 // pred_region
        // Predicated region
        $region62: #{custom-call.82} parent=49 // pred_check
          _
        $region63: #{custom-call.82} parent=49 // pred_check_branch
          %221 = sbr.rel (0) target = $region65
        $region64: #{custom-call.82} parent=49 // pred_region
          loop: start=0, step=1, limit=1
          $region66: #{custom-call.82} parent=64 // loop_pre_header
            _
          $region67: #{custom-call.82} parent=64 // loop_header
            %s223 = sphi 0, %s227
            %p224 = scmp.ge.s32.totalorder %s223, 1
            %s228 = sphi [#allocation1], [#allocation1]
            %s229 = sphi %s1, %s1
          $region68: #{custom-call.82} parent=64 // loop_header_branch
            %226 = sbr.rel (%p224) target = $region72
          $region69: #{custom-call.82} parent=64 // loop_body
            %v230 = vld [vmem:[%s228] sm:$0xff]
            %231 = vst [vmem:[%s229] sm:$0xff] %v230
          $region70: #{custom-call.82} parent=64 // loop_footer
            %s227 = sadd.s32 1, %s223
          $region71: #{custom-call.82} parent=64 // loop_footer_branch
            %222 = sbr.rel target = $region67
          $region72: #{custom-call.82} parent=64 // loop_exit
            _
        $region65: #{custom-call.82} parent=49 // pred_fallthru
          _
        // Predicated region
        $region73: #{custom-call.82} parent=49 // pred_check
          _
        $region74: #{custom-call.82} parent=49 // pred_check_branch
          %233 = sbr.rel target = $region76
        $region75: #{custom-call.82} parent=49 // pred_region
          _
        $region76: #{custom-call.82} parent=49 // pred_fallthru
          _
      $region50: #{custom-call.82} parent=45 // pred_fallthru
        _
      // Predicated region
      $region51: #{custom-call.82} parent=45 // pred_check
        _
      $region52: #{custom-call.82} parent=45 // pred_check_branch
        %208 = sbr.rel target = $region54
      $region53: #{custom-call.82} parent=45 // pred_region
        loop: start=0, step=1, limit=1
        $region55: #{custom-call.82} parent=53 // loop_pre_header
          _
        $region56: #{custom-call.82} parent=53 // loop_header
          %s211 = sphi 0, %s215
          %p212 = scmp.ge.s32.totalorder %s211, 1
          %s216 = sphi [#allocation1], [#allocation1]
          %s217 = sphi %s1, %s1
        $region57: #{custom-call.82} parent=53 // loop_header_branch
          %214 = sbr.rel (%p212) target = $region61
        $region58: #{custom-call.82} parent=53 // loop_body
          %v218 = vld [vmem:[%s216] sm:$0xff]
          %219 = vst [vmem:[%s217] sm:$0xff] %v218
        $region59: #{custom-call.82} parent=53 // loop_footer
          %s215 = sadd.s32 1, %s211
        $region60: #{custom-call.82} parent=53 // loop_footer_branch
          %210 = sbr.rel target = $region56
        $region61: #{custom-call.82} parent=53 // loop_exit
          _
      $region54: #{custom-call.82} parent=45 // pred_fallthru
        _
    $region46: #{custom-call.82} parent=1 // pred_fallthru
      _
    %234 = vnop
    // Predicated region
    $region77: #{custom-call.82} parent=1 // pred_check
      _
    $region78: #{custom-call.82} parent=1 // pred_check_branch
      %236 = sbr.rel (0) target = $region80
    $region79: #{custom-call.82} parent=1 // pred_region
      // Predicated region
      $region81: #{custom-call.82} parent=79 // pred_check
        _
      $region82: #{custom-call.82} parent=79 // pred_check_branch
        %238 = sbr.rel (0) target = $region84
      $region83: #{custom-call.82} parent=79 // pred_region
        // Predicated region
        $region85: #{custom-call.82} parent=83 // pred_check
          _
        $region86: #{custom-call.82} parent=83 // pred_check_branch
          %240 = sbr.rel target = $region88
        $region87: #{custom-call.82} parent=83 // pred_region
          // Predicated region
          $region100: #{custom-call.82} parent=87 // pred_check
            _
          $region101: #{custom-call.82} parent=87 // pred_check_branch
            %255 = sbr.rel (0) target = $region103
          $region102: #{custom-call.82} parent=87 // pred_region
            loop: start=0, step=1, limit=1
            $region104: #{custom-call.82} parent=102 // loop_pre_header
              _
            $region105: #{custom-call.82} parent=102 // loop_header
              %s258 = sphi 0, %s262
              %p259 = scmp.ge.s32.totalorder %s258, 1
              %s263 = sphi [#allocation3], [#allocation3]
              %s264 = sphi %s2, %s2
            $region106: #{custom-call.82} parent=102 // loop_header_branch
              %261 = sbr.rel (%p259) target = $region110
            $region107: #{custom-call.82} parent=102 // loop_body
              %v265 = vld [vmem:[%s263] sm:$0x1]
              %266 = vst [vmem:[%s264] sm:$0x1] %v265
            $region108: #{custom-call.82} parent=102 // loop_footer
              %s262 = sadd.s32 1, %s258
            $region109: #{custom-call.82} parent=102 // loop_footer_branch
              %257 = sbr.rel target = $region105
            $region110: #{custom-call.82} parent=102 // loop_exit
              _
          $region103: #{custom-call.82} parent=87 // pred_fallthru
            _
        $region88: #{custom-call.82} parent=83 // pred_fallthru
          _
        // Predicated region
        $region89: #{custom-call.82} parent=83 // pred_check
          _
        $region90: #{custom-call.82} parent=83 // pred_check_branch
          %242 = sbr.rel (0) target = $region92
        $region91: #{custom-call.82} parent=83 // pred_region
          loop: start=0, step=1, limit=1
          $region93: #{custom-call.82} parent=91 // loop_pre_header
            _
          $region94: #{custom-call.82} parent=91 // loop_header
            %s245 = sphi 0, %s249
            %p246 = scmp.ge.s32.totalorder %s245, 1
            %s250 = sphi [#allocation3], [#allocation3]
            %s251 = sphi %s2, %s2
          $region95: #{custom-call.82} parent=91 // loop_header_branch
            %248 = sbr.rel (%p246) target = $region99
          $region96: #{custom-call.82} parent=91 // loop_body
            %v252 = vld [vmem:[%s250] sm:$0x1]
            %253 = vst [vmem:[%s251] sm:$0x1] %v252
          $region97: #{custom-call.82} parent=91 // loop_footer
            %s249 = sadd.s32 1, %s245
          $region98: #{custom-call.82} parent=91 // loop_footer_branch
            %244 = sbr.rel target = $region94
          $region99: #{custom-call.82} parent=91 // loop_exit
            _
        $region92: #{custom-call.82} parent=83 // pred_fallthru
          _
      $region84: #{custom-call.82} parent=79 // pred_fallthru
        _
      %267 = vnop
    $region80: #{custom-call.82} parent=1 // pred_fallthru
      _
    // Predicated region
    $region111: #{custom-call.82} parent=1 // pred_check
      _
    $region112: #{custom-call.82} parent=1 // pred_check_branch
      %269 = sbr.rel (0) target = $region114
    $region113: #{custom-call.82} parent=1 // pred_region
      _
    $region114: #{custom-call.82} parent=1 // pred_fallthru
      _

// kernel: custom-call.83
$region0: #{custom-call.83}
  %s0 = inlined_call_operand.vmem [shape: f32[4,4], index: 0, kind: input, shape index: {}]
  %s1 = inlined_call_operand.vmem [shape: f32[4,4], index: 1, kind: output, shape index: {}]
  $region1: #{custom-call.83} parent=0
    #allocation0 [shape = 'u8[4096]{0}', space=vmem, size = 0x1000, scoped, tag = 'operand span for operand 0']
    #allocation1 [shape = 'u8[2048]{0}', space=vmem, size = 0x800, scoped, tag = 'packed  for operand 0']
    #allocation2 [shape = 'u8[4096]{0}', space=vmem, size = 0x1000, scoped, tag = 'operand span for operand 1']
    #allocation3 [shape = 'u8[2048]{0}', space=vmem, size = 0x800, scoped, tag = 'packed  for operand 1']
    %p3 = scmp.gt.s32.totalorder 4, 0
    // Predicated region
    $region2: #{custom-call.83} parent=1 // pred_check
      %p4 = pneg %p3
    $region3: #{custom-call.83} parent=1 // pred_check_branch
      %6 = sbr.rel (%p4) target = $region5
    $region4: #{custom-call.83} parent=1 // pred_region
      %s7 = sshra.s32 4, 3
      %p8 = scmp.gt.s32.totalorder %s7, 0
      // Predicated region
      $region6: #{custom-call.83} parent=4 // pred_check
        %p9 = pneg %p8
      $region7: #{custom-call.83} parent=4 // pred_check_branch
        %11 = sbr.rel (%p9) target = $region9
      $region8: #{custom-call.83} parent=4 // pred_region
        %s12 = ssub.s32 %s7, 1
        %s13 = smul.u32 %s12, 128
        %s14 = sshra.s32 %s13, 4
        %s15 = scalar_lea.vmem %s0, %s14
        %v16 = vld [vmem:[%s0] sm:$0xff]
        // While loop
        $region10: #{custom-call.83} parent=8 // loop_pre_header
          _
        $region11: #{custom-call.83} parent=8 // loop_header
          %s17 = sphi %s0, %s39
          %s18 = sphi [#allocation1], %s40
          %v19 = vphi %v16, %v41
          %s20 = ssub.s32 %s15, 64
          %p21 = scmp.gt.s32.totalorder %s17, %s20
        $region12: #{custom-call.83} parent=8 // loop_header_branch
          %23 = sbr.rel (%p21) target = $region16
        $region13: #{custom-call.83} parent=8 // loop_body
          %24 = vst [vmem:[%s18] sm:$0xff] %v19
          %v25 = vld [vmem:[%s17 + $0x8] sm:$0xff]
          %26 = vst [vmem:[%s18 + $0x8] sm:$0xff] %v25
          %v27 = vld [vmem:[%s17 + $0x10] sm:$0xff]
          %28 = vst [vmem:[%s18 + $0x10] sm:$0xff] %v27
          %v29 = vld [vmem:[%s17 + $0x18] sm:$0xff]
          %30 = vst [vmem:[%s18 + $0x18] sm:$0xff] %v29
          %v31 = vld [vmem:[%s17 + $0x20] sm:$0xff]
          %32 = vst [vmem:[%s18 + $0x20] sm:$0xff] %v31
          %v33 = vld [vmem:[%s17 + $0x28] sm:$0xff]
          %34 = vst [vmem:[%s18 + $0x28] sm:$0xff] %v33
          %v35 = vld [vmem:[%s17 + $0x30] sm:$0xff]
          %36 = vst [vmem:[%s18 + $0x30] sm:$0xff] %v35
          %v37 = vld [vmem:[%s17 + $0x38] sm:$0xff]
          %38 = vst [vmem:[%s18 + $0x38] sm:$0xff] %v37
        $region14: #{custom-call.83} parent=8 // loop_footer
          %s39 = scalar_lea.vmem %s17, 64
          %s40 = scalar_lea.vmem %s18, 64
          %v41 = vld [vmem:[%s17 + $0x40] sm:$0xff]
        $region15: #{custom-call.83} parent=8 // loop_footer_branch
          %42 = sbr.rel target = $region11
        $region16: #{custom-call.83} parent=8 // loop_exit
          _
        // While loop
        $region17: #{custom-call.83} parent=8 // loop_pre_header
          _
        $region18: #{custom-call.83} parent=8 // loop_header
          %s43 = sphi %s17, %s51
          %s44 = sphi %s18, %s52
          %v45 = vphi %v19, %v45
          %p46 = scmp.gt.s32.totalorder %s43, %s15
        $region19: #{custom-call.83} parent=8 // loop_header_branch
          %48 = sbr.rel (%p46) target = $region23
        $region20: #{custom-call.83} parent=8 // loop_body
          %v49 = vld [vmem:[%s43] sm:$0xff]
          %50 = vst [vmem:[%s44] sm:$0xff] %v49
        $region21: #{custom-call.83} parent=8 // loop_footer
          %s51 = scalar_lea.vmem %s43, 8
          %s52 = scalar_lea.vmem %s44, 8
        $region22: #{custom-call.83} parent=8 // loop_footer_branch
          %53 = sbr.rel target = $region18
        $region23: #{custom-call.83} parent=8 // loop_exit
          _
      $region9: #{custom-call.83} parent=4 // pred_fallthru
        _
      %s54 = sand.u32 4, 7
      %s55 = sshllo.u32 0, %s54
      %s56 = smul.u32 %s7, 128
      %s57 = sshra.s32 %s56, 4
      %s58 = scalar_lea.vmem [#allocation1], %s57
      %s59 = smul.u32 %s7, 128
      %s60 = sshra.s32 %s59, 4
      %s61 = scalar_lea.vmem %s0, %s60
      %v62 = vld [vmem:[%s61] sm:%s55]
      %63 = vst [vmem:[%s58] sm:%s55] %v62
    $region5: #{custom-call.83} parent=1 // pred_fallthru
      _
    %s65 = sshllo.u32 0, 4
    %v66 = vld [vmem:[#allocation1] sm:%s65]
    %67 = vst [vmem:[#allocation0] sm:%s65] %v66
    %v68 = vlaneseq
    %v69 = vand.u32 %v68, 127
    %v70 = vlaneseq
    %v71 = vshrl.u32 %v70, 7
    %vm73 = vcmp.eq.s32.totalorder %v69, %v71
    %v74 = vld [vmem:[#allocation0] sm:$0xff]
    %v75 = vlaneseq
    %v76 = vand.u32 %v75, 127
    %vm77 = vcmp.eq.s32.totalorder %v76, 0
    %v78 = vsel %vm77, %v74, 1.0
    %v79 = vsel %vm73, %v78, 0.0
    %s80 = scalar_lea.vmem [#allocation0], 1
    %v81 = vld [vmem:[%s80] ss:$0 sm:$0xff]
    %vm82 = vcmask 31744
    %v83 = vsel %vm82, %v81, 0.0
    %v84 = vlaneseq
    %v85 = vand.u32 %v84, 127
    %vm86 = vcmp.eq.s32.totalorder %v85, 1
    %v87 = vmul.f32 %v83, %v79
    %88 = vadd.xlane.f32.xlu0 %v87
    %v89 = vpop.xlane.xlu0 %88
    %v90 = vsel %vm86, %v89, %v79
    %s91 = scalar_lea.vmem [#allocation0], 2
    %v92 = vld [vmem:[%s91] ss:$0 sm:$0xff]
    %vm93 = vcmask 31744
    %v94 = vsel %vm93, %v92, 0.0
    %v95 = vlaneseq
    %v96 = vand.u32 %v95, 127
    %vm97 = vcmp.eq.s32.totalorder %v96, 2
    %v98 = vmul.f32 %v94, %v90
    %99 = vadd.xlane.f32.xlu0 %v98
    %v100 = vpop.xlane.xlu0 %99
    %v101 = vsel %vm97, %v100, %v90
    %s102 = scalar_lea.vmem [#allocation0], 3
    %v103 = vld [vmem:[%s102] ss:$0 sm:$0xff]
    %vm104 = vcmask 31744
    %v105 = vsel %vm104, %v103, 0.0
    %v106 = vlaneseq
    %v107 = vand.u32 %v106, 127
    %vm108 = vcmp.eq.s32.totalorder %v107, 3
    %v109 = vmul.f32 %v105, %v101
    %110 = vadd.xlane.f32.xlu0 %v109
    %v111 = vpop.xlane.xlu0 %110
    %v112 = vsel %vm108, %v111, %v101
    %113 = vst [vmem:[#allocation2] sm:$0xff] %v112
    %s115 = sshllo.u32 0, 4
    %v117 = vld [vmem:[#allocation2] sm:%s115]
    %s118 = sshllo.u32 0, 4
    %119 = vst [vmem:[#allocation3] sm:%s118] %v117
    %p121 = scmp.gt.s32.totalorder 4, 0
    // Predicated region
    $region24: #{custom-call.83} parent=1 // pred_check
      %p122 = pneg %p121
    $region25: #{custom-call.83} parent=1 // pred_check_branch
      %124 = sbr.rel (%p122) target = $region27
    $region26: #{custom-call.83} parent=1 // pred_region
      %s125 = sshra.s32 4, 3
      %p126 = scmp.gt.s32.totalorder %s125, 0
      // Predicated region
      $region28: #{custom-call.83} parent=26 // pred_check
        %p127 = pneg %p126
      $region29: #{custom-call.83} parent=26 // pred_check_branch
        %129 = sbr.rel (%p127) target = $region31
      $region30: #{custom-call.83} parent=26 // pred_region
        %s130 = ssub.s32 %s125, 1
        %s131 = smul.u32 %s130, 128
        %s132 = sshra.s32 %s131, 4
        %s133 = scalar_lea.vmem [#allocation3], %s132
        %v134 = vld [vmem:[#allocation3] sm:$0xff]
        // While loop
        $region32: #{custom-call.83} parent=30 // loop_pre_header
          _
        $region33: #{custom-call.83} parent=30 // loop_header
          %s135 = sphi [#allocation3], %s157
          %s136 = sphi %s1, %s158
          %v137 = vphi %v134, %v159
          %s138 = ssub.s32 %s133, 64
          %p139 = scmp.gt.s32.totalorder %s135, %s138
        $region34: #{custom-call.83} parent=30 // loop_header_branch
          %141 = sbr.rel (%p139) target = $region38
        $region35: #{custom-call.83} parent=30 // loop_body
          %142 = vst [vmem:[%s136] sm:$0xff] %v137
          %v143 = vld [vmem:[%s135 + $0x8] sm:$0xff]
          %144 = vst [vmem:[%s136 + $0x8] sm:$0xff] %v143
          %v145 = vld [vmem:[%s135 + $0x10] sm:$0xff]
          %146 = vst [vmem:[%s136 + $0x10] sm:$0xff] %v145
          %v147 = vld [vmem:[%s135 + $0x18] sm:$0xff]
          %148 = vst [vmem:[%s136 + $0x18] sm:$0xff] %v147
          %v149 = vld [vmem:[%s135 + $0x20] sm:$0xff]
          %150 = vst [vmem:[%s136 + $0x20] sm:$0xff] %v149
          %v151 = vld [vmem:[%s135 + $0x28] sm:$0xff]
          %152 = vst [vmem:[%s136 + $0x28] sm:$0xff] %v151
          %v153 = vld [vmem:[%s135 + $0x30] sm:$0xff]
          %154 = vst [vmem:[%s136 + $0x30] sm:$0xff] %v153
          %v155 = vld [vmem:[%s135 + $0x38] sm:$0xff]
          %156 = vst [vmem:[%s136 + $0x38] sm:$0xff] %v155
        $region36: #{custom-call.83} parent=30 // loop_footer
          %s157 = scalar_lea.vmem %s135, 64
          %s158 = scalar_lea.vmem %s136, 64
          %v159 = vld [vmem:[%s135 + $0x40] sm:$0xff]
        $region37: #{custom-call.83} parent=30 // loop_footer_branch
          %160 = sbr.rel target = $region33
        $region38: #{custom-call.83} parent=30 // loop_exit
          _
        // While loop
        $region39: #{custom-call.83} parent=30 // loop_pre_header
          _
        $region40: #{custom-call.83} parent=30 // loop_header
          %s161 = sphi %s135, %s169
          %s162 = sphi %s136, %s170
          %v163 = vphi %v137, %v163
          %p164 = scmp.gt.s32.totalorder %s161, %s133
        $region41: #{custom-call.83} parent=30 // loop_header_branch
          %166 = sbr.rel (%p164) target = $region45
        $region42: #{custom-call.83} parent=30 // loop_body
          %v167 = vld [vmem:[%s161] sm:$0xff]
          %168 = vst [vmem:[%s162] sm:$0xff] %v167
        $region43: #{custom-call.83} parent=30 // loop_footer
          %s169 = scalar_lea.vmem %s161, 8
          %s170 = scalar_lea.vmem %s162, 8
        $region44: #{custom-call.83} parent=30 // loop_footer_branch
          %171 = sbr.rel target = $region40
        $region45: #{custom-call.83} parent=30 // loop_exit
          _
      $region31: #{custom-call.83} parent=26 // pred_fallthru
        _
      %s172 = sand.u32 4, 7
      %s173 = sshllo.u32 0, %s172
      %s174 = smul.u32 %s125, 128
      %s175 = sshra.s32 %s174, 4
      %s176 = scalar_lea.vmem %s1, %s175
      %s177 = smul.u32 %s125, 128
      %s178 = sshra.s32 %s177, 4
      %s179 = scalar_lea.vmem [#allocation3], %s178
      %v180 = vld [vmem:[%s179] sm:%s173]
      %181 = vst [vmem:[%s176] sm:%s173] %v180
    $region27: #{custom-call.83} parent=1 // pred_fallthru
      _

// kernel: custom-call.84
$region0: #{custom-call.84}
  %s0 = inlined_call_operand.vmem [shape: f32[4,4], index: 0, kind: input, shape index: {}]
  %s1 = inlined_call_operand.vmem [shape: f32[4,4], index: 1, kind: output, shape index: {}]
  $region1: #{custom-call.84} parent=0
    #allocation0 [shape = 'u8[4096]{0}', space=vmem, size = 0x1000, scoped, tag = 'operand span for operand 0']
    #allocation1 [shape = 'u8[2048]{0}', space=vmem, size = 0x800, scoped, tag = 'packed  for operand 0']
    #allocation2 [shape = 'u8[4096]{0}', space=vmem, size = 0x1000, scoped, tag = 'operand span for operand 1']
    #allocation3 [shape = 'u8[2048]{0}', space=vmem, size = 0x800, scoped, tag = 'packed  for operand 1']
    // Predicated region
    $region2: #{custom-call.84} parent=1 // pred_check
      _
    $region3: #{custom-call.84} parent=1 // pred_check_branch
      %3 = sbr.rel (0) target = $region5
    $region4: #{custom-call.84} parent=1 // pred_region
      // Predicated region
      $region6: #{custom-call.84} parent=4 // pred_check
        _
      $region7: #{custom-call.84} parent=4 // pred_check_branch
        %5 = sbr.rel target = $region9
      $region8: #{custom-call.84} parent=4 // pred_region
        // Predicated region
        $region21: #{custom-call.84} parent=8 // pred_check
          _
        $region22: #{custom-call.84} parent=8 // pred_check_branch
          %20 = sbr.rel (0) target = $region24
        $region23: #{custom-call.84} parent=8 // pred_region
          loop: start=0, step=1, limit=1
          $region25: #{custom-call.84} parent=23 // loop_pre_header
            _
          $region26: #{custom-call.84} parent=23 // loop_header
            %s23 = sphi 0, %s27
            %p24 = scmp.ge.s32.totalorder %s23, 1
            %s28 = sphi %s0, %s0
            %s29 = sphi [#allocation1], [#allocation1]
          $region27: #{custom-call.84} parent=23 // loop_header_branch
            %26 = sbr.rel (%p24) target = $region31
          $region28: #{custom-call.84} parent=23 // loop_body
            %v30 = vld [vmem:[%s28] sm:$0xf]
            %31 = vst [vmem:[%s29] sm:$0xf] %v30
          $region29: #{custom-call.84} parent=23 // loop_footer
            %s27 = sadd.s32 1, %s23
          $region30: #{custom-call.84} parent=23 // loop_footer_branch
            %22 = sbr.rel target = $region26
          $region31: #{custom-call.84} parent=23 // loop_exit
            _
        $region24: #{custom-call.84} parent=8 // pred_fallthru
          _
      $region9: #{custom-call.84} parent=4 // pred_fallthru
        _
      // Predicated region
      $region10: #{custom-call.84} parent=4 // pred_check
        _
      $region11: #{custom-call.84} parent=4 // pred_check_branch
        %7 = sbr.rel (0) target = $region13
      $region12: #{custom-call.84} parent=4 // pred_region
        loop: start=0, step=1, limit=1
        $region14: #{custom-call.84} parent=12 // loop_pre_header
          _
        $region15: #{custom-call.84} parent=12 // loop_header
          %s10 = sphi 0, %s14
          %p11 = scmp.ge.s32.totalorder %s10, 1
          %s15 = sphi %s0, %s0
          %s16 = sphi [#allocation1], [#allocation1]
        $region16: #{custom-call.84} parent=12 // loop_header_branch
          %13 = sbr.rel (%p11) target = $region20
        $region17: #{custom-call.84} parent=12 // loop_body
          %v17 = vld [vmem:[%s15] sm:$0xf]
          %18 = vst [vmem:[%s16] sm:$0xf] %v17
        $region18: #{custom-call.84} parent=12 // loop_footer
          %s14 = sadd.s32 1, %s10
        $region19: #{custom-call.84} parent=12 // loop_footer_branch
          %9 = sbr.rel target = $region15
        $region20: #{custom-call.84} parent=12 // loop_exit
          _
      $region13: #{custom-call.84} parent=4 // pred_fallthru
        _
    $region5: #{custom-call.84} parent=1 // pred_fallthru
      _
    %32 = vnop
    %s34 = sshllo.u32 0, 4
    %v35 = vld [vmem:[#allocation1] sm:%s34]
    %36 = vst [vmem:[#allocation0] sm:%s34] %v35
    %37 = vst [vmem:[#allocation2] sm:$0xff] 0.0
    %vm38 = vcmask 7168
    %v39 = vld [vmem:[#allocation2] ss:$0 sm:$0xff]
    %v40 = vld [vmem:[#allocation0] ss:$0 sm:$0xff]
    %v41 = vmul.f32 %v39, %v39
    %42 = vadd.xlane.f32.xlu0 %v41
    %v43 = vpop.xlane.xlu0 %42
    %v44 = vsub.f32 %v40, %v43
    %v45 = vrsqrt.pop %v44
    %v46 = vld [vmem:[#allocation0] sm:$0xff]
    %v47 = vld [vmem:[#allocation2] sm:$0xff]
    %v48 = vmul.f32 %v47, %v39
    %49 = vadd.xlane.f32.xlu0 %v48
    %v50 = vpop.xlane.xlu0 %49
    %v51 = vsub.f32 %v46, %v50
    %v52 = vmul.f32 %v51, %v45
    %v53 = vsel %vm38, %v52, 0.0
    %v54 = vadd.f32 %v47, %v53
    %55 = vst [vmem:[#allocation2] sm:$0xff] %v54
    %vm56 = vcmask 15368
    %s57 = scalar_lea.vmem [#allocation2], 1
    %v58 = vld [vmem:[%s57] ss:$0 sm:$0xff]
    %s59 = scalar_lea.vmem [#allocation0], 1
    %v60 = vld [vmem:[%s59] ss:$0 sm:$0xff]
    %v61 = vmul.f32 %v58, %v58
    %62 = vadd.xlane.f32.xlu0 %v61
    %v63 = vpop.xlane.xlu0 %62
    %v64 = vsub.f32 %v60, %v63
    %v65 = vrsqrt.pop %v64
    %v66 = vld [vmem:[#allocation0] sm:$0xff]
    %v67 = vld [vmem:[#allocation2] sm:$0xff]
    %v68 = vmul.f32 %v67, %v58
    %69 = vadd.xlane.f32.xlu0 %v68
    %v70 = vpop.xlane.xlu0 %69
    %v71 = vsub.f32 %v66, %v70
    %v72 = vmul.f32 %v71, %v65
    %vm73 = vcmask 1047553
    %vm74 = vmand %vm56, %vm73
    %v75 = vsel %vm74, %v72, 0.0
    %v76 = vadd.f32 %v67, %v75
    %77 = vst [vmem:[#allocation2] sm:$0xff] %v76
    %vm78 = vcmask 23568
    %s79 = scalar_lea.vmem [#allocation2], 2
    %v80 = vld [vmem:[%s79] ss:$0 sm:$0xff]
    %s81 = scalar_lea.vmem [#allocation0], 2
    %v82 = vld [vmem:[%s81] ss:$0 sm:$0xff]
    %v83 = vmul.f32 %v80, %v80
    %84 = vadd.xlane.f32.xlu0 %v83
    %v85 = vpop.xlane.xlu0 %84
    %v86 = vsub.f32 %v82, %v85
    %v87 = vrsqrt.pop %v86
    %v88 = vld [vmem:[#allocation0] sm:$0xff]
    %v89 = vld [vmem:[#allocation2] sm:$0xff]
    %v90 = vmul.f32 %v89, %v80
    %91 = vadd.xlane.f32.xlu0 %v90
    %v92 = vpop.xlane.xlu0 %91
    %v93 = vsub.f32 %v88, %v92
    %v94 = vmul.f32 %v93, %v87
    %vm95 = vcmask 1047554
    %vm96 = vmand %vm78, %vm95
    %v97 = vsel %vm96, %v94, 0.0
    %v98 = vadd.f32 %v89, %v97
    %99 = vst [vmem:[#allocation2] sm:$0xff] %v98
    %vm100 = vcmask 31768
    %s101 = scalar_lea.vmem [#allocation2], 3
    %v102 = vld [vmem:[%s101] ss:$0 sm:$0xff]
    %s103 = scalar_lea.vmem [#allocation0], 3
    %v104 = vld [vmem:[%s103] ss:$0 sm:$0xff]
    %v105 = vmul.f32 %v102, %v102
    %106 = vadd.xlane.f32.xlu0 %v105
    %v107 = vpop.xlane.xlu0 %106
    %v108 = vsub.f32 %v104, %v107
    %v109 = vrsqrt.pop %v108
    %v110 = vld [vmem:[#allocation0] sm:$0xff]
    %v111 = vld [vmem:[#allocation2] sm:$0xff]
    %v112 = vmul.f32 %v111, %v102
    %113 = vadd.xlane.f32.xlu0 %v112
    %v114 = vpop.xlane.xlu0 %113
    %v115 = vsub.f32 %v110, %v114
    %v116 = vmul.f32 %v115, %v109
    %vm117 = vcmask 1047555
    %vm118 = vmand %vm100, %vm117
    %v119 = vsel %vm118, %v116, 0.0
    %v120 = vadd.f32 %v111, %v119
    %121 = vst [vmem:[#allocation2] sm:$0xff] %v120
    %s123 = sshllo.u32 0, 4
    %v125 = vld [vmem:[#allocation2] sm:%s123]
    %s126 = sshllo.u32 0, 4
    %127 = vst [vmem:[#allocation3] sm:%s126] %v125
    // Predicated region
    $region32: #{custom-call.84} parent=1 // pred_check
      _
    $region33: #{custom-call.84} parent=1 // pred_check_branch
      %129 = sbr.rel (0) target = $region35
    $region34: #{custom-call.84} parent=1 // pred_region
      // Predicated region
      $region36: #{custom-call.84} parent=34 // pred_check
        _
      $region37: #{custom-call.84} parent=34 // pred_check_branch
        %131 = sbr.rel target = $region39
      $region38: #{custom-call.84} parent=34 // pred_region
        // Predicated region
        $region51: #{custom-call.84} parent=38 // pred_check
          _
        $region52: #{custom-call.84} parent=38 // pred_check_branch
          %146 = sbr.rel (0) target = $region54
        $region53: #{custom-call.84} parent=38 // pred_region
          loop: start=0, step=1, limit=1
          $region55: #{custom-call.84} parent=53 // loop_pre_header
            _
          $region56: #{custom-call.84} parent=53 // loop_header
            %s149 = sphi 0, %s153
            %p150 = scmp.ge.s32.totalorder %s149, 1
            %s154 = sphi [#allocation3], [#allocation3]
            %s155 = sphi %s1, %s1
          $region57: #{custom-call.84} parent=53 // loop_header_branch
            %152 = sbr.rel (%p150) target = $region61
          $region58: #{custom-call.84} parent=53 // loop_body
            %v156 = vld [vmem:[%s154] sm:$0xf]
            %157 = vst [vmem:[%s155] sm:$0xf] %v156
          $region59: #{custom-call.84} parent=53 // loop_footer
            %s153 = sadd.s32 1, %s149
          $region60: #{custom-call.84} parent=53 // loop_footer_branch
            %148 = sbr.rel target = $region56
          $region61: #{custom-call.84} parent=53 // loop_exit
            _
        $region54: #{custom-call.84} parent=38 // pred_fallthru
          _
      $region39: #{custom-call.84} parent=34 // pred_fallthru
        _
      // Predicated region
      $region40: #{custom-call.84} parent=34 // pred_check
        _
      $region41: #{custom-call.84} parent=34 // pred_check_branch
        %133 = sbr.rel (0) target = $region43
      $region42: #{custom-call.84} parent=34 // pred_region
        loop: start=0, step=1, limit=1
        $region44: #{custom-call.84} parent=42 // loop_pre_header
          _
        $region45: #{custom-call.84} parent=42 // loop_header
          %s136 = sphi 0, %s140
          %p137 = scmp.ge.s32.totalorder %s136, 1
          %s141 = sphi [#allocation3], [#allocation3]
          %s142 = sphi %s1, %s1
        $region46: #{custom-call.84} parent=42 // loop_header_branch
          %139 = sbr.rel (%p137) target = $region50
        $region47: #{custom-call.84} parent=42 // loop_body
          %v143 = vld [vmem:[%s141] sm:$0xf]
          %144 = vst [vmem:[%s142] sm:$0xf] %v143
        $region48: #{custom-call.84} parent=42 // loop_footer
          %s140 = sadd.s32 1, %s136
        $region49: #{custom-call.84} parent=42 // loop_footer_branch
          %135 = sbr.rel target = $region45
        $region50: #{custom-call.84} parent=42 // loop_exit
          _
      $region43: #{custom-call.84} parent=34 // pred_fallthru
        _
    $region35: #{custom-call.84} parent=1 // pred_fallthru
      _
    %158 = vnop

// kernel: custom-call.85
$region0: #{custom-call.85}
  %s0 = inlined_call_operand.vmem [shape: f32[1,4,4], index: 0, kind: input, shape index: {}]
  %s1 = inlined_call_operand.vmem [shape: f32[1,4,4], index: 1, kind: output, shape index: {}]
  $region1: #{custom-call.85} parent=0
    #allocation0 [shape = 'u8[4096]{0}', space=vmem, size = 0x1000, scoped, tag = 'operand span for operand 0']
    #allocation1 [shape = 'u8[2048]{0}', space=vmem, size = 0x800, scoped, tag = 'packed  for operand 0']
    #allocation2 [shape = 'u8[4096]{0}', space=vmem, size = 0x1000, scoped, tag = 'operand span for operand 1']
    #allocation3 [shape = 'u8[2048]{0}', space=vmem, size = 0x800, scoped, tag = 'packed  for operand 1']
    #allocation4 [shape = 'f32[4,4]{1,0}', space=vmem, size = 0x1000, scoped, tag = 'rescaled input a']
    // Predicated region
    $region2: #{custom-call.85} parent=1 // pred_check
      _
    $region3: #{custom-call.85} parent=1 // pred_check_branch
      %3 = sbr.rel (0) target = $region5
    $region4: #{custom-call.85} parent=1 // pred_region
      // Predicated region
      $region6: #{custom-call.85} parent=4 // pred_check
        _
      $region7: #{custom-call.85} parent=4 // pred_check_branch
        %5 = sbr.rel target = $region9
      $region8: #{custom-call.85} parent=4 // pred_region
        // Predicated region
        $region21: #{custom-call.85} parent=8 // pred_check
          _
        $region22: #{custom-call.85} parent=8 // pred_check_branch
          %20 = sbr.rel (0) target = $region24
        $region23: #{custom-call.85} parent=8 // pred_region
          loop: start=0, step=1, limit=1
          $region25: #{custom-call.85} parent=23 // loop_pre_header
            _
          $region26: #{custom-call.85} parent=23 // loop_header
            %s23 = sphi 0, %s27
            %p24 = scmp.ge.s32.totalorder %s23, 1
            %s28 = sphi %s0, %s0
            %s29 = sphi [#allocation1], [#allocation1]
          $region27: #{custom-call.85} parent=23 // loop_header_branch
            %26 = sbr.rel (%p24) target = $region31
          $region28: #{custom-call.85} parent=23 // loop_body
            %v30 = vld [vmem:[%s28] sm:$0xf]
            %31 = vst [vmem:[%s29] sm:$0xf] %v30
          $region29: #{custom-call.85} parent=23 // loop_footer
            %s27 = sadd.s32 1, %s23
          $region30: #{custom-call.85} parent=23 // loop_footer_branch
            %22 = sbr.rel target = $region26
          $region31: #{custom-call.85} parent=23 // loop_exit
            _
        $region24: #{custom-call.85} parent=8 // pred_fallthru
          _
      $region9: #{custom-call.85} parent=4 // pred_fallthru
        _
      // Predicated region
      $region10: #{custom-call.85} parent=4 // pred_check
        _
      $region11: #{custom-call.85} parent=4 // pred_check_branch
        %7 = sbr.rel (0) target = $region13
      $region12: #{custom-call.85} parent=4 // pred_region
        loop: start=0, step=1, limit=1
        $region14: #{custom-call.85} parent=12 // loop_pre_header
          _
        $region15: #{custom-call.85} parent=12 // loop_header
          %s10 = sphi 0, %s14
          %p11 = scmp.ge.s32.totalorder %s10, 1
          %s15 = sphi %s0, %s0
          %s16 = sphi [#allocation1], [#allocation1]
        $region16: #{custom-call.85} parent=12 // loop_header_branch
          %13 = sbr.rel (%p11) target = $region20
        $region17: #{custom-call.85} parent=12 // loop_body
          %v17 = vld [vmem:[%s15] sm:$0xf]
          %18 = vst [vmem:[%s16] sm:$0xf] %v17
        $region18: #{custom-call.85} parent=12 // loop_footer
          %s14 = sadd.s32 1, %s10
        $region19: #{custom-call.85} parent=12 // loop_footer_branch
          %9 = sbr.rel target = $region15
        $region20: #{custom-call.85} parent=12 // loop_exit
          _
      $region13: #{custom-call.85} parent=4 // pred_fallthru
        _
    $region5: #{custom-call.85} parent=1 // pred_fallthru
      _
    %32 = vnop
    %s34 = sshllo.u32 0, 4
    %v35 = vld [vmem:[#allocation1] sm:%s34]
    %36 = vst [vmem:[#allocation0] sm:%s34] %v35
    %v37 = vlaneseq
    %v38 = vand.u32 %v37, 127
    %vm39 = vcmp.lt.s32.totalorder %v38, 4
    %v40 = vlaneseq
    %v41 = vshrl.u32 %v40, 7
    %vm43 = vcmp.eq.s32.totalorder %v41, %v38
    %v44 = vld [vmem:[#allocation0] sm:$0xff]
    %v45 = vsel %vm43, %v44, 0.0
    %46 = vadd.xlane.f32.xlu0 %v45
    %v47 = vpop.xlane.xlu0 %46
    %vm48 = vcmp.ge.s32.totalorder %v41, %v38
    %vm49 = vmand %vm48, %vm39
    %v50 = vsel %vm49, %v44, 0.0
    %v51 = vrcp.pop %v47
    %v52 = vmul.f32 %v50, %v51
    %53 = vst [vmem:[#allocation4] sm:$0xff] %v52
    %v54 = vlaneseq
    %v55 = vand.u32 %v54, 127
    %v56 = vlaneseq
    %v57 = vshrl.u32 %v56, 7
    %vm59 = vcmp.eq.s32.totalorder %v55, %v57
    %v60 = vlaneseq
    %v61 = vand.u32 %v60, 127
    %vm62 = vcmp.eq.s32.totalorder %v61, 0
    %v63 = vsel %vm62, 1.0, -1.0
    %v64 = vsel %vm59, %v63, 0.0
    %s65 = scalar_lea.vmem [#allocation4], 1
    %v66 = vld [vmem:[%s65] ss:$0 sm:$0xff]
    %v67 = vxor.u32 %v66, 2147483648
    %v68 = vlaneseq
    %v69 = vand.u32 %v68, 127
    %vm70 = vcmp.eq.s32.totalorder %v69, 1
    %v71 = vmul.f32 %v67, %v64
    %72 = vadd.xlane.f32.xlu0 %v71
    %v73 = vpop.xlane.xlu0 %72
    %v74 = vsel %vm70, %v73, %v64
    %s75 = scalar_lea.vmem [#allocation4], 2
    %v76 = vld [vmem:[%s75] ss:$0 sm:$0xff]
    %v77 = vxor.u32 %v76, 2147483648
    %v78 = vlaneseq
    %v79 = vand.u32 %v78, 127
    %vm80 = vcmp.eq.s32.totalorder %v79, 2
    %v81 = vmul.f32 %v77, %v74
    %82 = vadd.xlane.f32.xlu0 %v81
    %v83 = vpop.xlane.xlu0 %82
    %v84 = vsel %vm80, %v83, %v74
    %s85 = scalar_lea.vmem [#allocation4], 3
    %v86 = vld [vmem:[%s85] ss:$0 sm:$0xff]
    %v87 = vxor.u32 %v86, 2147483648
    %v88 = vlaneseq
    %v89 = vand.u32 %v88, 127
    %vm90 = vcmp.eq.s32.totalorder %v89, 3
    %v91 = vmul.f32 %v87, %v84
    %92 = vadd.xlane.f32.xlu0 %v91
    %v93 = vpop.xlane.xlu0 %92
    %v94 = vsel %vm90, %v93, %v84
    %v95 = vrcp.pop %v47
    %v96 = vmul.f32 %v94, %v95
    %vm97 = vweird.f32 %v47
    %v98 = vsel %vm97, %v94, %v96
    %99 = vst [vmem:[#allocation2] sm:$0xff] %v98
    %s101 = sshllo.u32 0, 4
    %v103 = vld [vmem:[#allocation2] sm:%s101]
    %s104 = sshllo.u32 0, 4
    %105 = vst [vmem:[#allocation3] sm:%s104] %v103
    // Predicated region
    $region32: #{custom-call.85} parent=1 // pred_check
      _
    $region33: #{custom-call.85} parent=1 // pred_check_branch
      %107 = sbr.rel (0) target = $region35
    $region34: #{custom-call.85} parent=1 // pred_region
      // Predicated region
      $region36: #{custom-call.85} parent=34 // pred_check
        _
      $region37: #{custom-call.85} parent=34 // pred_check_branch
        %109 = sbr.rel target = $region39
      $region38: #{custom-call.85} parent=34 // pred_region
        // Predicated region
        $region51: #{custom-call.85} parent=38 // pred_check
          _
        $region52: #{custom-call.85} parent=38 // pred_check_branch
          %124 = sbr.rel (0) target = $region54
        $region53: #{custom-call.85} parent=38 // pred_region
          loop: start=0, step=1, limit=1
          $region55: #{custom-call.85} parent=53 // loop_pre_header
            _
          $region56: #{custom-call.85} parent=53 // loop_header
            %s127 = sphi 0, %s131
            %p128 = scmp.ge.s32.totalorder %s127, 1
            %s132 = sphi [#allocation3], [#allocation3]
            %s133 = sphi %s1, %s1
          $region57: #{custom-call.85} parent=53 // loop_header_branch
            %130 = sbr.rel (%p128) target = $region61
          $region58: #{custom-call.85} parent=53 // loop_body
            %v134 = vld [vmem:[%s132] sm:$0xf]
            %135 = vst [vmem:[%s133] sm:$0xf] %v134
          $region59: #{custom-call.85} parent=53 // loop_footer
            %s131 = sadd.s32 1, %s127
          $region60: #{custom-call.85} parent=53 // loop_footer_branch
            %126 = sbr.rel target = $region56
          $region61: #{custom-call.85} parent=53 // loop_exit
            _
        $region54: #{custom-call.85} parent=38 // pred_fallthru
          _
      $region39: #{custom-call.85} parent=34 // pred_fallthru
        _
      // Predicated region
      $region40: #{custom-call.85} parent=34 // pred_check
        _
      $region41: #{custom-call.85} parent=34 // pred_check_branch
        %111 = sbr.rel (0) target = $region43
      $region42: #{custom-call.85} parent=34 // pred_region
        loop: start=0, step=1, limit=1
        $region44: #{custom-call.85} parent=42 // loop_pre_header
          _
        $region45: #{custom-call.85} parent=42 // loop_header
          %s114 = sphi 0, %s118
          %p115 = scmp.ge.s32.totalorder %s114, 1
          %s119 = sphi [#allocation3], [#allocation3]
          %s120 = sphi %s1, %s1
        $region46: #{custom-call.85} parent=42 // loop_header_branch
          %117 = sbr.rel (%p115) target = $region50
        $region47: #{custom-call.85} parent=42 // loop_body
          %v121 = vld [vmem:[%s119] sm:$0xf]
          %122 = vst [vmem:[%s120] sm:$0xf] %v121
        $region48: #{custom-call.85} parent=42 // loop_footer
          %s118 = sadd.s32 1, %s114
        $region49: #{custom-call.85} parent=42 // loop_footer_branch
          %113 = sbr.rel target = $region45
        $region50: #{custom-call.85} parent=42 // loop_exit
          _
      $region43: #{custom-call.85} parent=34 // pred_fallthru
        _
    $region35: #{custom-call.85} parent=1 // pred_fallthru
      _
    %136 = vnop

// kernel: custom-call.63
$region0: #{custom-call.63}
  %s0 = inlined_call_operand.vmem [shape: f32[2,2], index: 0, kind: input, shape index: {}]
  %s1 = inlined_call_operand.vmem [shape: f32[2,2], index: 1, kind: input, shape index: {}]
  %s2 = inlined_call_operand.vmem [shape: f32[2,2], index: 2, kind: input, shape index: {}]
  %s3 = inlined_call_operand.vmem [shape: f32[2,2], index: 3, kind: input, shape index: {}]
  %s4 = inlined_call_operand.vmem [shape: f32[2], index: 4, kind: output, shape index: {0}]
  %s5 = inlined_call_operand.vmem [shape: f32[2], index: 5, kind: output, shape index: {1}]
  %s6 = inlined_call_operand.hbm [shape: f32[2,2], index: 6, kind: output, shape index: {2}]
  %s7 = inlined_call_operand.hbm [shape: f32[2,2], index: 7, kind: output, shape index: {3}]
  %s8 = inlined_call_operand.hbm [shape: f32[2,2], index: 8, kind: output, shape index: {4}]
  %s9 = inlined_call_operand.hbm [shape: f32[2,2], index: 9, kind: output, shape index: {5}]
  %10 = xla_tuple %s4, %s5, %s6, %s7, %s8, %s9
  $region1: #{custom-call.63} parent=0
    #allocation0 [shape = 'u8[4096]{0}', space=vmem, size = 0x1000, scoped, tag = 'operand span for operand 0']
    #allocation1 [shape = 'u8[1024]{0}', space=vmem, size = 0x400, scoped, tag = 'packed  for operand 0']
    #allocation2 [shape = 'u8[4096]{0}', space=vmem, size = 0x1000, scoped, tag = 'operand span for operand 1']
    #allocation3 [shape = 'u8[1024]{0}', space=vmem, size = 0x400, scoped, tag = 'packed  for operand 1']
    #allocation4 [shape = 'u8[4096]{0}', space=vmem, size = 0x1000, scoped, tag = 'operand span for operand 2']
    #allocation5 [shape = 'u8[1024]{0}', space=vmem, size = 0x400, scoped, tag = 'packed  for operand 2']
    #allocation6 [shape = 'u8[4096]{0}', space=vmem, size = 0x1000, scoped, tag = 'operand span for operand 3']
    #allocation7 [shape = 'u8[1024]{0}', space=vmem, size = 0x400, scoped, tag = 'packed  for operand 3']
    #allocation8 [shape = 'u8[4096]{0}', space=vmem, size = 0x1000, scoped, tag = 'operand span for operand 4']
    #allocation9 [shape = 'u8[512]{0}', space=vmem, size = 0x400, scoped, tag = 'packed  for operand 4']
    #allocation10 [shape = 'u8[4096]{0}', space=vmem, size = 0x1000, scoped, tag = 'operand span for operand 5']
    #allocation11 [shape = 'u8[512]{0}', space=vmem, size = 0x400, scoped, tag = 'packed  for operand 5']
    #allocation12 [shape = 'u8[4096]{0}', space=vmem, size = 0x1000, scoped, tag = 'operand span for operand 6']
    #allocation13 [shape = 'u8[1024]{0}', space=vmem, size = 0x400, scoped, tag = 'packed  for operand 6']
    #allocation14 [shape = 's32[1]{0}', space=sflag, size = 0x4, scoped, tag = 'scoped memory for custom-call.63']
    #allocation15 [shape = 'u8[4096]{0}', space=vmem, size = 0x1000, scoped, tag = 'operand span for operand 7']
    #allocation16 [shape = 'u8[1024]{0}', space=vmem, size = 0x400, scoped, tag = 'packed  for operand 7']
    #allocation17 [shape = 's32[1]{0}', space=sflag, size = 0x4, scoped, tag = 'scoped memory for custom-call.63']
    #allocation18 [shape = 'u8[4096]{0}', space=vmem, size = 0x1000, scoped, tag = 'operand span for operand 8']
    #allocation19 [shape = 'u8[1024]{0}', space=vmem, size = 0x400, scoped, tag = 'packed  for operand 8']
    #allocation20 [shape = 'u8[4096]{0}', space=vmem, size = 0x1000, scoped, tag = 'operand span for operand 9']
    #allocation21 [shape = 'u8[1024]{0}', space=vmem, size = 0x400, scoped, tag = 'packed  for operand 9']
    #allocation22 [shape = 's32[1]{0}', space=sflag, size = 0x4, scoped, tag = 'scoped memory for custom-call.63']
    #allocation23 [shape = 'f32[2,2]{1,0}', space=vmem, size = 0x1000, scoped, tag = 'a top-left matrix']
    #allocation24 [shape = 'f32[2,2]{1,0}', space=vmem, size = 0x1000, scoped, tag = 'a top-right matrix']
    #allocation25 [shape = 'f32[2,2]{1,0}', space=vmem, size = 0x1000, scoped, tag = 'a bottom-left matrix']
    #allocation26 [shape = 'f32[2,2]{1,0}', space=vmem, size = 0x1000, scoped, tag = 'a bottom-right matrix']
    %11 = vsyncpa [#allocation14], 0
    %12 = vsyncpa [#allocation17], 0
    %13 = vsyncpa [#allocation22], 0
    %p15 = scmp.gt.s32.totalorder 2, 0
    // Predicated region
    $region2: #{custom-call.63} parent=1 // pred_check
      %p16 = pneg %p15
    $region3: #{custom-call.63} parent=1 // pred_check_branch
      %18 = sbr.rel (%p16) target = $region5
    $region4: #{custom-call.63} parent=1 // pred_region
      %s19 = sshra.s32 2, 3
      %p20 = scmp.gt.s32.totalorder %s19, 0
      // Predicated region
      $region6: #{custom-call.63} parent=4 // pred_check
        %p21 = pneg %p20
      $region7: #{custom-call.63} parent=4 // pred_check_branch
        %23 = sbr.rel (%p21) target = $region9
      $region8: #{custom-call.63} parent=4 // pred_region
        %s24 = ssub.s32 %s19, 1
        %s25 = smul.u32 %s24, 128
        %s26 = sshra.s32 %s25, 4
        %s27 = scalar_lea.vmem %s0, %s26
        %v28 = vld [vmem:[%s0] sm:$0xff]
        // While loop
        $region10: #{custom-call.63} parent=8 // loop_pre_header
          _
        $region11: #{custom-call.63} parent=8 // loop_header
          %s29 = sphi %s0, %s51
          %s30 = sphi [#allocation1], %s52
          %v31 = vphi %v28, %v53
          %s32 = ssub.s32 %s27, 64
          %p33 = scmp.gt.s32.totalorder %s29, %s32
        $region12: #{custom-call.63} parent=8 // loop_header_branch
          %35 = sbr.rel (%p33) target = $region16
        $region13: #{custom-call.63} parent=8 // loop_body
          %36 = vst [vmem:[%s30] sm:$0xff] %v31
          %v37 = vld [vmem:[%s29 + $0x8] sm:$0xff]
          %38 = vst [vmem:[%s30 + $0x8] sm:$0xff] %v37
          %v39 = vld [vmem:[%s29 + $0x10] sm:$0xff]
          %40 = vst [vmem:[%s30 + $0x10] sm:$0xff] %v39
          %v41 = vld [vmem:[%s29 + $0x18] sm:$0xff]
          %42 = vst [vmem:[%s30 + $0x18] sm:$0xff] %v41
          %v43 = vld [vmem:[%s29 + $0x20] sm:$0xff]
          %44 = vst [vmem:[%s30 + $0x20] sm:$0xff] %v43
          %v45 = vld [vmem:[%s29 + $0x28] sm:$0xff]
          %46 = vst [vmem:[%s30 + $0x28] sm:$0xff] %v45
          %v47 = vld [vmem:[%s29 + $0x30] sm:$0xff]
          %48 = vst [vmem:[%s30 + $0x30] sm:$0xff] %v47
          %v49 = vld [vmem:[%s29 + $0x38] sm:$0xff]
          %50 = vst [vmem:[%s30 + $0x38] sm:$0xff] %v49
        $region14: #{custom-call.63} parent=8 // loop_footer
          %s51 = scalar_lea.vmem %s29, 64
          %s52 = scalar_lea.vmem %s30, 64
          %v53 = vld [vmem:[%s29 + $0x40] sm:$0xff]
        $region15: #{custom-call.63} parent=8 // loop_footer_branch
          %54 = sbr.rel target = $region11
        $region16: #{custom-call.63} parent=8 // loop_exit
          _
        // While loop
        $region17: #{custom-call.63} parent=8 // loop_pre_header
          _
        $region18: #{custom-call.63} parent=8 // loop_header
          %s55 = sphi %s29, %s63
          %s56 = sphi %s30, %s64
          %v57 = vphi %v31, %v57
          %p58 = scmp.gt.s32.totalorder %s55, %s27
        $region19: #{custom-call.63} parent=8 // loop_header_branch
          %60 = sbr.rel (%p58) target = $region23
        $region20: #{custom-call.63} parent=8 // loop_body
          %v61 = vld [vmem:[%s55] sm:$0xff]
          %62 = vst [vmem:[%s56] sm:$0xff] %v61
        $region21: #{custom-call.63} parent=8 // loop_footer
          %s63 = scalar_lea.vmem %s55, 8
          %s64 = scalar_lea.vmem %s56, 8
        $region22: #{custom-call.63} parent=8 // loop_footer_branch
          %65 = sbr.rel target = $region18
        $region23: #{custom-call.63} parent=8 // loop_exit
          _
      $region9: #{custom-call.63} parent=4 // pred_fallthru
        _
      %s66 = sand.u32 2, 7
      %s67 = sshllo.u32 0, %s66
      %s68 = smul.u32 %s19, 128
      %s69 = sshra.s32 %s68, 4
      %s70 = scalar_lea.vmem [#allocation1], %s69
      %s71 = smul.u32 %s19, 128
      %s72 = sshra.s32 %s71, 4
      %s73 = scalar_lea.vmem %s0, %s72
      %v74 = vld [vmem:[%s73] sm:%s67]
      %75 = vst [vmem:[%s70] sm:%s67] %v74
    $region5: #{custom-call.63} parent=1 // pred_fallthru
      _
    %p77 = scmp.gt.s32.totalorder 2, 0
    // Predicated region
    $region24: #{custom-call.63} parent=1 // pred_check
      %p78 = pneg %p77
    $region25: #{custom-call.63} parent=1 // pred_check_branch
      %80 = sbr.rel (%p78) target = $region27
    $region26: #{custom-call.63} parent=1 // pred_region
      %s81 = sshra.s32 2, 3
      %p82 = scmp.gt.s32.totalorder %s81, 0
      // Predicated region
      $region28: #{custom-call.63} parent=26 // pred_check
        %p83 = pneg %p82
      $region29: #{custom-call.63} parent=26 // pred_check_branch
        %85 = sbr.rel (%p83) target = $region31
      $region30: #{custom-call.63} parent=26 // pred_region
        %s86 = ssub.s32 %s81, 1
        %s87 = smul.u32 %s86, 128
        %s88 = sshra.s32 %s87, 4
        %s89 = scalar_lea.vmem %s1, %s88
        %v90 = vld [vmem:[%s1] sm:$0xff]
        // While loop
        $region32: #{custom-call.63} parent=30 // loop_pre_header
          _
        $region33: #{custom-call.63} parent=30 // loop_header
          %s91 = sphi %s1, %s113
          %s92 = sphi [#allocation3], %s114
          %v93 = vphi %v90, %v115
          %s94 = ssub.s32 %s89, 64
          %p95 = scmp.gt.s32.totalorder %s91, %s94
        $region34: #{custom-call.63} parent=30 // loop_header_branch
          %97 = sbr.rel (%p95) target = $region38
        $region35: #{custom-call.63} parent=30 // loop_body
          %98 = vst [vmem:[%s92] sm:$0xff] %v93
          %v99 = vld [vmem:[%s91 + $0x8] sm:$0xff]
          %100 = vst [vmem:[%s92 + $0x8] sm:$0xff] %v99
          %v101 = vld [vmem:[%s91 + $0x10] sm:$0xff]
          %102 = vst [vmem:[%s92 + $0x10] sm:$0xff] %v101
          %v103 = vld [vmem:[%s91 + $0x18] sm:$0xff]
          %104 = vst [vmem:[%s92 + $0x18] sm:$0xff] %v103
          %v105 = vld [vmem:[%s91 + $0x20] sm:$0xff]
          %106 = vst [vmem:[%s92 + $0x20] sm:$0xff] %v105
          %v107 = vld [vmem:[%s91 + $0x28] sm:$0xff]
          %108 = vst [vmem:[%s92 + $0x28] sm:$0xff] %v107
          %v109 = vld [vmem:[%s91 + $0x30] sm:$0xff]
          %110 = vst [vmem:[%s92 + $0x30] sm:$0xff] %v109
          %v111 = vld [vmem:[%s91 + $0x38] sm:$0xff]
          %112 = vst [vmem:[%s92 + $0x38] sm:$0xff] %v111
        $region36: #{custom-call.63} parent=30 // loop_footer
          %s113 = scalar_lea.vmem %s91, 64
          %s114 = scalar_lea.vmem %s92, 64
          %v115 = vld [vmem:[%s91 + $0x40] sm:$0xff]
        $region37: #{custom-call.63} parent=30 // loop_footer_branch
          %116 = sbr.rel target = $region33
        $region38: #{custom-call.63} parent=30 // loop_exit
          _
        // While loop
        $region39: #{custom-call.63} parent=30 // loop_pre_header
          _
        $region40: #{custom-call.63} parent=30 // loop_header
          %s117 = sphi %s91, %s125
          %s118 = sphi %s92, %s126
          %v119 = vphi %v93, %v119
          %p120 = scmp.gt.s32.totalorder %s117, %s89
        $region41: #{custom-call.63} parent=30 // loop_header_branch
          %122 = sbr.rel (%p120) target = $region45
        $region42: #{custom-call.63} parent=30 // loop_body
          %v123 = vld [vmem:[%s117] sm:$0xff]
          %124 = vst [vmem:[%s118] sm:$0xff] %v123
        $region43: #{custom-call.63} parent=30 // loop_footer
          %s125 = scalar_lea.vmem %s117, 8
          %s126 = scalar_lea.vmem %s118, 8
        $region44: #{custom-call.63} parent=30 // loop_footer_branch
          %127 = sbr.rel target = $region40
        $region45: #{custom-call.63} parent=30 // loop_exit
          _
      $region31: #{custom-call.63} parent=26 // pred_fallthru
        _
      %s128 = sand.u32 2, 7
      %s129 = sshllo.u32 0, %s128
      %s130 = smul.u32 %s81, 128
      %s131 = sshra.s32 %s130, 4
      %s132 = scalar_lea.vmem [#allocation3], %s131
      %s133 = smul.u32 %s81, 128
      %s134 = sshra.s32 %s133, 4
      %s135 = scalar_lea.vmem %s1, %s134
      %v136 = vld [vmem:[%s135] sm:%s129]
      %137 = vst [vmem:[%s132] sm:%s129] %v136
    $region27: #{custom-call.63} parent=1 // pred_fallthru
      _
    %p139 = scmp.gt.s32.totalorder 2, 0
    // Predicated region
    $region46: #{custom-call.63} parent=1 // pred_check
      %p140 = pneg %p139
    $region47: #{custom-call.63} parent=1 // pred_check_branch
      %142 = sbr.rel (%p140) target = $region49
    $region48: #{custom-call.63} parent=1 // pred_region
      %s143 = sshra.s32 2, 3
      %p144 = scmp.gt.s32.totalorder %s143, 0
      // Predicated region
      $region50: #{custom-call.63} parent=48 // pred_check
        %p145 = pneg %p144
      $region51: #{custom-call.63} parent=48 // pred_check_branch
        %147 = sbr.rel (%p145) target = $region53
      $region52: #{custom-call.63} parent=48 // pred_region
        %s148 = ssub.s32 %s143, 1
        %s149 = smul.u32 %s148, 128
        %s150 = sshra.s32 %s149, 4
        %s151 = scalar_lea.vmem %s2, %s150
        %v152 = vld [vmem:[%s2] sm:$0xff]
        // While loop
        $region54: #{custom-call.63} parent=52 // loop_pre_header
          _
        $region55: #{custom-call.63} parent=52 // loop_header
          %s153 = sphi %s2, %s175
          %s154 = sphi [#allocation5], %s176
          %v155 = vphi %v152, %v177
          %s156 = ssub.s32 %s151, 64
          %p157 = scmp.gt.s32.totalorder %s153, %s156
        $region56: #{custom-call.63} parent=52 // loop_header_branch
          %159 = sbr.rel (%p157) target = $region60
        $region57: #{custom-call.63} parent=52 // loop_body
          %160 = vst [vmem:[%s154] sm:$0xff] %v155
          %v161 = vld [vmem:[%s153 + $0x8] sm:$0xff]
          %162 = vst [vmem:[%s154 + $0x8] sm:$0xff] %v161
          %v163 = vld [vmem:[%s153 + $0x10] sm:$0xff]
          %164 = vst [vmem:[%s154 + $0x10] sm:$0xff] %v163
          %v165 = vld [vmem:[%s153 + $0x18] sm:$0xff]
          %166 = vst [vmem:[%s154 + $0x18] sm:$0xff] %v165
          %v167 = vld [vmem:[%s153 + $0x20] sm:$0xff]
          %168 = vst [vmem:[%s154 + $0x20] sm:$0xff] %v167
          %v169 = vld [vmem:[%s153 + $0x28] sm:$0xff]
          %170 = vst [vmem:[%s154 + $0x28] sm:$0xff] %v169
          %v171 = vld [vmem:[%s153 + $0x30] sm:$0xff]
          %172 = vst [vmem:[%s154 + $0x30] sm:$0xff] %v171
          %v173 = vld [vmem:[%s153 + $0x38] sm:$0xff]
          %174 = vst [vmem:[%s154 + $0x38] sm:$0xff] %v173
        $region58: #{custom-call.63} parent=52 // loop_footer
          %s175 = scalar_lea.vmem %s153, 64
          %s176 = scalar_lea.vmem %s154, 64
          %v177 = vld [vmem:[%s153 + $0x40] sm:$0xff]
        $region59: #{custom-call.63} parent=52 // loop_footer_branch
          %178 = sbr.rel target = $region55
        $region60: #{custom-call.63} parent=52 // loop_exit
          _
        // While loop
        $region61: #{custom-call.63} parent=52 // loop_pre_header
          _
        $region62: #{custom-call.63} parent=52 // loop_header
          %s179 = sphi %s153, %s187
          %s180 = sphi %s154, %s188
          %v181 = vphi %v155, %v181
          %p182 = scmp.gt.s32.totalorder %s179, %s151
        $region63: #{custom-call.63} parent=52 // loop_header_branch
          %184 = sbr.rel (%p182) target = $region67
        $region64: #{custom-call.63} parent=52 // loop_body
          %v185 = vld [vmem:[%s179] sm:$0xff]
          %186 = vst [vmem:[%s180] sm:$0xff] %v185
        $region65: #{custom-call.63} parent=52 // loop_footer
          %s187 = scalar_lea.vmem %s179, 8
          %s188 = scalar_lea.vmem %s180, 8
        $region66: #{custom-call.63} parent=52 // loop_footer_branch
          %189 = sbr.rel target = $region62
        $region67: #{custom-call.63} parent=52 // loop_exit
          _
      $region53: #{custom-call.63} parent=48 // pred_fallthru
        _
      %s190 = sand.u32 2, 7
      %s191 = sshllo.u32 0, %s190
      %s192 = smul.u32 %s143, 128
      %s193 = sshra.s32 %s192, 4
      %s194 = scalar_lea.vmem [#allocation5], %s193
      %s195 = smul.u32 %s143, 128
      %s196 = sshra.s32 %s195, 4
      %s197 = scalar_lea.vmem %s2, %s196
      %v198 = vld [vmem:[%s197] sm:%s191]
      %199 = vst [vmem:[%s194] sm:%s191] %v198
    $region49: #{custom-call.63} parent=1 // pred_fallthru
      _
    %p201 = scmp.gt.s32.totalorder 2, 0
    // Predicated region
    $region68: #{custom-call.63} parent=1 // pred_check
      %p202 = pneg %p201
    $region69: #{custom-call.63} parent=1 // pred_check_branch
      %204 = sbr.rel (%p202) target = $region71
    $region70: #{custom-call.63} parent=1 // pred_region
      %s205 = sshra.s32 2, 3
      %p206 = scmp.gt.s32.totalorder %s205, 0
      // Predicated region
      $region72: #{custom-call.63} parent=70 // pred_check
        %p207 = pneg %p206
      $region73: #{custom-call.63} parent=70 // pred_check_branch
        %209 = sbr.rel (%p207) target = $region75
      $region74: #{custom-call.63} parent=70 // pred_region
        %s210 = ssub.s32 %s205, 1
        %s211 = smul.u32 %s210, 128
        %s212 = sshra.s32 %s211, 4
        %s213 = scalar_lea.vmem %s3, %s212
        %v214 = vld [vmem:[%s3] sm:$0xff]
        // While loop
        $region76: #{custom-call.63} parent=74 // loop_pre_header
          _
        $region77: #{custom-call.63} parent=74 // loop_header
          %s215 = sphi %s3, %s237
          %s216 = sphi [#allocation7], %s238
          %v217 = vphi %v214, %v239
          %s218 = ssub.s32 %s213, 64
          %p219 = scmp.gt.s32.totalorder %s215, %s218
        $region78: #{custom-call.63} parent=74 // loop_header_branch
          %221 = sbr.rel (%p219) target = $region82
        $region79: #{custom-call.63} parent=74 // loop_body
          %222 = vst [vmem:[%s216] sm:$0xff] %v217
          %v223 = vld [vmem:[%s215 + $0x8] sm:$0xff]
          %224 = vst [vmem:[%s216 + $0x8] sm:$0xff] %v223
          %v225 = vld [vmem:[%s215 + $0x10] sm:$0xff]
          %226 = vst [vmem:[%s216 + $0x10] sm:$0xff] %v225
          %v227 = vld [vmem:[%s215 + $0x18] sm:$0xff]
          %228 = vst [vmem:[%s216 + $0x18] sm:$0xff] %v227
          %v229 = vld [vmem:[%s215 + $0x20] sm:$0xff]
          %230 = vst [vmem:[%s216 + $0x20] sm:$0xff] %v229
          %v231 = vld [vmem:[%s215 + $0x28] sm:$0xff]
          %232 = vst [vmem:[%s216 + $0x28] sm:$0xff] %v231
          %v233 = vld [vmem:[%s215 + $0x30] sm:$0xff]
          %234 = vst [vmem:[%s216 + $0x30] sm:$0xff] %v233
          %v235 = vld [vmem:[%s215 + $0x38] sm:$0xff]
          %236 = vst [vmem:[%s216 + $0x38] sm:$0xff] %v235
        $region80: #{custom-call.63} parent=74 // loop_footer
          %s237 = scalar_lea.vmem %s215, 64
          %s238 = scalar_lea.vmem %s216, 64
          %v239 = vld [vmem:[%s215 + $0x40] sm:$0xff]
        $region81: #{custom-call.63} parent=74 // loop_footer_branch
          %240 = sbr.rel target = $region77
        $region82: #{custom-call.63} parent=74 // loop_exit
          _
        // While loop
        $region83: #{custom-call.63} parent=74 // loop_pre_header
          _
        $region84: #{custom-call.63} parent=74 // loop_header
          %s241 = sphi %s215, %s249
          %s242 = sphi %s216, %s250
          %v243 = vphi %v217, %v243
          %p244 = scmp.gt.s32.totalorder %s241, %s213
        $region85: #{custom-call.63} parent=74 // loop_header_branch
          %246 = sbr.rel (%p244) target = $region89
        $region86: #{custom-call.63} parent=74 // loop_body
          %v247 = vld [vmem:[%s241] sm:$0xff]
          %248 = vst [vmem:[%s242] sm:$0xff] %v247
        $region87: #{custom-call.63} parent=74 // loop_footer
          %s249 = scalar_lea.vmem %s241, 8
          %s250 = scalar_lea.vmem %s242, 8
        $region88: #{custom-call.63} parent=74 // loop_footer_branch
          %251 = sbr.rel target = $region84
        $region89: #{custom-call.63} parent=74 // loop_exit
          _
      $region75: #{custom-call.63} parent=70 // pred_fallthru
        _
      %s252 = sand.u32 2, 7
      %s253 = sshllo.u32 0, %s252
      %s254 = smul.u32 %s205, 128
      %s255 = sshra.s32 %s254, 4
      %s256 = scalar_lea.vmem [#allocation7], %s255
      %s257 = smul.u32 %s205, 128
      %s258 = sshra.s32 %s257, 4
      %s259 = scalar_lea.vmem %s3, %s258
      %v260 = vld [vmem:[%s259] sm:%s253]
      %261 = vst [vmem:[%s256] sm:%s253] %v260
    $region71: #{custom-call.63} parent=1 // pred_fallthru
      _
    %s263 = sshllo.u32 0, 2
    %v264 = vld [vmem:[#allocation1] sm:%s263]
    %265 = vst [vmem:[#allocation0] sm:%s263] %v264
    %s267 = sshllo.u32 0, 2
    %v268 = vld [vmem:[#allocation3] sm:%s267]
    %269 = vst [vmem:[#allocation2] sm:%s267] %v268
    %s271 = sshllo.u32 0, 2
    %v272 = vld [vmem:[#allocation5] sm:%s271]
    %273 = vst [vmem:[#allocation4] sm:%s271] %v272
    %s275 = sshllo.u32 0, 2
    %v276 = vld [vmem:[#allocation7] sm:%s275]
    %277 = vst [vmem:[#allocation6] sm:%s275] %v276
    %s278 = smov [#allocation23]
    %v279 = vld [vmem:[#allocation0] sm:$0xff]
    %280 = vst [vmem:[%s278] sm:$0xff] %v279
    %s281 = smov [#allocation24]
    %v282 = vld [vmem:[#allocation2] sm:$0xff]
    %283 = vst [vmem:[%s281] sm:$0xff] %v282
    %s284 = smov [#allocation25]
    %v285 = vld [vmem:[#allocation4] sm:$0xff]
    %286 = vst [vmem:[%s284] sm:$0xff] %v285
    %s287 = smov [#allocation26]
    %v288 = vld [vmem:[#allocation6] sm:$0xff]
    %289 = vst [vmem:[%s287] sm:$0xff] %v288
    %290 = vst [vmem:[#allocation12] sm:$0xff] 0.0
    %291 = vst [vmem:[#allocation15] sm:$0xff] 0.0
    %292 = vst [vmem:[#allocation18] sm:$0xff] 0.0
    %293 = vst [vmem:[#allocation20] sm:$0xff] 0.0
    %s294 = smov [#allocation12]
    %v295 = vlaneseq
    %v296 = vand.u32 %v295, 127
    %v297 = vmov %v296
    %v298 = vlaneseq
    %v299 = vshrl.u32 %v298, 7
    %v300 = vmov %v299
    %v301 = vld [vmem:[%s294] sm:$0x3]
    %vm304 = vcmp.eq.s32.totalorder %v300, %v297
    %v305 = vsel %vm304, 1.0, %v301
    %306 = vst [vmem:[%s294] sm:$0x3] %v305
    %s307 = smov [#allocation20]
    %v308 = vlaneseq
    %v309 = vand.u32 %v308, 127
    %v310 = vmov %v309
    %v311 = vlaneseq
    %v312 = vshrl.u32 %v311, 7
    %v313 = vmov %v312
    %v314 = vld [vmem:[%s307] sm:$0x3]
    %vm317 = vcmp.eq.s32.totalorder %v313, %v310
    %v318 = vsel %vm317, 1.0, %v314
    %319 = vst [vmem:[%s307] sm:$0x3] %v318
    // While loop
    $region90: #{custom-call.63} parent=1 // loop_pre_header
      _
    $region91: #{custom-call.63} parent=1 // loop_header
      %s321 = sphi 0, %s863
      %v322 = vlaneseq
      %v323 = vand.u32 %v322, 127
      %v324 = vmov %v323
      %v325 = vlaneseq
      %v326 = vshrl.u32 %v325, 7
      %v327 = vmov %v326
      %s328 = smov [#allocation23]
      %v329 = vlaneseq
      %v330 = vand.u32 %v329, 127
      %vm331 = vcmp.ge.s32.totalorder %v330, 0
      %vm332 = vcmp.lt.s32.totalorder %v330, 2
      %vm333 = vmand %vm331, %vm332
      %v334 = vld [vmem:[%s328] sm:$0x3]
      %v335 = vsel %vm333, %v334, 0.0
      %v336 = vmul.f32 %v335, %v335
      %vm339 = vcmp.eq.s32.totalorder %v327, %v324
      %v340 = vsel %vm339, 0.0, %v336
      %v341 = vlaneseq
      %v342 = vand.u32 %v341, 127
      %v343 = vmov %v342
      %v344 = vlaneseq
      %v345 = vshrl.u32 %v344, 7
      %v346 = vmov %v345
      %s347 = smov [#allocation24]
      %v348 = vlaneseq
      %v349 = vand.u32 %v348, 127
      %vm350 = vcmp.ge.s32.totalorder %v349, 0
      %vm351 = vcmp.lt.s32.totalorder %v349, 2
      %vm352 = vmand %vm350, %vm351
      %v353 = vld [vmem:[%s347] sm:$0x3]
      %v354 = vsel %vm352, %v353, 0.0
      %v355 = vmul.f32 %v354, %v354
      %v356 = vadd.f32 %v340, %v355
      %v357 = vadd.f32 %v336, %v355
      %v358 = vlaneseq
      %v359 = vand.u32 %v358, 127
      %v360 = vmov %v359
      %v361 = vlaneseq
      %v362 = vshrl.u32 %v361, 7
      %v363 = vmov %v362
      %s364 = smov [#allocation25]
      %v365 = vlaneseq
      %v366 = vand.u32 %v365, 127
      %vm367 = vcmp.ge.s32.totalorder %v366, 0
      %vm368 = vcmp.lt.s32.totalorder %v366, 2
      %vm369 = vmand %vm367, %vm368
      %v370 = vld [vmem:[%s364] sm:$0x3]
      %v371 = vsel %vm369, %v370, 0.0
      %v372 = vmul.f32 %v371, %v371
      %v373 = vadd.f32 %v356, %v372
      %v374 = vadd.f32 %v357, %v372
      %v375 = vlaneseq
      %v376 = vand.u32 %v375, 127
      %v377 = vmov %v376
      %v378 = vlaneseq
      %v379 = vshrl.u32 %v378, 7
      %v380 = vmov %v379
      %s381 = smov [#allocation26]
      %v382 = vlaneseq
      %v383 = vand.u32 %v382, 127
      %vm384 = vcmp.ge.s32.totalorder %v383, 0
      %vm385 = vcmp.lt.s32.totalorder %v383, 2
      %vm386 = vmand %vm384, %vm385
      %v387 = vld [vmem:[%s381] sm:$0x3]
      %v388 = vsel %vm386, %v387, 0.0
      %v389 = vmul.f32 %v388, %v388
      %vm392 = vcmp.eq.s32.totalorder %v380, %v377
      %v393 = vsel %vm392, 0.0, %v389
      %v394 = vadd.f32 %v373, %v393
      %v395 = vadd.f32 %v374, %v389
      %396 = vadd.xlane.f32.xlu0 %v395
      %v397 = vpop.xlane.xlu0 %396
      %v398 = vrot.slane %v397, 4
      %v399 = vadd.f32 %v397, %v398
      %v400 = vrot.slane %v399, 2
      %v401 = vadd.f32 %v399, %v400
      %v402 = vrot.slane %v401, 1
      %v403 = vadd.f32 %v401, %v402
      %404 = vadd.xlane.f32.xlu0 %v394
      %v405 = vpop.xlane.xlu0 %404
      %v406 = vrot.slane %v405, 4
      %v407 = vadd.f32 %v405, %v406
      %v408 = vrot.slane %v407, 2
      %v409 = vadd.f32 %v407, %v408
      %v410 = vrot.slane %v409, 1
      %v411 = vadd.f32 %v409, %v410
      %s412 = vtos %v411
      %s413 = vtos %v403
      %s414 = smul.f32 1e-10, %s413
      %p415 = scmp.le.f32.partialorder %s412, %s414
      %p416 = scmp.ge.s32.totalorder %s321, 15
      %p417 = por %p415, %p416
    $region92: #{custom-call.63} parent=1 // loop_header_branch
      %865 = sbr.rel (%p417) target = $region96
    $region93: #{custom-call.63} parent=1 // loop_body
      loop: start=0, step=1, limit=3
      $region97: #{custom-call.63} parent=93 // loop_pre_header
        _
      $region98: #{custom-call.63} parent=93 // loop_header
        %s419 = sphi 0, %s423
        %p420 = scmp.ge.s32.totalorder %s419, 3
      $region99: #{custom-call.63} parent=93 // loop_header_branch
        %422 = sbr.rel (%p420) target = $region103
      $region100: #{custom-call.63} parent=93 // loop_body
        #allocation27 [shape = 'f32[1024]{0}', space=vmem, size = 0x1000, scoped, tag = 'a_tl_diag vmem']
        #allocation28 [shape = 'f32[1024]{0}', space=vmem, size = 0x1000, scoped, tag = 'a_tr_diag vmem']
        #allocation29 [shape = 'f32[1024]{0}', space=vmem, size = 0x1000, scoped, tag = 'a_br_diag vmem']
        #allocation30 [shape = 'f32[1024]{0}', space=vmem, size = 0x1000, scoped, tag = 'rt1 vmem']
        #allocation31 [shape = 'f32[1024]{0}', space=vmem, size = 0x1000, scoped, tag = 'rt2 vmem']
        #allocation32 [shape = 'f32[1024]{0}', space=vmem, size = 0x1000, scoped, tag = 'c vmem']
        #allocation33 [shape = 'f32[1024]{0}', space=vmem, size = 0x1000, scoped, tag = 's vmem']
        #allocation34 [shape = 'f32[4096]{0}', space=vmem, size = 0x4000, scoped, tag = 'c broadcast']
        #allocation35 [shape = 'f32[4096]{0}', space=vmem, size = 0x4000, scoped, tag = 's broadcast']
        %s424 = smov [#allocation23]
        %s425 = smov [#allocation27]
        %v426 = vlaneseq
        %v427 = vand.u32 %v426, 127
        %v428 = vmov %v427
        %v429 = vlaneseq
        %v430 = vshrl.u32 %v429, 7
        %v431 = vmov %v430
        %v432 = vld [vmem:[%s424] sm:$0x3]
        %vm435 = vcmp.eq.s32.totalorder %v431, %v428
        %v436 = vsel %vm435, %v432, 0.0
        %v437 = vrot.slane %v436, 4
        %v438 = vadd.f32 %v436, %v437
        %v439 = vrot.slane %v438, 2
        %v440 = vadd.f32 %v438, %v439
        %v441 = vrot.slane %v440, 1
        %v442 = vadd.f32 %v440, %v441
        %443 = vst [vmem:[%s425] sm:$0x1] %v442
        %s444 = smov [#allocation24]
        %s445 = smov [#allocation28]
        %v446 = vlaneseq
        %v447 = vand.u32 %v446, 127
        %v448 = vmov %v447
        %v449 = vlaneseq
        %v450 = vshrl.u32 %v449, 7
        %v451 = vmov %v450
        %v452 = vld [vmem:[%s444] sm:$0x3]
        %vm455 = vcmp.eq.s32.totalorder %v451, %v448
        %v456 = vsel %vm455, %v452, 0.0
        %v457 = vrot.slane %v456, 4
        %v458 = vadd.f32 %v456, %v457
        %v459 = vrot.slane %v458, 2
        %v460 = vadd.f32 %v458, %v459
        %v461 = vrot.slane %v460, 1
        %v462 = vadd.f32 %v460, %v461
        %463 = vst [vmem:[%s445] sm:$0x1] %v462
        %s464 = smov [#allocation26]
        %s465 = smov [#allocation29]
        %v466 = vlaneseq
        %v467 = vand.u32 %v466, 127
        %v468 = vmov %v467
        %v469 = vlaneseq
        %v470 = vshrl.u32 %v469, 7
        %v471 = vmov %v470
        %v472 = vld [vmem:[%s464] sm:$0x3]
        %vm475 = vcmp.eq.s32.totalorder %v471, %v468
        %v476 = vsel %vm475, %v472, 0.0
        %v477 = vrot.slane %v476, 4
        %v478 = vadd.f32 %v476, %v477
        %v479 = vrot.slane %v478, 2
        %v480 = vadd.f32 %v478, %v479
        %v481 = vrot.slane %v480, 1
        %v482 = vadd.f32 %v480, %v481
        %483 = vst [vmem:[%s465] sm:$0x1] %v482
        %s484 = smov [#allocation32]
        %s485 = smov [#allocation33]
        %s486 = smov [#allocation27]
        %v487 = vld [vmem:[%s486] sm:$0xff]
        %s488 = smov [#allocation28]
        %v489 = vld [vmem:[%s488] sm:$0xff]
        %s490 = smov [#allocation29]
        %v491 = vld [vmem:[%s490] sm:$0xff]
        %v492 = vsub.f32 %v491, %v487
        %v493 = vmul.f32 2.0, %v489
        %v494 = vrcp.pop %v493
        %v495 = vmul.f32 %v492, %v494
        %vm496 = vcmp.ge.f32.partialorder %v495, 0.0
        %v497 = vmul.f32 %v495, %v495
        %v498 = vadd.f32 1.0, %v497
        %v499 = vrsqrt.pop %v498
        %v500 = vmul.f32 %v498, %v499
        %vm501 = vcmp.eq.f32.partialorder %v498, inf
        %v502 = vsel %vm501, %v498, %v500
        %vm503 = vcmp.eq.f32.partialorder %v498, 0.0
        %v504 = vand.u32 %v498, 2147483648
        %v505 = vsel %vm503, %v504, %v502
        %v506 = vxor.u32 %v505, 2147483648
        %v507 = vsel %vm496, %v505, %v506
        %v508 = vadd.f32 %v495, %v507
        %v509 = vrcp.pop %v508
        %v510 = vand.u32 2147483647, %v487
        %v511 = vand.u32 2147483647, %v489
        %v512 = vand.u32 2147483647, %v491
        %v513 = vmin.f32 %v510, %v512
        %v514 = vmul.f32 1.1920929e-08, %v513
        %vm515 = vcmp.le.f32.partialorder %v511, %v514
        %v516 = vsel %vm515, 0.0, %v509
        %v517 = vmul.f32 %v516, %v516
        %v518 = vadd.f32 1.0, %v517
        %v519 = vrsqrt.pop %v518
        %v520 = vmul.f32 %v516, %v519
        %v521 = vmul.f32 %v516, %v489
        %v522 = vsub.f32 %v487, %v521
        %v523 = vmul.f32 %v516, %v489
        %v524 = vadd.f32 %v491, %v523
        %s525 = smov [#allocation30]
        %526 = vst [vmem:[%s525] sm:$0xff] %v522
        %s527 = smov [#allocation31]
        %528 = vst [vmem:[%s527] sm:$0xff] %v524
        %s529 = smov %s484
        %530 = vst [vmem:[%s529] sm:$0xff] %v519
        %s531 = smov %s485
        %532 = vst [vmem:[%s531] sm:$0xff] %v520
        %s533 = smov [#allocation32]
        %v534 = vld [vmem:[%s533] ss:$0 sm:$0xff]
        %v535 = vlaneseq
        %v536 = vand.u32 %v535, 127
        %v537 = vmov %v536
        %v538 = vlaneseq
        %v539 = vshrl.u32 %v538, 7
        %v540 = vmov %v539
        %vm542 = vcmp.eq.s32.totalorder %v540, %v537
        %v543 = vsel %vm542, %v534, 0.0
        %544 = vadd.xlane.f32.xlu0 %v543
        %v545 = vpop.xlane.xlu0 %544
        %s546 = smov [#allocation34]
        %547 = vst [vmem:[%s546] sm:$0xff] %v545
        %s548 = smov [#allocation33]
        %v549 = vld [vmem:[%s548] ss:$0 sm:$0xff]
        %v550 = vlaneseq
        %v551 = vand.u32 %v550, 127
        %v552 = vmov %v551
        %v553 = vlaneseq
        %v554 = vshrl.u32 %v553, 7
        %v555 = vmov %v554
        %vm557 = vcmp.eq.s32.totalorder %v555, %v552
        %v558 = vsel %vm557, %v549, 0.0
        %559 = vadd.xlane.f32.xlu0 %v558
        %v560 = vpop.xlane.xlu0 %559
        %s561 = smov [#allocation35]
        %562 = vst [vmem:[%s561] sm:$0xff] %v560
        %s563 = smov [#allocation34]
        %v564 = vld [vmem:[%s563] sm:$0xff]
        %s565 = smov [#allocation35]
        %v566 = vld [vmem:[%s565] sm:$0xff]
        %s567 = smov [#allocation23]
        %s568 = smov [#allocation24]
        %s569 = smov [#allocation25]
        %s570 = smov [#allocation26]
        %v571 = vld [vmem:[%s567] sm:$0x3]
        %v572 = vld [vmem:[%s568] sm:$0x3]
        %v573 = vld [vmem:[%s569] sm:$0x3]
        %v574 = vld [vmem:[%s570] sm:$0x3]
        %v575 = vmul.f32 %v564, %v571
        %v576 = vmul.f32 %v566, %v573
        %v577 = vsub.f32 %v575, %v576
        %v578 = vmul.f32 %v564, %v572
        %v579 = vmul.f32 %v566, %v574
        %v580 = vsub.f32 %v578, %v579
        %v581 = vmul.f32 %v566, %v571
        %v582 = vmul.f32 %v564, %v573
        %v583 = vadd.f32 %v581, %v582
        %v584 = vmul.f32 %v566, %v572
        %v585 = vmul.f32 %v564, %v574
        %v586 = vadd.f32 %v584, %v585
        %587 = vst [vmem:[%s567] sm:$0x3] %v577
        %588 = vst [vmem:[%s568] sm:$0x3] %v580
        %589 = vst [vmem:[%s569] sm:$0x3] %v583
        %590 = vst [vmem:[%s570] sm:$0x3] %v586
        %s591 = smov [#allocation32]
        %v592 = vld [vmem:[%s591] ss:$0 sm:$0xff]
        %s593 = smov [#allocation33]
        %v594 = vld [vmem:[%s593] ss:$0 sm:$0xff]
        %s595 = smov [#allocation23]
        %s596 = smov [#allocation24]
        %s597 = smov [#allocation25]
        %s598 = smov [#allocation26]
        %v599 = vld [vmem:[%s595] sm:$0x3]
        %v600 = vld [vmem:[%s596] sm:$0x3]
        %v601 = vld [vmem:[%s597] sm:$0x3]
        %v602 = vld [vmem:[%s598] sm:$0x3]
        %v603 = vmul.f32 %v592, %v599
        %v604 = vmul.f32 %v594, %v600
        %v605 = vsub.f32 %v603, %v604
        %v606 = vmul.f32 %v594, %v599
        %v607 = vmul.f32 %v592, %v600
        %v608 = vadd.f32 %v606, %v607
        %v609 = vmul.f32 %v592, %v601
        %v610 = vmul.f32 %v594, %v602
        %v611 = vsub.f32 %v609, %v610
        %v612 = vmul.f32 %v594, %v601
        %v613 = vmul.f32 %v592, %v602
        %v614 = vadd.f32 %v612, %v613
        %615 = vst [vmem:[%s595] sm:$0x3] %v605
        %616 = vst [vmem:[%s596] sm:$0x3] %v608
        %617 = vst [vmem:[%s597] sm:$0x3] %v611
        %618 = vst [vmem:[%s598] sm:$0x3] %v614
        %s619 = smov [#allocation23]
        %s620 = smov [#allocation30]
        %v621 = vlaneseq
        %v622 = vand.u32 %v621, 127
        %v623 = vmov %v622
        %v624 = vlaneseq
        %v625 = vshrl.u32 %v624, 7
        %v626 = vmov %v625
        %v627 = vld [vmem:[%s620] ss:$0 sm:$0xff]
        %v628 = vld [vmem:[%s619] sm:$0x3]
        %vm631 = vcmp.eq.s32.totalorder %v626, %v623
        %v632 = vsel %vm631, %v627, %v628
        %633 = vst [vmem:[%s619] sm:$0x3] %v632
        %s634 = smov [#allocation24]
        %v635 = vlaneseq
        %v636 = vand.u32 %v635, 127
        %v637 = vmov %v636
        %v638 = vlaneseq
        %v639 = vshrl.u32 %v638, 7
        %v640 = vmov %v639
        %v641 = vld [vmem:[%s634] sm:$0x3]
        %vm644 = vcmp.eq.s32.totalorder %v640, %v637
        %v645 = vsel %vm644, 0.0, %v641
        %646 = vst [vmem:[%s634] sm:$0x3] %v645
        %s647 = smov [#allocation25]
        %v648 = vlaneseq
        %v649 = vand.u32 %v648, 127
        %v650 = vmov %v649
        %v651 = vlaneseq
        %v652 = vshrl.u32 %v651, 7
        %v653 = vmov %v652
        %v654 = vld [vmem:[%s647] sm:$0x3]
        %vm657 = vcmp.eq.s32.totalorder %v653, %v650
        %v658 = vsel %vm657, 0.0, %v654
        %659 = vst [vmem:[%s647] sm:$0x3] %v658
        %s660 = smov [#allocation26]
        %s661 = smov [#allocation31]
        %v662 = vlaneseq
        %v663 = vand.u32 %v662, 127
        %v664 = vmov %v663
        %v665 = vlaneseq
        %v666 = vshrl.u32 %v665, 7
        %v667 = vmov %v666
        %v668 = vld [vmem:[%s661] ss:$0 sm:$0xff]
        %v669 = vld [vmem:[%s660] sm:$0x3]
        %vm672 = vcmp.eq.s32.totalorder %v667, %v664
        %v673 = vsel %vm672, %v668, %v669
        %674 = vst [vmem:[%s660] sm:$0x3] %v673
        %s675 = smov [#allocation23]
        %s676 = smov [#allocation24]
        %v677 = vld [vmem:[%s676] sm:$0x3]
        %678 = vrot.lane.b32.xlu0 %v677, 1
        %v679 = vpop.permute.xlu0 %678
        %v680 = vld [vmem:[%s675] sm:$0x3]
        %v681 = vld [vmem:[%s675] sm:$0x3]
        %682 = vrot.lane.b32.xlu0 %v681, 1
        %v683 = vpop.permute.xlu0 %682
        %v684 = vlaneseq
        %v685 = vand.u32 %v684, 127
        %vm686 = vcmp.eq.s32.totalorder %v685, 0
        %v687 = vsel %vm686, %v681, %v683
        %v688 = vlaneseq
        %v689 = vand.u32 %v688, 127
        %vm690 = vcmp.eq.s32.totalorder %v689, 1
        %v691 = vsel %vm690, %v679, %v687
        %v692 = vlaneseq
        %v693 = vand.u32 %v692, 127
        %vm694 = vcmp.ge.s32.totalorder %v693, 0
        %vm695 = vcmp.lt.s32.totalorder %v693, 2
        %vm696 = vmand %vm694, %vm695
        %v697 = vsel %vm696, %v691, 0.0
        %v698 = vld [vmem:[%s676] sm:$0x3]
        %699 = vrot.lane.b32.xlu0 %v698, 127
        %v700 = vpop.permute.xlu0 %699
        %v701 = vlaneseq
        %v702 = vand.u32 %v701, 127
        %vm703 = vcmp.eq.s32.totalorder %v702, 1
        %v704 = vsel %vm703, %v680, %v700
        %705 = vst [vmem:[%s675] sm:$0x3] %v697
        %706 = vst [vmem:[%s676] sm:$0x3] %v704
        %s707 = smov [#allocation25]
        %s708 = smov [#allocation26]
        %v709 = vld [vmem:[%s708] sm:$0x3]
        %710 = vrot.lane.b32.xlu0 %v709, 1
        %v711 = vpop.permute.xlu0 %710
        %v712 = vld [vmem:[%s707] sm:$0x3]
        %v713 = vld [vmem:[%s707] sm:$0x3]
        %714 = vrot.lane.b32.xlu0 %v713, 1
        %v715 = vpop.permute.xlu0 %714
        %v716 = vlaneseq
        %v717 = vand.u32 %v716, 127
        %vm718 = vcmp.eq.s32.totalorder %v717, 0
        %v719 = vsel %vm718, %v713, %v715
        %v720 = vlaneseq
        %v721 = vand.u32 %v720, 127
        %vm722 = vcmp.eq.s32.totalorder %v721, 1
        %v723 = vsel %vm722, %v711, %v719
        %v724 = vlaneseq
        %v725 = vand.u32 %v724, 127
        %vm726 = vcmp.ge.s32.totalorder %v725, 0
        %vm727 = vcmp.lt.s32.totalorder %v725, 2
        %vm728 = vmand %vm726, %vm727
        %v729 = vsel %vm728, %v723, 0.0
        %v730 = vld [vmem:[%s708] sm:$0x3]
        %731 = vrot.lane.b32.xlu0 %v730, 127
        %v732 = vpop.permute.xlu0 %731
        %v733 = vlaneseq
        %v734 = vand.u32 %v733, 127
        %vm735 = vcmp.eq.s32.totalorder %v734, 1
        %v736 = vsel %vm735, %v712, %v732
        %737 = vst [vmem:[%s707] sm:$0x3] %v729
        %738 = vst [vmem:[%s708] sm:$0x3] %v736
        %s739 = smov [#allocation23]
        %s740 = smov [#allocation25]
        %v741 = vld [vmem:[%s739] ss:$0 sm:$0xff]
        %s743 = scalar_lea.vmem %s739, 4294967295
        %v744 = vld [vmem:[%s743] sm:$0x2]
        %v745 = vlaneseq
        %v746 = vshrl.u32 %v745, 7
        %vm747 = vcmp.eq.s32.totalorder %v746, 0
        %v748 = vsel %vm747, %v741, %v744
        %s749 = scalar_lea.vmem %s739, 1
        %v750 = vld [vmem:[%s749] ss:$0 sm:$0xff]
        %751 = vst [vmem:[%s739] sm:$0x3] %v748
        %v752 = vld [vmem:[%s740] ss:$0 sm:$0xff]
        %s753 = scalar_lea.vmem %s739, 1
        %754 = vst [vmem:[%s753] sm:$0x1] %v752
        %s755 = scalar_lea.vmem %s740, 1
        %v756 = vld [vmem:[%s755] sm:$0x1]
        %v757 = vlaneseq
        %v758 = vshrl.u32 %v757, 7
        %vm759 = vcmp.eq.s32.totalorder %v758, 1
        %v760 = vsel %vm759, %v750, %v756
        %v761 = vld [vmem:[%s740] ss:$0 sm:$0xff]
        %762 = vst [vmem:[%s740] sm:$0x3] %v760
        %s763 = smov [#allocation24]
        %s764 = smov [#allocation26]
        %v765 = vld [vmem:[%s763] ss:$0 sm:$0xff]
        %s767 = scalar_lea.vmem %s763, 4294967295
        %v768 = vld [vmem:[%s767] sm:$0x2]
        %v769 = vlaneseq
        %v770 = vshrl.u32 %v769, 7
        %vm771 = vcmp.eq.s32.totalorder %v770, 0
        %v772 = vsel %vm771, %v765, %v768
        %s773 = scalar_lea.vmem %s763, 1
        %v774 = vld [vmem:[%s773] ss:$0 sm:$0xff]
        %775 = vst [vmem:[%s763] sm:$0x3] %v772
        %v776 = vld [vmem:[%s764] ss:$0 sm:$0xff]
        %s777 = scalar_lea.vmem %s763, 1
        %778 = vst [vmem:[%s777] sm:$0x1] %v776
        %s779 = scalar_lea.vmem %s764, 1
        %v780 = vld [vmem:[%s779] sm:$0x1]
        %v781 = vlaneseq
        %v782 = vshrl.u32 %v781, 7
        %vm783 = vcmp.eq.s32.totalorder %v782, 1
        %v784 = vsel %vm783, %v774, %v780
        %v785 = vld [vmem:[%s764] ss:$0 sm:$0xff]
        %786 = vst [vmem:[%s764] sm:$0x3] %v784
        %s787 = smov [#allocation34]
        %v788 = vld [vmem:[%s787] sm:$0xff]
        %s789 = smov [#allocation35]
        %v790 = vld [vmem:[%s789] sm:$0xff]
        %s791 = smov [#allocation12]
        %s792 = smov [#allocation15]
        %s793 = smov [#allocation18]
        %s794 = smov [#allocation20]
        %v795 = vld [vmem:[%s791] sm:$0x3]
        %v796 = vld [vmem:[%s792] sm:$0x3]
        %v797 = vld [vmem:[%s793] sm:$0x3]
        %v798 = vld [vmem:[%s794] sm:$0x3]
        %v799 = vmul.f32 %v788, %v795
        %v800 = vmul.f32 %v790, %v797
        %v801 = vsub.f32 %v799, %v800
        %v802 = vmul.f32 %v788, %v796
        %v803 = vmul.f32 %v790, %v798
        %v804 = vsub.f32 %v802, %v803
        %v805 = vmul.f32 %v790, %v795
        %v806 = vmul.f32 %v788, %v797
        %v807 = vadd.f32 %v805, %v806
        %v808 = vmul.f32 %v790, %v796
        %v809 = vmul.f32 %v788, %v798
        %v810 = vadd.f32 %v808, %v809
        %811 = vst [vmem:[%s791] sm:$0x3] %v801
        %812 = vst [vmem:[%s792] sm:$0x3] %v804
        %813 = vst [vmem:[%s793] sm:$0x3] %v807
        %814 = vst [vmem:[%s794] sm:$0x3] %v810
        %s815 = smov [#allocation12]
        %s816 = smov [#allocation18]
        %v817 = vld [vmem:[%s815] ss:$0 sm:$0xff]
        %s819 = scalar_lea.vmem %s815, 4294967295
        %v820 = vld [vmem:[%s819] sm:$0x2]
        %v821 = vlaneseq
        %v822 = vshrl.u32 %v821, 7
        %vm823 = vcmp.eq.s32.totalorder %v822, 0
        %v824 = vsel %vm823, %v817, %v820
        %s825 = scalar_lea.vmem %s815, 1
        %v826 = vld [vmem:[%s825] ss:$0 sm:$0xff]
        %827 = vst [vmem:[%s815] sm:$0x3] %v824
        %v828 = vld [vmem:[%s816] ss:$0 sm:$0xff]
        %s829 = scalar_lea.vmem %s815, 1
        %830 = vst [vmem:[%s829] sm:$0x1] %v828
        %s831 = scalar_lea.vmem %s816, 1
        %v832 = vld [vmem:[%s831] sm:$0x1]
        %v833 = vlaneseq
        %v834 = vshrl.u32 %v833, 7
        %vm835 = vcmp.eq.s32.totalorder %v834, 1
        %v836 = vsel %vm835, %v826, %v832
        %v837 = vld [vmem:[%s816] ss:$0 sm:$0xff]
        %838 = vst [vmem:[%s816] sm:$0x3] %v836
        %s839 = smov [#allocation15]
        %s840 = smov [#allocation20]
        %v841 = vld [vmem:[%s839] ss:$0 sm:$0xff]
        %s843 = scalar_lea.vmem %s839, 4294967295
        %v844 = vld [vmem:[%s843] sm:$0x2]
        %v845 = vlaneseq
        %v846 = vshrl.u32 %v845, 7
        %vm847 = vcmp.eq.s32.totalorder %v846, 0
        %v848 = vsel %vm847, %v841, %v844
        %s849 = scalar_lea.vmem %s839, 1
        %v850 = vld [vmem:[%s849] ss:$0 sm:$0xff]
        %851 = vst [vmem:[%s839] sm:$0x3] %v848
        %v852 = vld [vmem:[%s840] ss:$0 sm:$0xff]
        %s853 = scalar_lea.vmem %s839, 1
        %854 = vst [vmem:[%s853] sm:$0x1] %v852
        %s855 = scalar_lea.vmem %s840, 1
        %v856 = vld [vmem:[%s855] sm:$0x1]
        %v857 = vlaneseq
        %v858 = vshrl.u32 %v857, 7
        %vm859 = vcmp.eq.s32.totalorder %v858, 1
        %v860 = vsel %vm859, %v850, %v856
        %v861 = vld [vmem:[%s840] ss:$0 sm:$0xff]
        %862 = vst [vmem:[%s840] sm:$0x3] %v860
      $region101: #{custom-call.63} parent=93 // loop_footer
        %s423 = sadd.s32 1, %s419
      $region102: #{custom-call.63} parent=93 // loop_footer_branch
        %418 = sbr.rel target = $region98
      $region103: #{custom-call.63} parent=93 // loop_exit
        _
      %s863 = sadd.s32 %s321, 1
    $region94: #{custom-call.63} parent=1 // loop_footer
      _
    $region95: #{custom-call.63} parent=1 // loop_footer_branch
      %320 = sbr.rel target = $region91
    $region96: #{custom-call.63} parent=1 // loop_exit
      _
    %s866 = smov [#allocation23]
    %s867 = smov [#allocation8]
    %v868 = vlaneseq
    %v869 = vand.u32 %v868, 127
    %v870 = vmov %v869
    %v871 = vlaneseq
    %v872 = vshrl.u32 %v871, 7
    %v873 = vmov %v872
    %v874 = vld [vmem:[%s866] sm:$0x3]
    %vm877 = vcmp.eq.s32.totalorder %v873, %v870
    %v878 = vsel %vm877, %v874, 0.0
    %v879 = vrot.slane %v878, 4
    %v880 = vadd.f32 %v878, %v879
    %v881 = vrot.slane %v880, 2
    %v882 = vadd.f32 %v880, %v881
    %v883 = vrot.slane %v882, 1
    %v884 = vadd.f32 %v882, %v883
    %885 = vst [vmem:[%s867] sm:$0x1] %v884
    %s886 = smov [#allocation26]
    %s887 = smov [#allocation10]
    %v888 = vlaneseq
    %v889 = vand.u32 %v888, 127
    %v890 = vmov %v889
    %v891 = vlaneseq
    %v892 = vshrl.u32 %v891, 7
    %v893 = vmov %v892
    %v894 = vld [vmem:[%s886] sm:$0x3]
    %vm897 = vcmp.eq.s32.totalorder %v893, %v890
    %v898 = vsel %vm897, %v894, 0.0
    %v899 = vrot.slane %v898, 4
    %v900 = vadd.f32 %v898, %v899
    %v901 = vrot.slane %v900, 2
    %v902 = vadd.f32 %v900, %v901
    %v903 = vrot.slane %v902, 1
    %v904 = vadd.f32 %v902, %v903
    %905 = vst [vmem:[%s887] sm:$0x1] %v904
    %s907 = sshllo.u32 0, 1
    %v909 = vld [vmem:[#allocation8] sm:%s907]
    %s910 = sshllo.u32 0, 1
    %911 = vst [vmem:[#allocation9] sm:%s910] %v909
    %s913 = sshllo.u32 0, 1
    %v915 = vld [vmem:[#allocation10] sm:%s913]
    %s916 = sshllo.u32 0, 1
    %917 = vst [vmem:[#allocation11] sm:%s916] %v915
    %s919 = sshllo.u32 0, 2
    %v921 = vld [vmem:[#allocation12] sm:%s919]
    %s922 = sshllo.u32 0, 2
    %923 = vst [vmem:[#allocation13] sm:%s922] %v921
    %s925 = sshllo.u32 0, 2
    %v927 = vld [vmem:[#allocation15] sm:%s925]
    %s928 = sshllo.u32 0, 2
    %929 = vst [vmem:[#allocation16] sm:%s928] %v927
    %s931 = sshllo.u32 0, 2
    %v933 = vld [vmem:[#allocation18] sm:%s931]
    %s934 = sshllo.u32 0, 2
    %935 = vst [vmem:[#allocation19] sm:%s934] %v933
    %s937 = sshllo.u32 0, 2
    %v939 = vld [vmem:[#allocation20] sm:%s937]
    %s940 = sshllo.u32 0, 2
    %941 = vst [vmem:[#allocation21] sm:%s940] %v939
    // Predicated region
    $region104: #{custom-call.63} parent=1 // pred_check
      _
    $region105: #{custom-call.63} parent=1 // pred_check_branch
      %943 = sbr.rel (0) target = $region107
    $region106: #{custom-call.63} parent=1 // pred_region
      %p945 = scmp.gt.s32.totalorder 1, 0
      // Predicated region
      $region108: #{custom-call.63} parent=106 // pred_check
        %p946 = pneg %p945
      $region109: #{custom-call.63} parent=106 // pred_check_branch
        %948 = sbr.rel (%p946) target = $region111
      $region110: #{custom-call.63} parent=106 // pred_region
        %s949 = sshra.s32 1, 3
        %p950 = scmp.gt.s32.totalorder %s949, 0
        // Predicated region
        $region112: #{custom-call.63} parent=110 // pred_check
          %p951 = pneg %p950
        $region113: #{custom-call.63} parent=110 // pred_check_branch
          %953 = sbr.rel (%p951) target = $region115
        $region114: #{custom-call.63} parent=110 // pred_region
          %s954 = ssub.s32 %s949, 1
          %s955 = smul.u32 %s954, 128
          %s956 = sshra.s32 %s955, 4
          %s957 = scalar_lea.vmem [#allocation9], %s956
          %v958 = vld [vmem:[#allocation9] sm:$0xff]
          // While loop
          $region116: #{custom-call.63} parent=114 // loop_pre_header
            _
          $region117: #{custom-call.63} parent=114 // loop_header
            %s959 = sphi [#allocation9], %s981
            %s960 = sphi %s4, %s982
            %v961 = vphi %v958, %v983
            %s962 = ssub.s32 %s957, 64
            %p963 = scmp.gt.s32.totalorder %s959, %s962
          $region118: #{custom-call.63} parent=114 // loop_header_branch
            %965 = sbr.rel (%p963) target = $region122
          $region119: #{custom-call.63} parent=114 // loop_body
            %966 = vst [vmem:[%s960] sm:$0xff] %v961
            %v967 = vld [vmem:[%s959 + $0x8] sm:$0xff]
            %968 = vst [vmem:[%s960 + $0x8] sm:$0xff] %v967
            %v969 = vld [vmem:[%s959 + $0x10] sm:$0xff]
            %970 = vst [vmem:[%s960 + $0x10] sm:$0xff] %v969
            %v971 = vld [vmem:[%s959 + $0x18] sm:$0xff]
            %972 = vst [vmem:[%s960 + $0x18] sm:$0xff] %v971
            %v973 = vld [vmem:[%s959 + $0x20] sm:$0xff]
            %974 = vst [vmem:[%s960 + $0x20] sm:$0xff] %v973
            %v975 = vld [vmem:[%s959 + $0x28] sm:$0xff]
            %976 = vst [vmem:[%s960 + $0x28] sm:$0xff] %v975
            %v977 = vld [vmem:[%s959 + $0x30] sm:$0xff]
            %978 = vst [vmem:[%s960 + $0x30] sm:$0xff] %v977
            %v979 = vld [vmem:[%s959 + $0x38] sm:$0xff]
            %980 = vst [vmem:[%s960 + $0x38] sm:$0xff] %v979
          $region120: #{custom-call.63} parent=114 // loop_footer
            %s981 = scalar_lea.vmem %s959, 64
            %s982 = scalar_lea.vmem %s960, 64
            %v983 = vld [vmem:[%s959 + $0x40] sm:$0xff]
          $region121: #{custom-call.63} parent=114 // loop_footer_branch
            %984 = sbr.rel target = $region117
          $region122: #{custom-call.63} parent=114 // loop_exit
            _
          // While loop
          $region123: #{custom-call.63} parent=114 // loop_pre_header
            _
          $region124: #{custom-call.63} parent=114 // loop_header
            %s985 = sphi %s959, %s993
            %s986 = sphi %s960, %s994
            %v987 = vphi %v961, %v987
            %p988 = scmp.gt.s32.totalorder %s985, %s957
          $region125: #{custom-call.63} parent=114 // loop_header_branch
            %990 = sbr.rel (%p988) target = $region129
          $region126: #{custom-call.63} parent=114 // loop_body
            %v991 = vld [vmem:[%s985] sm:$0xff]
            %992 = vst [vmem:[%s986] sm:$0xff] %v991
          $region127: #{custom-call.63} parent=114 // loop_footer
            %s993 = scalar_lea.vmem %s985, 8
            %s994 = scalar_lea.vmem %s986, 8
          $region128: #{custom-call.63} parent=114 // loop_footer_branch
            %995 = sbr.rel target = $region124
          $region129: #{custom-call.63} parent=114 // loop_exit
            _
        $region115: #{custom-call.63} parent=110 // pred_fallthru
          _
        %s996 = sand.u32 1, 7
        %s997 = sshllo.u32 0, %s996
        %s998 = smul.u32 %s949, 128
        %s999 = sshra.s32 %s998, 4
        %s1000 = scalar_lea.vmem %s4, %s999
        %s1001 = smul.u32 %s949, 128
        %s1002 = sshra.s32 %s1001, 4
        %s1003 = scalar_lea.vmem [#allocation9], %s1002
        %v1004 = vld [vmem:[%s1003] sm:%s997]
        %1005 = vst [vmem:[%s1000] sm:%s997] %v1004
      $region111: #{custom-call.63} parent=106 // pred_fallthru
        _
    $region107: #{custom-call.63} parent=1 // pred_fallthru
      _
    // Predicated region
    $region130: #{custom-call.63} parent=1 // pred_check
      _
    $region131: #{custom-call.63} parent=1 // pred_check_branch
      %1007 = sbr.rel (0) target = $region133
    $region132: #{custom-call.63} parent=1 // pred_region
      %p1009 = scmp.gt.s32.totalorder 1, 0
      // Predicated region
      $region134: #{custom-call.63} parent=132 // pred_check
        %p1010 = pneg %p1009
      $region135: #{custom-call.63} parent=132 // pred_check_branch
        %1012 = sbr.rel (%p1010) target = $region137
      $region136: #{custom-call.63} parent=132 // pred_region
        %s1013 = sshra.s32 1, 3
        %p1014 = scmp.gt.s32.totalorder %s1013, 0
        // Predicated region
        $region138: #{custom-call.63} parent=136 // pred_check
          %p1015 = pneg %p1014
        $region139: #{custom-call.63} parent=136 // pred_check_branch
          %1017 = sbr.rel (%p1015) target = $region141
        $region140: #{custom-call.63} parent=136 // pred_region
          %s1018 = ssub.s32 %s1013, 1
          %s1019 = smul.u32 %s1018, 128
          %s1020 = sshra.s32 %s1019, 4
          %s1021 = scalar_lea.vmem [#allocation11], %s1020
          %v1022 = vld [vmem:[#allocation11] sm:$0xff]
          // While loop
          $region142: #{custom-call.63} parent=140 // loop_pre_header
            _
          $region143: #{custom-call.63} parent=140 // loop_header
            %s1023 = sphi [#allocation11], %s1045
            %s1024 = sphi %s5, %s1046
            %v1025 = vphi %v1022, %v1047
            %s1026 = ssub.s32 %s1021, 64
            %p1027 = scmp.gt.s32.totalorder %s1023, %s1026
          $region144: #{custom-call.63} parent=140 // loop_header_branch
            %1029 = sbr.rel (%p1027) target = $region148
          $region145: #{custom-call.63} parent=140 // loop_body
            %1030 = vst [vmem:[%s1024] sm:$0xff] %v1025
            %v1031 = vld [vmem:[%s1023 + $0x8] sm:$0xff]
            %1032 = vst [vmem:[%s1024 + $0x8] sm:$0xff] %v1031
            %v1033 = vld [vmem:[%s1023 + $0x10] sm:$0xff]
            %1034 = vst [vmem:[%s1024 + $0x10] sm:$0xff] %v1033
            %v1035 = vld [vmem:[%s1023 + $0x18] sm:$0xff]
            %1036 = vst [vmem:[%s1024 + $0x18] sm:$0xff] %v1035
            %v1037 = vld [vmem:[%s1023 + $0x20] sm:$0xff]
            %1038 = vst [vmem:[%s1024 + $0x20] sm:$0xff] %v1037
            %v1039 = vld [vmem:[%s1023 + $0x28] sm:$0xff]
            %1040 = vst [vmem:[%s1024 + $0x28] sm:$0xff] %v1039
            %v1041 = vld [vmem:[%s1023 + $0x30] sm:$0xff]
            %1042 = vst [vmem:[%s1024 + $0x30] sm:$0xff] %v1041
            %v1043 = vld [vmem:[%s1023 + $0x38] sm:$0xff]
            %1044 = vst [vmem:[%s1024 + $0x38] sm:$0xff] %v1043
          $region146: #{custom-call.63} parent=140 // loop_footer
            %s1045 = scalar_lea.vmem %s1023, 64
            %s1046 = scalar_lea.vmem %s1024, 64
            %v1047 = vld [vmem:[%s1023 + $0x40] sm:$0xff]
          $region147: #{custom-call.63} parent=140 // loop_footer_branch
            %1048 = sbr.rel target = $region143
          $region148: #{custom-call.63} parent=140 // loop_exit
            _
          // While loop
          $region149: #{custom-call.63} parent=140 // loop_pre_header
            _
          $region150: #{custom-call.63} parent=140 // loop_header
            %s1049 = sphi %s1023, %s1057
            %s1050 = sphi %s1024, %s1058
            %v1051 = vphi %v1025, %v1051
            %p1052 = scmp.gt.s32.totalorder %s1049, %s1021
          $region151: #{custom-call.63} parent=140 // loop_header_branch
            %1054 = sbr.rel (%p1052) target = $region155
          $region152: #{custom-call.63} parent=140 // loop_body
            %v1055 = vld [vmem:[%s1049] sm:$0xff]
            %1056 = vst [vmem:[%s1050] sm:$0xff] %v1055
          $region153: #{custom-call.63} parent=140 // loop_footer
            %s1057 = scalar_lea.vmem %s1049, 8
            %s1058 = scalar_lea.vmem %s1050, 8
          $region154: #{custom-call.63} parent=140 // loop_footer_branch
            %1059 = sbr.rel target = $region150
          $region155: #{custom-call.63} parent=140 // loop_exit
            _
        $region141: #{custom-call.63} parent=136 // pred_fallthru
          _
        %s1060 = sand.u32 1, 7
        %s1061 = sshllo.u32 0, %s1060
        %s1062 = smul.u32 %s1013, 128
        %s1063 = sshra.s32 %s1062, 4
        %s1064 = scalar_lea.vmem %s5, %s1063
        %s1065 = smul.u32 %s1013, 128
        %s1066 = sshra.s32 %s1065, 4
        %s1067 = scalar_lea.vmem [#allocation11], %s1066
        %v1068 = vld [vmem:[%s1067] sm:%s1061]
        %1069 = vst [vmem:[%s1064] sm:%s1061] %v1068
      $region137: #{custom-call.63} parent=132 // pred_fallthru
        _
    $region133: #{custom-call.63} parent=1 // pred_fallthru
      _
    %s1071 = ssub.s32 32, 32
    %1072 = vsyncadd [#allocation14], %s1071
    %s1073 = sshll.u32 [#allocation13], 4
    %s1074 = int_to_ptr.vmem [resolvable:$true] %s1073
    %1076 = dma.vmem_to_hbm [thread:$0]  %s1074, 32, %s6, [#allocation14]
    %s1078 = ssub.s32 32, 32
    %1079 = vsyncadd [#allocation17], %s1078
    %s1080 = sshll.u32 [#allocation16], 4
    %s1081 = int_to_ptr.vmem [resolvable:$true] %s1080
    %1083 = dma.vmem_to_hbm [thread:$0]  %s1081, 32, %s7, [#allocation17]
    %s1085 = ssub.s32 32, 32
    %1086 = vsyncadd [#allocation17], %s1085
    %s1087 = sshll.u32 [#allocation19], 4
    %s1088 = int_to_ptr.vmem [resolvable:$true] %s1087
    %1090 = dma.vmem_to_hbm [thread:$0]  %s1088, 32, %s8, [#allocation17]
    %s1092 = ssub.s32 32, 32
    %1093 = vsyncadd [#allocation22], %s1092
    %s1094 = sshll.u32 [#allocation21], 4
    %s1095 = int_to_ptr.vmem [resolvable:$true] %s1094
    %1097 = dma.vmem_to_hbm [thread:$0]  %s1095, 32, %s9, [#allocation22]
    // Predicated region
    $region156: #{custom-call.63} parent=1 // pred_check
      _
    $region157: #{custom-call.63} parent=1 // pred_check_branch
      %1099 = sbr.rel (0) target = $region159
    $region158: #{custom-call.63} parent=1 // pred_region
      _
    $region159: #{custom-call.63} parent=1 // pred_fallthru
      _
    // Predicated region
    $region160: #{custom-call.63} parent=1 // pred_check
      _
    $region161: #{custom-call.63} parent=1 // pred_check_branch
      %1101 = sbr.rel (0) target = $region163
    $region162: #{custom-call.63} parent=1 // pred_region
      _
    $region163: #{custom-call.63} parent=1 // pred_fallthru
      _
    %1102 = dma.done [#allocation14], 32
    %1103 = dma.done [#allocation17], 32
    %1104 = dma.done [#allocation17], 32
    %1105 = dma.done [#allocation22], 32
    %1106 = vsyncpa [#allocation14], 1
    %1107 = vsyncpa [#allocation17], 1
    %1108 = vsyncpa [#allocation22], 1

// kernel: reverse.2
$region0: #{reverse.2}
  %s0 = inlined_call_operand.vmem [shape: f32[4], index: 0, kind: input, shape index: {}]
  %s1 = inlined_call_operand.vmem [shape: f32[4], index: 1, kind: output, shape index: {}]
  %v2 = vlaneseq
  %v3 = vsub.s32 3, %v2
  %4 = vset.pattern.permute.xlu0 %v3
  $region1: #{reverse.2} parent=0
    #allocation0 [shape = 'u8[8192]{0}', space=vmem, size = 0x2000, scoped, tag = 'operand span for operand 0']
    #allocation1 [shape = 'u8[1024]{0}', space=vmem, size = 0x400, scoped, tag = 'packed  for operand 0']
    #allocation2 [shape = 'u8[4096]{0}', space=vmem, size = 0x1000, scoped, tag = 'operand span for operand 1']
    #allocation3 [shape = 'u8[512]{0}', space=vmem, size = 0x400, scoped, tag = 'packed  for operand 1']
    %s5 = scalar_lea.vmem [#allocation1], 1
    // Predicated region
    $region2: #{reverse.2} parent=1 // pred_check
      _
    $region3: #{reverse.2} parent=1 // pred_check_branch
      %7 = sbr.rel (0) target = $region5
    $region4: #{reverse.2} parent=1 // pred_region
      // Predicated region
      $region6: #{reverse.2} parent=4 // pred_check
        _
      $region7: #{reverse.2} parent=4 // pred_check_branch
        %9 = sbr.rel target = $region9
      $region8: #{reverse.2} parent=4 // pred_region
        // Predicated region
        $region21: #{reverse.2} parent=8 // pred_check
          _
        $region22: #{reverse.2} parent=8 // pred_check_branch
          %24 = sbr.rel (0) target = $region24
        $region23: #{reverse.2} parent=8 // pred_region
          loop: start=0, step=1, limit=1
          $region25: #{reverse.2} parent=23 // loop_pre_header
            _
          $region26: #{reverse.2} parent=23 // loop_header
            %s27 = sphi 0, %s31
            %p28 = scmp.ge.s32.totalorder %s27, 1
            %s32 = sphi %s0, %s0
            %s33 = sphi %s5, %s5
          $region27: #{reverse.2} parent=23 // loop_header_branch
            %30 = sbr.rel (%p28) target = $region31
          $region28: #{reverse.2} parent=23 // loop_body
            %v34 = vld [vmem:[%s32] sm:$0x1]
            %35 = vst [vmem:[%s33] sm:$0x1] %v34
          $region29: #{reverse.2} parent=23 // loop_footer
            %s31 = sadd.s32 1, %s27
          $region30: #{reverse.2} parent=23 // loop_footer_branch
            %26 = sbr.rel target = $region26
          $region31: #{reverse.2} parent=23 // loop_exit
            _
        $region24: #{reverse.2} parent=8 // pred_fallthru
          _
      $region9: #{reverse.2} parent=4 // pred_fallthru
        _
      // Predicated region
      $region10: #{reverse.2} parent=4 // pred_check
        _
      $region11: #{reverse.2} parent=4 // pred_check_branch
        %11 = sbr.rel (0) target = $region13
      $region12: #{reverse.2} parent=4 // pred_region
        loop: start=0, step=1, limit=1
        $region14: #{reverse.2} parent=12 // loop_pre_header
          _
        $region15: #{reverse.2} parent=12 // loop_header
          %s14 = sphi 0, %s18
          %p15 = scmp.ge.s32.totalorder %s14, 1
          %s19 = sphi %s0, %s0
          %s20 = sphi %s5, %s5
        $region16: #{reverse.2} parent=12 // loop_header_branch
          %17 = sbr.rel (%p15) target = $region20
        $region17: #{reverse.2} parent=12 // loop_body
          %v21 = vld [vmem:[%s19] sm:$0x1]
          %22 = vst [vmem:[%s20] sm:$0x1] %v21
        $region18: #{reverse.2} parent=12 // loop_footer
          %s18 = sadd.s32 1, %s14
        $region19: #{reverse.2} parent=12 // loop_footer_branch
          %13 = sbr.rel target = $region15
        $region20: #{reverse.2} parent=12 // loop_exit
          _
      $region13: #{reverse.2} parent=4 // pred_fallthru
        _
    $region5: #{reverse.2} parent=1 // pred_fallthru
      _
    %36 = vnop
    %s38 = sshllo.u32 0, 1
    %s39 = scalar_lea.vmem [#allocation1], 1
    %v40 = vld [vmem:[%s39] sm:%s38]
    %s41 = scalar_lea.vmem [#allocation0], 8
    %42 = vst [vmem:[%s41] sm:%s38] %v40
    %v43 = vld [vmem:[#allocation1] sm:%s38]
    %44 = vst [vmem:[#allocation0] sm:%s38] %v43
    %s45 = scalar_lea.vmem [#allocation0], 7
    %v46 = vld [vmem:[%s45] ss:$-1 sm:$0xff]
    %v47 = vrot.slane %v46, 7
    %48 = vperm.xlu0 %4, %v47
    %v49 = vpop.permute.xlu0 %48
    %50 = vst [vmem:[#allocation2] sm:$0xff] %v49
    %s51 = scalar_lea.vmem [#allocation0], 8
    %s52 = scalar_lea.vmem %s51, 7 [#allocation0]
    %v53 = vld [vmem:[%s52] ss:$-1 sm:$0xff]
    %v54 = vrot.slane %v53, 7
    %55 = vperm.xlu0 %4, %v54
    %v56 = vpop.permute.xlu0 %55
    %v57 = vlaneseq
    %v58 = vshrl.u32 %v57, 7
    %vm59 = vcmp.lt.s32.totalorder %v58, 1
    %60 = vst.msk [vmem:[#allocation2] sm:$0xff] %vm59, %v56
    %s62 = sshllo.u32 0, 1
    %v64 = vld [vmem:[#allocation2] sm:%s62]
    %s65 = sshllo.u32 0, 1
    %66 = vst [vmem:[#allocation3] sm:%s65] %v64
    // Predicated region
    $region32: #{reverse.2} parent=1 // pred_check
      _
    $region33: #{reverse.2} parent=1 // pred_check_branch
      %68 = sbr.rel (0) target = $region35
    $region34: #{reverse.2} parent=1 // pred_region
      // Predicated region
      $region36: #{reverse.2} parent=34 // pred_check
        _
      $region37: #{reverse.2} parent=34 // pred_check_branch
        %70 = sbr.rel target = $region39
      $region38: #{reverse.2} parent=34 // pred_region
        // Predicated region
        $region51: #{reverse.2} parent=38 // pred_check
          _
        $region52: #{reverse.2} parent=38 // pred_check_branch
          %85 = sbr.rel (0) target = $region54
        $region53: #{reverse.2} parent=38 // pred_region
          loop: start=0, step=1, limit=1
          $region55: #{reverse.2} parent=53 // loop_pre_header
            _
          $region56: #{reverse.2} parent=53 // loop_header
            %s88 = sphi 0, %s92
            %p89 = scmp.ge.s32.totalorder %s88, 1
            %s93 = sphi [#allocation3], [#allocation3]
            %s94 = sphi %s1, %s1
          $region57: #{reverse.2} parent=53 // loop_header_branch
            %91 = sbr.rel (%p89) target = $region61
          $region58: #{reverse.2} parent=53 // loop_body
            %v95 = vld [vmem:[%s93] sm:$0x1]
            %96 = vst [vmem:[%s94] sm:$0x1] %v95
          $region59: #{reverse.2} parent=53 // loop_footer
            %s92 = sadd.s32 1, %s88
          $region60: #{reverse.2} parent=53 // loop_footer_branch
            %87 = sbr.rel target = $region56
          $region61: #{reverse.2} parent=53 // loop_exit
            _
        $region54: #{reverse.2} parent=38 // pred_fallthru
          _
      $region39: #{reverse.2} parent=34 // pred_fallthru
        _
      // Predicated region
      $region40: #{reverse.2} parent=34 // pred_check
        _
      $region41: #{reverse.2} parent=34 // pred_check_branch
        %72 = sbr.rel (0) target = $region43
      $region42: #{reverse.2} parent=34 // pred_region
        loop: start=0, step=1, limit=1
        $region44: #{reverse.2} parent=42 // loop_pre_header
          _
        $region45: #{reverse.2} parent=42 // loop_header
          %s75 = sphi 0, %s79
          %p76 = scmp.ge.s32.totalorder %s75, 1
          %s80 = sphi [#allocation3], [#allocation3]
          %s81 = sphi %s1, %s1
        $region46: #{reverse.2} parent=42 // loop_header_branch
          %78 = sbr.rel (%p76) target = $region50
        $region47: #{reverse.2} parent=42 // loop_body
          %v82 = vld [vmem:[%s80] sm:$0x1]
          %83 = vst [vmem:[%s81] sm:$0x1] %v82
        $region48: #{reverse.2} parent=42 // loop_footer
          %s79 = sadd.s32 1, %s75
        $region49: #{reverse.2} parent=42 // loop_footer_branch
          %74 = sbr.rel target = $region45
        $region50: #{reverse.2} parent=42 // loop_exit
          _
      $region43: #{reverse.2} parent=34 // pred_fallthru
        _
    $region35: #{reverse.2} parent=1 // pred_fallthru
      _
    %97 = vnop

// kernel: tile.23
$region0: #{tile.23}
  #allocation0 [shape = 's32[1]{0}', space=sflag, size = 0x4, scoped, tag = 'scoped memory for tile.23']
  %s0 = inlined_call_operand.vmem [shape: f32[4], index: 0, kind: input, shape index: {}]
  %s1 = inlined_call_operand.vmem [shape: f32[2,4], index: 1, kind: output, shape index: {}]
  // Predicated region
  $region2: #{tile.23} parent=0 // pred_check
    _
  $region3: #{tile.23} parent=0 // pred_check_branch
    %3 = sbr.rel (0) target = $region5
  $region4: #{tile.23} parent=0 // pred_region
    _
  $region5: #{tile.23} parent=0 // pred_fallthru
    _
  %v4 = vld [vmem:[%s0] ss:$0 sm:$0xff]
  %5 = vst [vmem:[%s1] sm:$0x3] %v4

// kernel: tile.0
$region0: #{tile.0}
  %s0 = inlined_call_operand.vmem [shape: f32[2,4], index: 0, kind: input, shape index: {}]
  %s1 = inlined_call_operand.vmem [shape: f32[8,1], index: 1, kind: output, shape index: {}]
  $region1: #{tile.0} parent=0
    #allocation0 [shape = 'u8[4096]{0}', space=vmem, size = 0x1000, scoped, tag = 'scoped mem for input reshape']
    %s3 = sshllo.u32 0, 2
    %v4 = vld [vmem:[%s0] sm:%s3]
    %5 = vst [vmem:[#allocation0] sm:%s3] %v4
    %v6 = vld [vmem:[#allocation0] sm:$0x3]
    %vm7 = vcmask 7168
    %8 = vst.msk [vmem:[%s1] ss:$4 sm:$0x3] %vm7, %v6
    %v9 = vld [vmem:[#allocation0] sm:$0x3]
    %10 = vrot.lane.b32.xlu0 %v9, 127
    %v11 = vpop.permute.xlu0 %10
    %vm12 = vcmask 7168
    %s13 = scalar_lea.vmem %s1, 1
    %14 = vst.msk [vmem:[%s13] ss:$4 sm:$0x3] %vm12, %v11
    %v15 = vld [vmem:[#allocation0] sm:$0x3]
    %16 = vrot.lane.b32.xlu0 %v15, 126
    %v17 = vpop.permute.xlu0 %16
    %vm18 = vcmask 7168
    %s19 = scalar_lea.vmem %s1, 2
    %20 = vst.msk [vmem:[%s19] ss:$4 sm:$0x3] %vm18, %v17
    %v21 = vld [vmem:[#allocation0] sm:$0x3]
    %22 = vrot.lane.b32.xlu0 %v21, 125
    %v23 = vpop.permute.xlu0 %22
    %vm24 = vcmask 7168
    %s25 = scalar_lea.vmem %s1, 3
    %26 = vst.msk [vmem:[%s25] ss:$4 sm:$0x3] %vm24, %v23

// kernel: dilate_res_block.1
$region0: #{dilate_res_block.1}
  #allocation0 [shape = 'u32[]', space=smem, size = 0x4, offset = 0x4, fixed_abs, tag = 'smem constant byte address 0x4 - core index']
  #allocation1 [shape = 'u32[144,128]{1,0:T(1,128)}', space=vmem, size = 0x12000, scoped, tag = 'internal scratch']
  %s0 = inlined_call_operand.vmem [shape: f32[8,256], index: 0, kind: input, shape index: {}]
  %s1 = inlined_call_operand.vmem [shape: f32[8,72], index: 1, kind: input, shape index: {}]
  %s2 = inlined_call_operand.vmem [shape: f32[8,72], index: 2, kind: input, shape index: {}]
  %s3 = inlined_call_operand.vmem [shape: f32[8,4], index: 3, kind: input, shape index: {}]
  %s4 = inlined_call_operand.vmem [shape: f32[18,256], index: 4, kind: input, shape index: {}]
  %s5 = inlined_call_operand.vmem [shape: f32[8,8], index: 5, kind: input, shape index: {}]
  %s6 = inlined_call_operand.vmem [shape: f32[8,256], index: 6, kind: output, shape index: {}]
  %s7 = sld [smem:[#allocation0]]
  $region34: #{dilate_res_block.1} parent=0
    _
  %s9 = ssub.s32 1, %s7
  %s10 = scalar_select 0, %s9, %s7
  // Predicated region
  $region2: #{dilate_res_block.1} parent=0 // pred_check
    _
  $region3: #{dilate_res_block.1} parent=0 // pred_check_branch
    %12 = sbr.rel (0) target = $region5
  $region4: #{dilate_res_block.1} parent=0 // pred_region
    _
  $region5: #{dilate_res_block.1} parent=0 // pred_fallthru
    _
  // Predicated region
  $region6: #{dilate_res_block.1} parent=0 // pred_check
    _
  $region7: #{dilate_res_block.1} parent=0 // pred_check_branch
    %14 = sbr.rel (0) target = $region9
  $region8: #{dilate_res_block.1} parent=0 // pred_region
    _
  $region9: #{dilate_res_block.1} parent=0 // pred_fallthru
    _
  // Predicated region
  $region10: #{dilate_res_block.1} parent=0 // pred_check
    _
  $region11: #{dilate_res_block.1} parent=0 // pred_check_branch
    %16 = sbr.rel (0) target = $region13
  $region12: #{dilate_res_block.1} parent=0 // pred_region
    _
  $region13: #{dilate_res_block.1} parent=0 // pred_fallthru
    _
  // Predicated region
  $region14: #{dilate_res_block.1} parent=0 // pred_check
    _
  $region15: #{dilate_res_block.1} parent=0 // pred_check_branch
    %18 = sbr.rel (0) target = $region17
  $region16: #{dilate_res_block.1} parent=0 // pred_region
    _
  $region17: #{dilate_res_block.1} parent=0 // pred_fallthru
    _
  // Predicated region
  $region18: #{dilate_res_block.1} parent=0 // pred_check
    _
  $region19: #{dilate_res_block.1} parent=0 // pred_check_branch
    %20 = sbr.rel (0) target = $region21
  $region20: #{dilate_res_block.1} parent=0 // pred_region
    _
  $region21: #{dilate_res_block.1} parent=0 // pred_fallthru
    _
  // Predicated region
  $region22: #{dilate_res_block.1} parent=0 // pred_check
    _
  $region23: #{dilate_res_block.1} parent=0 // pred_check_branch
    %22 = sbr.rel (0) target = $region25
  $region24: #{dilate_res_block.1} parent=0 // pred_region
    _
  $region25: #{dilate_res_block.1} parent=0 // pred_fallthru
    _
  %v23 = vld [vmem:[%s0] sm:$0xff]
  %v24 = vld [vmem:[%s0 + $0x8] sm:$0xff]
  %v25 = vld [vmem:[%s3] sm:$0xff]
  %26 = vrot.lane.b32.xlu0 %v23, 51
  %v27 = vpop.permute.xlu0 %26
  %28 = vrot.lane.b32.xlu0 %v24, 51
  %v29 = vpop.permute.xlu0 %28
  %v30 = vlaneseq
  %v31 = vand.u32 %v30, 127
  %vm32 = vcmp.lt.s32.totalorder %v31, 51
  %v33 = vsel %vm32, %v27, %v29
  %v34 = vsel %vm32, %v29, %v27
  %v35 = vld [vmem:[%s4] ss:$8 sm:$0x3]
  %vm36 = vcmp.gt.f32.partialorder %v35, 0.5
  %v37 = vsel %vm36, 1, 0
  %v38 = vlaneseq
  %v39 = vshrl.u32 %v38, 7
  %v40 = vsub.s32 0, %v39
  %v41 = vrot.slane %v37, %v40
  %v42 = vlaneseq
  %v43 = vshrl.u32 %v42, 7
  %v44 = vsub.s32 1, %v43
  %v45 = vrot.slane %v37, %v44
  %vm46 = vcmp.eq.s32.totalorder %v41, 1
  %vm47 = vcmp.eq.s32.totalorder %v45, 1
  %v48 = vsel %vm46, %v34, 0.0
  %v49 = vsel %vm47, %v33, 0.0
  %50 = vrot.lane.b32.xlu0 %v23, 48
  %v51 = vpop.permute.xlu0 %50
  %52 = vrot.lane.b32.xlu0 %v24, 48
  %v53 = vpop.permute.xlu0 %52
  %vm54 = vcmp.lt.s32.totalorder %v31, 48
  %v55 = vsel %vm54, %v51, %v53
  %v56 = vsel %vm54, %v53, %v51
  %s57 = scalar_lea.vmem %s4, 1
  %v58 = vld [vmem:[%s57] ss:$8 sm:$0x3]
  %vm59 = vcmp.gt.f32.partialorder %v58, 0.5
  %v60 = vsel %vm59, 1, 0
  %v61 = vlaneseq
  %v62 = vshrl.u32 %v61, 7
  %v63 = vsub.s32 0, %v62
  %v64 = vrot.slane %v60, %v63
  %v65 = vlaneseq
  %v66 = vshrl.u32 %v65, 7
  %v67 = vsub.s32 1, %v66
  %v68 = vrot.slane %v60, %v67
  %vm69 = vcmp.eq.s32.totalorder %v64, 1
  %vm70 = vcmp.eq.s32.totalorder %v68, 1
  %v71 = vsel %vm69, %v56, 0.0
  %v72 = vsel %vm70, %v55, 0.0
  %73 = vrot.lane.b32.xlu0 %v23, 45
  %v74 = vpop.permute.xlu0 %73
  %75 = vrot.lane.b32.xlu0 %v24, 45
  %v76 = vpop.permute.xlu0 %75
  %vm77 = vcmp.lt.s32.totalorder %v31, 45
  %v78 = vsel %vm77, %v74, %v76
  %v79 = vsel %vm77, %v76, %v74
  %s80 = scalar_lea.vmem %s4, 2
  %v81 = vld [vmem:[%s80] ss:$8 sm:$0x3]
  %vm82 = vcmp.gt.f32.partialorder %v81, 0.5
  %v83 = vsel %vm82, 1, 0
  %v84 = vlaneseq
  %v85 = vshrl.u32 %v84, 7
  %v86 = vsub.s32 0, %v85
  %v87 = vrot.slane %v83, %v86
  %v88 = vlaneseq
  %v89 = vshrl.u32 %v88, 7
  %v90 = vsub.s32 1, %v89
  %v91 = vrot.slane %v83, %v90
  %vm92 = vcmp.eq.s32.totalorder %v87, 1
  %vm93 = vcmp.eq.s32.totalorder %v91, 1
  %v94 = vsel %vm92, %v79, 0.0
  %v95 = vsel %vm93, %v78, 0.0
  %96 = vrot.lane.b32.xlu0 %v23, 3
  %v97 = vpop.permute.xlu0 %96
  %98 = vrot.lane.b32.xlu0 %v24, 3
  %v99 = vpop.permute.xlu0 %98
  %vm100 = vcmp.lt.s32.totalorder %v31, 3
  %v101 = vsel %vm100, %v97, %v99
  %v102 = vsel %vm100, %v99, %v97
  %s103 = scalar_lea.vmem %s4, 3
  %v104 = vld [vmem:[%s103] ss:$8 sm:$0x3]
  %vm105 = vcmp.gt.f32.partialorder %v104, 0.5
  %v106 = vsel %vm105, 1, 0
  %v107 = vlaneseq
  %v108 = vshrl.u32 %v107, 7
  %v109 = vsub.s32 0, %v108
  %v110 = vrot.slane %v106, %v109
  %v111 = vlaneseq
  %v112 = vshrl.u32 %v111, 7
  %v113 = vsub.s32 1, %v112
  %v114 = vrot.slane %v106, %v113
  %vm115 = vcmp.eq.s32.totalorder %v110, 1
  %vm116 = vcmp.eq.s32.totalorder %v114, 1
  %v117 = vsel %vm115, %v102, 0.0
  %v118 = vsel %vm116, %v101, 0.0
  %119 = vrot.lane.b32.xlu0 %v23, 125
  %v120 = vpop.permute.xlu0 %119
  %121 = vrot.lane.b32.xlu0 %v24, 125
  %v122 = vpop.permute.xlu0 %121
  %vm123 = vcmp.lt.s32.totalorder %v31, 125
  %v124 = vsel %vm123, %v120, %v122
  %v125 = vsel %vm123, %v122, %v120
  %s126 = scalar_lea.vmem %s4, 5
  %v127 = vld [vmem:[%s126] ss:$8 sm:$0x3]
  %vm128 = vcmp.gt.f32.partialorder %v127, 0.5
  %v129 = vsel %vm128, 1, 0
  %v130 = vlaneseq
  %v131 = vshrl.u32 %v130, 7
  %v132 = vsub.s32 0, %v131
  %v133 = vrot.slane %v129, %v132
  %v134 = vlaneseq
  %v135 = vshrl.u32 %v134, 7
  %v136 = vsub.s32 1, %v135
  %v137 = vrot.slane %v129, %v136
  %vm138 = vcmp.eq.s32.totalorder %v133, 1
  %vm139 = vcmp.eq.s32.totalorder %v137, 1
  %v140 = vsel %vm138, %v124, 0.0
  %v141 = vsel %vm139, %v125, 0.0
  %142 = vrot.lane.b32.xlu0 %v23, 83
  %v143 = vpop.permute.xlu0 %142
  %144 = vrot.lane.b32.xlu0 %v24, 83
  %v145 = vpop.permute.xlu0 %144
  %vm146 = vcmp.lt.s32.totalorder %v31, 83
  %v147 = vsel %vm146, %v143, %v145
  %v148 = vsel %vm146, %v145, %v143
  %s149 = scalar_lea.vmem %s4, 6
  %v150 = vld [vmem:[%s149] ss:$8 sm:$0x3]
  %vm151 = vcmp.gt.f32.partialorder %v150, 0.5
  %v152 = vsel %vm151, 1, 0
  %v153 = vlaneseq
  %v154 = vshrl.u32 %v153, 7
  %v155 = vsub.s32 0, %v154
  %v156 = vrot.slane %v152, %v155
  %v157 = vlaneseq
  %v158 = vshrl.u32 %v157, 7
  %v159 = vsub.s32 1, %v158
  %v160 = vrot.slane %v152, %v159
  %vm161 = vcmp.eq.s32.totalorder %v156, 1
  %vm162 = vcmp.eq.s32.totalorder %v160, 1
  %v163 = vsel %vm161, %v147, 0.0
  %v164 = vsel %vm162, %v148, 0.0
  %165 = vrot.lane.b32.xlu0 %v23, 80
  %v166 = vpop.permute.xlu0 %165
  %167 = vrot.lane.b32.xlu0 %v24, 80
  %v168 = vpop.permute.xlu0 %167
  %vm169 = vcmp.lt.s32.totalorder %v31, 80
  %v170 = vsel %vm169, %v166, %v168
  %v171 = vsel %vm169, %v168, %v166
  %s172 = scalar_lea.vmem %s4, 7
  %v173 = vld [vmem:[%s172] ss:$8 sm:$0x3]
  %vm174 = vcmp.gt.f32.partialorder %v173, 0.5
  %v175 = vsel %vm174, 1, 0
  %v176 = vlaneseq
  %v177 = vshrl.u32 %v176, 7
  %v178 = vsub.s32 0, %v177
  %v179 = vrot.slane %v175, %v178
  %v180 = vlaneseq
  %v181 = vshrl.u32 %v180, 7
  %v182 = vsub.s32 1, %v181
  %v183 = vrot.slane %v175, %v182
  %vm184 = vcmp.eq.s32.totalorder %v179, 1
  %vm185 = vcmp.eq.s32.totalorder %v183, 1
  %v186 = vsel %vm184, %v170, 0.0
  %v187 = vsel %vm185, %v171, 0.0
  %188 = vrot.lane.b32.xlu0 %v23, 77
  %v189 = vpop.permute.xlu0 %188
  %190 = vrot.lane.b32.xlu0 %v24, 77
  %v191 = vpop.permute.xlu0 %190
  %vm192 = vcmp.lt.s32.totalorder %v31, 77
  %v193 = vsel %vm192, %v189, %v191
  %v194 = vsel %vm192, %v191, %v189
  %s195 = scalar_lea.vmem %s4, 16
  %v196 = vld [vmem:[%s195] ss:$8 sm:$0x3]
  %vm197 = vcmp.gt.f32.partialorder %v196, 0.5
  %v198 = vsel %vm197, 1, 0
  %v199 = vlaneseq
  %v200 = vshrl.u32 %v199, 7
  %v201 = vsub.s32 0, %v200
  %v202 = vrot.slane %v198, %v201
  %v203 = vlaneseq
  %v204 = vshrl.u32 %v203, 7
  %v205 = vsub.s32 1, %v204
  %v206 = vrot.slane %v198, %v205
  %vm207 = vcmp.eq.s32.totalorder %v202, 1
  %vm208 = vcmp.eq.s32.totalorder %v206, 1
  %v209 = vsel %vm207, %v193, 0.0
  %v210 = vsel %vm208, %v194, 0.0
  %v211 = vld [vmem:[%s1] sm:$0xff]
  %213 = vset.pattern.permute.xlu0 0
  %214 = vperm.xlu0 %213, %v25
  %v215 = vpop.permute.xlu0 %214
  %vm217 = vcmask 588800
  %v219 = vsel %vm217, %v211, 0
  %221 = vmatprep.subr.mxu0 %v49
  %222 = vmatpush1.msra.mxu0 %v48
  %223 = vmatprep.subr.mxu0 %v72
  %224 = vmatpush1.msra.mxu0 %v71
  %225 = vmatprep.subr.mxu0 %v95
  %226 = vmatpush1.msra.mxu0 %v94
  %227 = vmatprep.subr.mxu0 %v118
  %228 = vmatpush1.msra.mxu0 %v117
  %229 = vmatprep.subr.mxu0 %v24
  %230 = vmatpush1.msra.mxu0 %v23
  %231 = vmatprep.subr.mxu0 %v141
  %232 = vmatpush1.msra.mxu0 %v140
  %233 = vmatprep.subr.mxu0 %v164
  %234 = vmatpush1.msra.mxu0 %v163
  %235 = vmatprep.subr.mxu0 %v187
  %236 = vmatpush1.msra.mxu0 %v186
  %237 = vmatprep.subr.mxu0 %v210
  %238 = vmatpush1.msra.mxu0 %v209
  %239 = vmatprep.subr.mxu0 0.0
  %240 = vmatpush1.msra.mxu0 0.0
  %241 = vmatprep.subr.mxu0 0.0
  %242 = vmatpush1.msra.mxu0 0.0
  %243 = vmatprep.subr.mxu0 0.0
  %244 = vmatpush1.msra.mxu0 0.0
  %245 = vmatprep.subr.mxu0 0.0
  %246 = vmatpush1.msra.mxu0 0.0
  %247 = vmatprep.subr.mxu0 0.0
  %248 = vmatpush1.msra.mxu0 0.0
  %249 = vmatprep.subr.mxu0 0.0
  %250 = vmatpush1.msra.mxu0 0.0
  %251 = vmatprep.subr.mxu0 0.0
  %252 = vmatpush1.msra.mxu0 0.0
  %253 = vmatprep.subr.mxu0 0.0
  %254 = vmatpush1.msra.mxu0 0.0
  %255 = vmatprep.subr.mxu0 0.0
  %256 = vmatpush1.msra.mxu0 0.0
  %257 = vmatprep.subr.mxu0 0.0
  %258 = vmatpush1.msra.mxu0 0.0
  %259 = vmatprep.subr.mxu0 0.0
  %260 = vmatpush1.msra.mxu0 0.0
  %261 = vmatprep.subr.mxu0 0.0
  %262 = vmatpush1.msra.mxu0 0.0
  %263 = vmatprep.subr.mxu0 0.0
  %264 = vmatpush1.msra.mxu0 0.0
  %265 = vmatprep.subr.mxu0 0.0
  %266 = vmatpush1.msra.mxu0 0.0
  %267 = vmatprep.subr.mxu0 0.0
  %268 = vmatpush1.msra.mxu0 0.0
  %269 = vmatprep.subr.mxu0 0.0
  %270 = vmatpush1.msra.mxu0 0.0
  %271 = vmatprep.subr.mxu0 0.0
  %272 = vmatpush1.msra.mxu0 0.0
  %273 = vmatprep.subr.mxu0 0.0
  %274 = vmatpush1.msra.mxu0 0.0
  %275 = vmatprep.subr.mxu0 0.0
  %276 = vmatpush1.msra.mxu0 0.0
  %277 = vmatprep.subr.mxu0 0.0
  %278 = vmatpush1.msra.mxu0 0.0
  %279 = vmatprep.subr.mxu0 0.0
  %280 = vmatpush1.msra.mxu0 0.0
  %281 = vmatprep.subr.mxu0 0.0
  %282 = vmatpush1.msra.mxu0 0.0
  %283 = vmatprep.subr.mxu0 0.0
  %284 = vmatpush1.msra.mxu0 0.0
  %285 = vmatprep.mubr.f32.mxu0 0.0
  %286 = vmatmul.mubr.f32.gmra.mrb[0].mxu0 %v219
  %v287 = vpop.f32.mrb[0].mxu0
  %v288 = vadd.f32 %v215, %v287
  %v289 = vpop.f32.mrb[0].mxu0
  %v290 = vadd.f32 %v215, %v289
  %291 = vdwg.mxu0
  %v292 = vadd.f32 %v288, %v290
  %293 = vadd.xlane.f32.xlu0 %v292
  %v294 = vpop.xlane.xlu0 %293
  %v295 = vmul.f32 %v288, %v288
  %v296 = vmul.f32 %v290, %v290
  %v297 = vadd.f32 %v295, %v296
  %298 = vadd.xlane.f32.xlu0 %v297
  %v299 = vpop.xlane.xlu0 %298
  %v300 = vld [vmem:[%s5] sm:$0xff]
  %vm301 = vcmask 7168
  %v302 = vsel %vm301, %v294, %v299
  %vm303 = vcmask 64512
  %v305 = vsel %vm303, %v300, 0
  %307 = vmatprep.subr.mxu0 0.0
  %308 = vmatpush1.msra.mxu0 %v302
  %309 = vmatprep.subr.mxu0 0.0
  %310 = vmatpush1.msra.mxu0 0.0
  %311 = vmatprep.subr.mxu0 0.0
  %312 = vmatpush1.msra.mxu0 0.0
  %313 = vmatprep.subr.mxu0 0.0
  %314 = vmatpush1.msra.mxu0 0.0
  %315 = vmatprep.subr.mxu0 0.0
  %316 = vmatpush1.msra.mxu0 0.0
  %317 = vmatprep.subr.mxu0 0.0
  %318 = vmatpush1.msra.mxu0 0.0
  %319 = vmatprep.subr.mxu0 0.0
  %320 = vmatpush1.msra.mxu0 0.0
  %321 = vmatprep.subr.mxu0 0.0
  %322 = vmatpush1.msra.mxu0 0.0
  %323 = vmatprep.subr.mxu0 0.0
  %324 = vmatpush1.msra.mxu0 0.0
  %325 = vmatprep.subr.mxu0 0.0
  %326 = vmatpush1.msra.mxu0 0.0
  %327 = vmatprep.subr.mxu0 0.0
  %328 = vmatpush1.msra.mxu0 0.0
  %329 = vmatprep.subr.mxu0 0.0
  %330 = vmatpush1.msra.mxu0 0.0
  %331 = vmatprep.subr.mxu0 0.0
  %332 = vmatpush1.msra.mxu0 0.0
  %333 = vmatprep.subr.mxu0 0.0
  %334 = vmatpush1.msra.mxu0 0.0
  %335 = vmatprep.subr.mxu0 0.0
  %336 = vmatpush1.msra.mxu0 0.0
  %337 = vmatprep.subr.mxu0 0.0
  %338 = vmatpush1.msra.mxu0 0.0
  %339 = vmatprep.subr.mxu0 0.0
  %340 = vmatpush1.msra.mxu0 0.0
  %341 = vmatprep.subr.mxu0 0.0
  %342 = vmatpush1.msra.mxu0 0.0
  %343 = vmatprep.subr.mxu0 0.0
  %344 = vmatpush1.msra.mxu0 0.0
  %345 = vmatprep.subr.mxu0 0.0
  %346 = vmatpush1.msra.mxu0 0.0
  %347 = vmatprep.subr.mxu0 0.0
  %348 = vmatpush1.msra.mxu0 0.0
  %349 = vmatprep.subr.mxu0 0.0
  %350 = vmatpush1.msra.mxu0 0.0
  %351 = vmatprep.subr.mxu0 0.0
  %352 = vmatpush1.msra.mxu0 0.0
  %353 = vmatprep.subr.mxu0 0.0
  %354 = vmatpush1.msra.mxu0 0.0
  %355 = vmatprep.subr.mxu0 0.0
  %356 = vmatpush1.msra.mxu0 0.0
  %357 = vmatprep.subr.mxu0 0.0
  %358 = vmatpush1.msra.mxu0 0.0
  %359 = vmatprep.subr.mxu0 0.0
  %360 = vmatpush1.msra.mxu0 0.0
  %361 = vmatprep.subr.mxu0 0.0
  %362 = vmatpush1.msra.mxu0 0.0
  %363 = vmatprep.subr.mxu0 0.0
  %364 = vmatpush1.msra.mxu0 0.0
  %365 = vmatprep.subr.mxu0 0.0
  %366 = vmatpush1.msra.mxu0 0.0
  %367 = vmatprep.subr.mxu0 0.0
  %368 = vmatpush1.msra.mxu0 0.0
  %369 = vmatprep.subr.mxu0 0.0
  %370 = vmatpush1.msra.mxu0 0.0
  %371 = vmatprep.mubr.f32.mxu0 0.0
  %372 = vmatmul.mubr.f32.gmra.mrb[0].mxu0 %v305
  %v373 = vpop.f32.mrb[0].mxu0
  %v374 = vadd.f32 0.0, %v373
  %v375 = vpop.f32.mrb[0].mxu0
  %376 = vdwg.mxu0
  %v377 = vmul.f32 %v374, %v374
  %379 = vrot.lane.b32.xlu0 %v377, 1
  %v380 = vpop.permute.xlu0 %379
  %v382 = vsub.f32 %v374, %v380
  %v383 = vadd.f32 %v382, 1e-05
  %v384 = vrsqrt.pop %v383
  %v385 = vmul.f32 %v25, %v384
  %387 = vrot.lane.b32.xlu0 %v385, 127
  %v388 = vpop.permute.xlu0 %387
  %v390 = vmul.f32 %v374, %v388
  %392 = vrot.lane.b32.xlu0 %v390, 2
  %v393 = vpop.permute.xlu0 %392
  %v395 = vsub.f32 %v25, %v393
  %396 = vset.pattern.permute.xlu0 1
  %397 = vperm.xlu0 %396, %v385
  %v398 = vpop.permute.xlu0 %397
  %v400 = vmul.f32 %v288, %v398
  %v401 = vmul.f32 %v290, %v398
  %403 = vset.pattern.permute.xlu0 2
  %404 = vperm.xlu0 %403, %v395
  %v405 = vpop.permute.xlu0 %404
  %v407 = vadd.f32 %v400, %v405
  %v408 = vadd.f32 %v401, %v405
  %vm409 = vcmp.ge.f32.partialorder %v407, 0.0
  %vm410 = vcmp.ge.f32.partialorder %v408, 0.0
  %v411 = vmul.f32 %v407, 0.2
  %v412 = vmul.f32 %v408, 0.2
  %v413 = vsel %vm409, %v407, %v411
  %v414 = vsel %vm410, %v408, %v412
  %415 = vrot.lane.b32.xlu0 %v413, 17
  %v416 = vpop.permute.xlu0 %415
  %417 = vrot.lane.b32.xlu0 %v414, 17
  %v418 = vpop.permute.xlu0 %417
  %vm419 = vcmp.lt.s32.totalorder %v31, 17
  %v420 = vsel %vm419, %v416, %v418
  %v421 = vsel %vm419, %v418, %v416
  %s422 = scalar_lea.vmem %s4, 17
  %v423 = vld [vmem:[%s422] ss:$8 sm:$0x3]
  %vm424 = vcmp.gt.f32.partialorder %v423, 0.5
  %v425 = vsel %vm424, 1, 0
  %v426 = vlaneseq
  %v427 = vshrl.u32 %v426, 7
  %v428 = vsub.s32 0, %v427
  %v429 = vrot.slane %v425, %v428
  %v430 = vlaneseq
  %v431 = vshrl.u32 %v430, 7
  %v432 = vsub.s32 1, %v431
  %v433 = vrot.slane %v425, %v432
  %vm434 = vcmp.eq.s32.totalorder %v429, 1
  %vm435 = vcmp.eq.s32.totalorder %v433, 1
  %v436 = vsel %vm434, %v421, 0.0
  %v437 = vsel %vm435, %v420, 0.0
  %438 = vrot.lane.b32.xlu0 %v413, 16
  %v439 = vpop.permute.xlu0 %438
  %440 = vrot.lane.b32.xlu0 %v414, 16
  %v441 = vpop.permute.xlu0 %440
  %vm442 = vcmp.lt.s32.totalorder %v31, 16
  %v443 = vsel %vm442, %v439, %v441
  %v444 = vsel %vm442, %v441, %v439
  %s445 = scalar_lea.vmem %s4, 18
  %v446 = vld [vmem:[%s445] ss:$8 sm:$0x3]
  %vm447 = vcmp.gt.f32.partialorder %v446, 0.5
  %v448 = vsel %vm447, 1, 0
  %v449 = vlaneseq
  %v450 = vshrl.u32 %v449, 7
  %v451 = vsub.s32 0, %v450
  %v452 = vrot.slane %v448, %v451
  %v453 = vlaneseq
  %v454 = vshrl.u32 %v453, 7
  %v455 = vsub.s32 1, %v454
  %v456 = vrot.slane %v448, %v455
  %vm457 = vcmp.eq.s32.totalorder %v452, 1
  %vm458 = vcmp.eq.s32.totalorder %v456, 1
  %v459 = vsel %vm457, %v444, 0.0
  %v460 = vsel %vm458, %v443, 0.0
  %461 = vrot.lane.b32.xlu0 %v413, 15
  %v462 = vpop.permute.xlu0 %461
  %463 = vrot.lane.b32.xlu0 %v414, 15
  %v464 = vpop.permute.xlu0 %463
  %vm465 = vcmp.lt.s32.totalorder %v31, 15
  %v466 = vsel %vm465, %v462, %v464
  %v467 = vsel %vm465, %v464, %v462
  %s468 = scalar_lea.vmem %s4, 19
  %v469 = vld [vmem:[%s468] ss:$8 sm:$0x3]
  %vm470 = vcmp.gt.f32.partialorder %v469, 0.5
  %v471 = vsel %vm470, 1, 0
  %v472 = vlaneseq
  %v473 = vshrl.u32 %v472, 7
  %v474 = vsub.s32 0, %v473
  %v475 = vrot.slane %v471, %v474
  %v476 = vlaneseq
  %v477 = vshrl.u32 %v476, 7
  %v478 = vsub.s32 1, %v477
  %v479 = vrot.slane %v471, %v478
  %vm480 = vcmp.eq.s32.totalorder %v475, 1
  %vm481 = vcmp.eq.s32.totalorder %v479, 1
  %v482 = vsel %vm480, %v467, 0.0
  %v483 = vsel %vm481, %v466, 0.0
  %484 = vrot.lane.b32.xlu0 %v413, 1
  %v485 = vpop.permute.xlu0 %484
  %486 = vrot.lane.b32.xlu0 %v414, 1
  %v487 = vpop.permute.xlu0 %486
  %vm488 = vcmp.lt.s32.totalorder %v31, 1
  %v489 = vsel %vm488, %v485, %v487
  %v490 = vsel %vm488, %v487, %v485
  %s491 = scalar_lea.vmem %s4, 20
  %v492 = vld [vmem:[%s491] ss:$8 sm:$0x3]
  %vm493 = vcmp.gt.f32.partialorder %v492, 0.5
  %v494 = vsel %vm493, 1, 0
  %v495 = vlaneseq
  %v496 = vshrl.u32 %v495, 7
  %v497 = vsub.s32 0, %v496
  %v498 = vrot.slane %v494, %v497
  %v499 = vlaneseq
  %v500 = vshrl.u32 %v499, 7
  %v501 = vsub.s32 1, %v500
  %v502 = vrot.slane %v494, %v501
  %vm503 = vcmp.eq.s32.totalorder %v498, 1
  %vm504 = vcmp.eq.s32.totalorder %v502, 1
  %v505 = vsel %vm503, %v490, 0.0
  %v506 = vsel %vm504, %v489, 0.0
  %507 = vrot.lane.b32.xlu0 %v413, 127
  %v508 = vpop.permute.xlu0 %507
  %509 = vrot.lane.b32.xlu0 %v414, 127
  %v510 = vpop.permute.xlu0 %509
  %vm511 = vcmp.lt.s32.totalorder %v31, 127
  %v512 = vsel %vm511, %v508, %v510
  %v513 = vsel %vm511, %v510, %v508
  %s514 = scalar_lea.vmem %s4, 22
  %v515 = vld [vmem:[%s514] ss:$8 sm:$0x3]
  %vm516 = vcmp.gt.f32.partialorder %v515, 0.5
  %v517 = vsel %vm516, 1, 0
  %v518 = vlaneseq
  %v519 = vshrl.u32 %v518, 7
  %v520 = vsub.s32 0, %v519
  %v521 = vrot.slane %v517, %v520
  %v522 = vlaneseq
  %v523 = vshrl.u32 %v522, 7
  %v524 = vsub.s32 1, %v523
  %v525 = vrot.slane %v517, %v524
  %vm526 = vcmp.eq.s32.totalorder %v521, 1
  %vm527 = vcmp.eq.s32.totalorder %v525, 1
  %v528 = vsel %vm526, %v512, 0.0
  %v529 = vsel %vm527, %v513, 0.0
  %530 = vrot.lane.b32.xlu0 %v413, 113
  %v531 = vpop.permute.xlu0 %530
  %532 = vrot.lane.b32.xlu0 %v414, 113
  %v533 = vpop.permute.xlu0 %532
  %vm534 = vcmp.lt.s32.totalorder %v31, 113
  %v535 = vsel %vm534, %v531, %v533
  %v536 = vsel %vm534, %v533, %v531
  %s537 = scalar_lea.vmem %s4, 23
  %v538 = vld [vmem:[%s537] ss:$8 sm:$0x3]
  %vm539 = vcmp.gt.f32.partialorder %v538, 0.5
  %v540 = vsel %vm539, 1, 0
  %v541 = vlaneseq
  %v542 = vshrl.u32 %v541, 7
  %v543 = vsub.s32 0, %v542
  %v544 = vrot.slane %v540, %v543
  %v545 = vlaneseq
  %v546 = vshrl.u32 %v545, 7
  %v547 = vsub.s32 1, %v546
  %v548 = vrot.slane %v540, %v547
  %vm549 = vcmp.eq.s32.totalorder %v544, 1
  %vm550 = vcmp.eq.s32.totalorder %v548, 1
  %v551 = vsel %vm549, %v535, 0.0
  %v552 = vsel %vm550, %v536, 0.0
  %553 = vrot.lane.b32.xlu0 %v413, 112
  %v554 = vpop.permute.xlu0 %553
  %555 = vrot.lane.b32.xlu0 %v414, 112
  %v556 = vpop.permute.xlu0 %555
  %vm557 = vcmp.lt.s32.totalorder %v31, 112
  %v558 = vsel %vm557, %v554, %v556
  %v559 = vsel %vm557, %v556, %v554
  %s560 = scalar_lea.vmem %s4, 32
  %v561 = vld [vmem:[%s560] ss:$8 sm:$0x3]
  %vm562 = vcmp.gt.f32.partialorder %v561, 0.5
  %v563 = vsel %vm562, 1, 0
  %v564 = vlaneseq
  %v565 = vshrl.u32 %v564, 7
  %v566 = vsub.s32 0, %v565
  %v567 = vrot.slane %v563, %v566
  %v568 = vlaneseq
  %v569 = vshrl.u32 %v568, 7
  %v570 = vsub.s32 1, %v569
  %v571 = vrot.slane %v563, %v570
  %vm572 = vcmp.eq.s32.totalorder %v567, 1
  %vm573 = vcmp.eq.s32.totalorder %v571, 1
  %v574 = vsel %vm572, %v558, 0.0
  %v575 = vsel %vm573, %v559, 0.0
  %576 = vrot.lane.b32.xlu0 %v413, 111
  %v577 = vpop.permute.xlu0 %576
  %578 = vrot.lane.b32.xlu0 %v414, 111
  %v579 = vpop.permute.xlu0 %578
  %vm580 = vcmp.lt.s32.totalorder %v31, 111
  %v581 = vsel %vm580, %v577, %v579
  %v582 = vsel %vm580, %v579, %v577
  %s583 = scalar_lea.vmem %s4, 33
  %v584 = vld [vmem:[%s583] ss:$8 sm:$0x3]
  %vm585 = vcmp.gt.f32.partialorder %v584, 0.5
  %v586 = vsel %vm585, 1, 0
  %v587 = vlaneseq
  %v588 = vshrl.u32 %v587, 7
  %v589 = vsub.s32 0, %v588
  %v590 = vrot.slane %v586, %v589
  %v591 = vlaneseq
  %v592 = vshrl.u32 %v591, 7
  %v593 = vsub.s32 1, %v592
  %v594 = vrot.slane %v586, %v593
  %vm595 = vcmp.eq.s32.totalorder %v590, 1
  %vm596 = vcmp.eq.s32.totalorder %v594, 1
  %v597 = vsel %vm595, %v581, 0.0
  %v598 = vsel %vm596, %v582, 0.0
  %v599 = vld [vmem:[%s2] sm:$0xff]
  %600 = vset.pattern.permute.xlu0 3
  %601 = vperm.xlu0 %600, %v25
  %v602 = vpop.permute.xlu0 %601
  %v605 = vsel %vm217, %v599, 0
  %607 = vmatprep.subr.mxu0 %v437
  %608 = vmatpush1.msra.mxu0 %v436
  %609 = vmatprep.subr.mxu0 %v460
  %610 = vmatpush1.msra.mxu0 %v459
  %611 = vmatprep.subr.mxu0 %v483
  %612 = vmatpush1.msra.mxu0 %v482
  %613 = vmatprep.subr.mxu0 %v506
  %614 = vmatpush1.msra.mxu0 %v505
  %615 = vmatprep.subr.mxu0 %v414
  %616 = vmatpush1.msra.mxu0 %v413
  %617 = vmatprep.subr.mxu0 %v529
  %618 = vmatpush1.msra.mxu0 %v528
  %619 = vmatprep.subr.mxu0 %v552
  %620 = vmatpush1.msra.mxu0 %v551
  %621 = vmatprep.subr.mxu0 %v575
  %622 = vmatpush1.msra.mxu0 %v574
  %623 = vmatprep.subr.mxu0 %v598
  %624 = vmatpush1.msra.mxu0 %v597
  %625 = vmatprep.subr.mxu0 0.0
  %626 = vmatpush1.msra.mxu0 0.0
  %627 = vmatprep.subr.mxu0 0.0
  %628 = vmatpush1.msra.mxu0 0.0
  %629 = vmatprep.subr.mxu0 0.0
  %630 = vmatpush1.msra.mxu0 0.0
  %631 = vmatprep.subr.mxu0 0.0
  %632 = vmatpush1.msra.mxu0 0.0
  %633 = vmatprep.subr.mxu0 0.0
  %634 = vmatpush1.msra.mxu0 0.0
  %635 = vmatprep.subr.mxu0 0.0
  %636 = vmatpush1.msra.mxu0 0.0
  %637 = vmatprep.subr.mxu0 0.0
  %638 = vmatpush1.msra.mxu0 0.0
  %639 = vmatprep.subr.mxu0 0.0
  %640 = vmatpush1.msra.mxu0 0.0
  %641 = vmatprep.subr.mxu0 0.0
  %642 = vmatpush1.msra.mxu0 0.0
  %643 = vmatprep.subr.mxu0 0.0
  %644 = vmatpush1.msra.mxu0 0.0
  %645 = vmatprep.subr.mxu0 0.0
  %646 = vmatpush1.msra.mxu0 0.0
  %647 = vmatprep.subr.mxu0 0.0
  %648 = vmatpush1.msra.mxu0 0.0
  %649 = vmatprep.subr.mxu0 0.0
  %650 = vmatpush1.msra.mxu0 0.0
  %651 = vmatprep.subr.mxu0 0.0
  %652 = vmatpush1.msra.mxu0 0.0
  %653 = vmatprep.subr.mxu0 0.0
  %654 = vmatpush1.msra.mxu0 0.0
  %655 = vmatprep.subr.mxu0 0.0
  %656 = vmatpush1.msra.mxu0 0.0
  %657 = vmatprep.subr.mxu0 0.0
  %658 = vmatpush1.msra.mxu0 0.0
  %659 = vmatprep.subr.mxu0 0.0
  %660 = vmatpush1.msra.mxu0 0.0
  %661 = vmatprep.subr.mxu0 0.0
  %662 = vmatpush1.msra.mxu0 0.0
  %663 = vmatprep.subr.mxu0 0.0
  %664 = vmatpush1.msra.mxu0 0.0
  %665 = vmatprep.subr.mxu0 0.0
  %666 = vmatpush1.msra.mxu0 0.0
  %667 = vmatprep.subr.mxu0 0.0
  %668 = vmatpush1.msra.mxu0 0.0
  %669 = vmatprep.subr.mxu0 0.0
  %670 = vmatpush1.msra.mxu0 0.0
  %671 = vmatprep.mubr.f32.mxu0 0.0
  %672 = vmatmul.mubr.f32.gmra.mrb[0].mxu0 %v605
  %v673 = vpop.f32.mrb[0].mxu0
  %v674 = vadd.f32 %v602, %v673
  %v675 = vpop.f32.mrb[0].mxu0
  %v676 = vadd.f32 %v602, %v675
  %677 = vdwg.mxu0
  %v678 = vadd.f32 %v23, %v674
  %v679 = vadd.f32 %v24, %v676
  %680 = vst [vmem:[%s6] sm:$0xff] %v678
  %681 = vst [vmem:[%s6 + $0x8] sm:$0xff] %v679
  // Predicated region
  $region26: #{dilate_res_block.1} parent=0 // pred_check
    _
  $region27: #{dilate_res_block.1} parent=0 // pred_check_branch
    %683 = sbr.rel (0) target = $region29
  $region28: #{dilate_res_block.1} parent=0 // pred_region
    _
  $region29: #{dilate_res_block.1} parent=0 // pred_fallthru
    _
  // Predicated region
  $region30: #{dilate_res_block.1} parent=0 // pred_check
    _
  $region31: #{dilate_res_block.1} parent=0 // pred_check_branch
    %685 = sbr.rel (0) target = $region33
  $region32: #{dilate_res_block.1} parent=0 // pred_region
    _
  $region33: #{dilate_res_block.1} parent=0 // pred_fallthru
    _

</llo_original>
